<compile_context>
chip_gen: v7x
topology: tpu7x:2x2x1
jax: 0.10.0
libtpu: 0.0.40
codegen_flags: <defaults>
</compile_context>

<pallas_src>
import jax
import jax.numpy as jnp
from jax import lax
from jax.experimental import pallas as pl
from jax.experimental.pallas import tpu as pltpu

# Static problem sizes (small, synthetic).
N = 2
H = 16
W = 16
HW = H * W
CIN = 32
COUT = 32
CR = COUT // 16            # SEModule reduction=16
DILATIONS = (6, 12, 18)
OUT_PAD = 128              # lane-dense (zero-padded) output width

# Branch order of the fused feature slab: [feat1, feat2, feat0, feat3, gap].
# feat1/feat2 come straight out of the fused dilated matmul (lanes 0:64); the
# remaining blocks are one contiguous tail slice of the fused 1x1 result, so
# building `pre` is a single 2-way lane concat.
BR_ORDER = (1, 2, 0, 3, 4)

# Invariants the roll+mask dilated convs rely on:
#  (a) d < H, W for the two real branches: wherever the mask is 1 the rolled
#      source lies inside the same image, so wraparound only hits masked rows.
#  (b) d >= H, W for the folded branch: only its centre tap ever contributes.
assert all(d < min(H, W) for d in DILATIONS[:2])
assert DILATIONS[2] >= max(H, W)


def _mm(a, b):
    # MXU matmul: bf16 operands, f32 accumulation. Weights are pre-cast to
    # bf16 in the wrapper, so only the activation cast happens in-kernel.
    return jnp.dot(a.astype(jnp.bfloat16), b.astype(jnp.bfloat16),
                   preferred_element_type=jnp.float32)


# ---------------------------------------------------------------------------
# The fused ASPP kernel (one image per grid step).
# ---------------------------------------------------------------------------
def aspp_kernel(x_ref, mask_ref, w_x_ref, w_dil_ref, w1_ref, b1_ref, w2_ref,
                b2_ref, wp1x_ref, wp1f_ref, w2rep_ref, brep_ref, wproj_ref,
                out_ref):
    x = x_ref[...]                                         # (HW, CIN)

    # All x-facing 1x1 convs in one matmul.
    # column blocks: [pre_1 | pre_2 | feat0 | feat3(folded d=18) | gap]
    xw = _mm(x, w_x_ref[...])                              # (HW, 5*COUT)

    # Dilated 3x3 convs (d=6, d=12): 9 taps each as sublane rolls of the flat
    # pixel axis, lane-concatenated, masked once with the precomputed boundary
    # mask, then contracted with one block-diagonal weight -> [feat1 | feat2].
    taps = []
    for bi, d in enumerate(DILATIONS[:2]):
        t = xw[:, bi * COUT:(bi + 1) * COUT]
        for ki in range(3):
            for kj in range(3):
                s = (ki - 1) * d * W + (kj - 1) * d        # flat source offset
                # pltpu.roll follows jnp.roll (out[i] = in[i - shift]); we want
                # tap[i] = t[i + s]  =>  shift = -s.  Wrapped rows are zeroed
                # by the mask below.
                taps.append(t if s == 0 else
                            pltpu.roll(t, shift=(-s) % HW, axis=0))
    slab = jnp.concatenate(taps, axis=1) * mask_ref[...]   # (HW, 18*COUT)
    dil = _mm(slab, w_dil_ref[...])                        # (HW, 2*COUT)

    # Feature slab, order [feat1 | feat2 | feat0 | feat3 | gap(per-pixel raw)].
    pre = jnp.concatenate([dil, xw[:, 2 * COUT:]], axis=1)     # (HW, 5*COUT)

    # Per-image pooling of all five blocks in one tiny matmul.
    inv = jnp.full((1, HW), 1.0 / HW, jnp.float32)
    pooled = _mm(inv, pre)                                     # (1, 5*COUT)

    # The four SE blocks, fused block-diagonally.
    hidden = jnp.maximum(_mm(pooled[:, :4 * COUT], w1_ref[...]) + b1_ref[...], 0.0)
    scale4 = jax.nn.sigmoid(_mm(hidden, w2_ref[...]) + b2_ref[...])   # (1, 4*COUT)
    gp = pooled[:, 4 * COUT:]                                         # (1, COUT)

    feats = jnp.concatenate(
        [pre[:, :4 * COUT] * scale4, jnp.broadcast_to(gp, (HW, COUT))], axis=1)

    # psaa attention: 1x1 over concat(x, feats), then the per-channel-expanded
    # sigmoid head (w_psaa2 pre-replicated in the wrapper).
    psaa_h = _mm(x, wp1x_ref[...]) + _mm(feats, wp1f_ref[...])        # (HW, COUT)
    att_big = jax.nn.sigmoid(_mm(psaa_h, w2rep_ref[...]) + brep_ref[...])

    # Final projection into a lane-dense 128-wide (zero-padded) output slab.
    out_ref[...] = _mm(feats * att_big, wproj_ref[...])               # (HW, 128)


# ---------------------------------------------------------------------------
# Wrapper: mask precompute, weight packing, pallas_call, NCHW <-> 2D plumbing.
# ---------------------------------------------------------------------------
def _build_tap_mask():
    # (HW, 18*COUT) 0/1 validity mask: one 32-lane block per (branch, tap).
    r = jnp.arange(HW, dtype=jnp.int32) // W
    c = jnp.arange(HW, dtype=jnp.int32) % W
    blocks = []
    for d in DILATIONS[:2]:
        for ki in range(3):
            for kj in range(3):
                sh, sw = (ki - 1) * d, (kj - 1) * d
                valid = ((r + sh >= 0) & (r + sh < H) &
                         (c + sw >= 0) & (c + sw < W)).astype(jnp.float32)
                blocks.append(jnp.broadcast_to(valid[:, None], (HW, COUT)))
    return jnp.concatenate(blocks, axis=1)


def _pack_params(p):
    f32, bf16 = jnp.float32, jnp.bfloat16

    # d=18 degenerates to its centre tap on 16x16 -> compose into a single 1x1.
    w_feat3 = p['w_pre'][2] @ p['w3'][2 * 9 + 4]                   # (CIN, COUT)

    # Fused x-facing 1x1 weights: [pre_1 | pre_2 | feat0 | feat3 | gap].
    w_x = jnp.concatenate(
        [p['w_pre'][0], p['w_pre'][1], p['w_d0'], w_feat3, p['w_gap']], axis=1)

    # Block-diagonal fused dilated-conv weight (d=6 block, d=12 block).
    w_dil = jnp.zeros((18 * COUT, 2 * COUT), f32)
    w_dil = w_dil.at[:9 * COUT, :COUT].set(p['w3'][0:9].reshape(9 * COUT, COUT))
    w_dil = w_dil.at[9 * COUT:, COUT:].set(p['w3'][9:18].reshape(9 * COUT, COUT))

    # SE fc weights for the four conv branches, block-diagonal in slab order.
    w1bd = jnp.zeros((4 * COUT, 4 * CR), f32)
    w2bd = jnp.zeros((4 * CR, 4 * COUT), f32)
    b1 = jnp.zeros((1, 4 * CR), f32)
    b2 = jnp.zeros((1, 4 * COUT), f32)
    for pos in range(4):
        br = BR_ORDER[pos]
        w1bd = w1bd.at[pos * COUT:(pos + 1) * COUT,
                       pos * CR:(pos + 1) * CR].set(p['se_w1'][br])
        w2bd = w2bd.at[pos * CR:(pos + 1) * CR,
                       pos * COUT:(pos + 1) * COUT].set(p['se_w2'][br])
        b1 = b1.at[0, pos * CR:(pos + 1) * CR].set(p['se_b1'][br, 0])
        b2 = b2.at[0, pos * COUT:(pos + 1) * COUT].set(p['se_b2'][br, 0])

    # psaa 1x1: x part + feature-slab part (rows permuted to slab order).
    w_psaa1_x = p['w_psaa1'][:CIN]
    w_psaa1_f = jnp.concatenate(
        [p['w_psaa1'][CIN + br * COUT:CIN + (br + 1) * COUT] for br in BR_ORDER],
        axis=0)

    # psaa head pre-expanded per channel: sigmoid(repeat(x)) == repeat(sigmoid(x)).
    br_idx = jnp.array(BR_ORDER, jnp.int32)
    w2_rep = jnp.repeat(p['w_psaa2'][:, :, 0].T[:, br_idx], COUT, axis=1)  # (COUT, 5*COUT)
    b_rep = jnp.repeat(p['b_psaa2'][:, 0, 0][br_idx], COUT)[None, :]       # (1, 5*COUT)

    # Final projection: rows permuted to slab order, columns padded to 128 lanes.
    w_proj = jnp.concatenate(
        [p['w_proj'][br * COUT:(br + 1) * COUT] for br in BR_ORDER], axis=0)
    w_proj_pad = jnp.zeros((5 * COUT, OUT_PAD), f32).at[:, :COUT].set(w_proj)

    # Matmul weights in bf16 (halves DMA, no in-kernel cast); biases stay f32.
    return (w_x.astype(bf16), w_dil.astype(bf16),
            w1bd.astype(bf16), b1, w2bd.astype(bf16), b2,
            w_psaa1_x.astype(bf16), w_psaa1_f.astype(bf16),
            w2_rep.astype(bf16), b_rep, w_proj_pad.astype(bf16))


def _rep_spec(shape):
    nd = len(shape)
    return pl.BlockSpec(tuple(shape), lambda i, _nd=nd: (0,) * _nd)


def aspp_forward(x_nchw, p):
    x2d = jnp.transpose(x_nchw, (0, 2, 3, 1)).reshape(N * HW, CIN)
    tap_mask = _build_tap_mask()
    weights = _pack_params(p)

    out_flat = pl.pallas_call(
        aspp_kernel,
        out_shape=jax.ShapeDtypeStruct((N * HW, OUT_PAD), jnp.float32),
        grid_spec=pltpu.PrefetchScalarGridSpec(
            num_scalar_prefetch=0,
            grid=(N,),                                     # one image per step
            in_specs=[pl.BlockSpec((HW, CIN), lambda i: (i, 0)),
                      _rep_spec(tap_mask.shape)]
                     + [_rep_spec(w.shape) for w in weights],
            out_specs=pl.BlockSpec((HW, OUT_PAD), lambda i: (i, 0)),
        ),
        compiler_params=pltpu.CompilerParams(
            dimension_semantics=("parallel",)),            # both TCs on v7x
    )(x2d, tap_mask, *weights)

    out = out_flat[:, :COUT].reshape(N, H, W, COUT)
    return jnp.transpose(out, (0, 3, 1, 2))


# ---------------------------------------------------------------------------
# Parameters and pure-JAX reference (same as the previously validated version).
# ---------------------------------------------------------------------------
def init_params(key):
    ks = jax.random.split(key, 12)

    def rnd(k, shape, fan_in):
        return jax.random.normal(k, shape, jnp.float32) / jnp.sqrt(float(fan_in))

    return {
        'w_d0':    rnd(ks[0], (CIN, COUT), CIN),
        'w_pre':   rnd(ks[1], (3, CIN, COUT), CIN),
        'w3':      rnd(ks[2], (27, COUT, COUT), 9 * COUT),  # [branch*9+ki*3+kj, cin, cout]
        'se_w1':   rnd(ks[3], (4, COUT, CR), COUT),
        'se_b1':   0.1 * jax.random.normal(ks[4], (4, 1, CR), jnp.float32),
        'se_w2':   rnd(ks[5], (4, CR, COUT), CR),
        'se_b2':   0.1 * jax.random.normal(ks[6], (4, 1, COUT), jnp.float32),
        'w_gap':   rnd(ks[7], (CIN, COUT), CIN),
        'w_psaa1': rnd(ks[8], (CIN + 5 * COUT, COUT), CIN + 5 * COUT),
        'w_psaa2': rnd(ks[9], (5, COUT, 1), COUT),
        'b_psaa2': 0.1 * jax.random.normal(ks[10], (5, 1, 1), jnp.float32),
        'w_proj':  rnd(ks[11], (5 * COUT, COUT), 5 * COUT),
    }


def reference_forward(x_nchw, p):
    # Pure-JAX (XLA) reference reproducing the PyTorch forward, in NCHW.
    def conv1x1(x, w_io):                                   # w_io: (Cin, Cout)
        return jnp.einsum('nchw,cd->ndhw', x, w_io)

    def se_ref(feat, br):
        pooled = jnp.mean(feat, axis=(2, 3))                # (N, C)
        hidden = jnp.maximum(pooled @ p['se_w1'][br] + p['se_b1'][br], 0.0)
        scale = jax.nn.sigmoid(hidden @ p['se_w2'][br] + p['se_b2'][br])
        return feat * scale[:, :, None, None]

    def dil3x3(x, w_taps, d):                               # w_taps: (9, Cin, Cout)
        w = w_taps.reshape(3, 3, COUT, COUT)                # (ki, kj, ci, co)
        w_oihw = jnp.transpose(w, (3, 2, 0, 1))
        return lax.conv_general_dilated(
            x, w_oihw, window_strides=(1, 1), padding=[(d, d), (d, d)],
            rhs_dilation=(d, d), dimension_numbers=('NCHW', 'OIHW', 'NCHW'))

    feats = [se_ref(conv1x1(x_nchw, p['w_d0']), 0)]
    for bi, d in enumerate(DILATIONS):
        t = conv1x1(x_nchw, p['w_pre'][bi])
        feats.append(se_ref(dil3x3(t, p['w3'][bi * 9:(bi + 1) * 9], d), bi + 1))
    gp = jnp.mean(x_nchw, axis=(2, 3)) @ p['w_gap']
    feats.append(jnp.broadcast_to(gp[:, :, None, None], (N, COUT, H, W)))

    y1 = jnp.concatenate([x_nchw] + feats, axis=1)
    psaa_h = conv1x1(y1, p['w_psaa1'])
    w2 = jnp.transpose(p['w_psaa2'][:, :, 0])               # (COUT, 5)
    b2 = p['b_psaa2'][:, 0, 0]                              # (5,)
    att = jax.nn.sigmoid(conv1x1(psaa_h, w2) + b2[None, :, None, None])
    y2 = jnp.concatenate([att[:, i:i + 1] * feats[i] for i in range(5)], axis=1)
    return conv1x1(y2, p['w_proj'])


if __name__ == "__main__":
    key = jax.random.PRNGKey(0)
    kx, kp = jax.random.split(key)
    x = jax.random.normal(kx, (N, CIN, H, W), jnp.float32)
    params = init_params(kp)

    out = aspp_forward(x, params)
    out = jax.block_until_ready(out)

    ref = reference_forward(x, params)
    assert out.shape == (N, COUT, H, W)
    assert bool(jnp.all(jnp.isfinite(out)))
    assert bool(jnp.allclose(out, ref, atol=3e-2, rtol=3e-2))
    print("KERNEL_OK")
</pallas_src>

<mosaic_0001>
module attributes {stable_mosaic.version = 11 : i64} {
  func.func @aspp_kernel(%arg0: i32, %arg1: memref<256x32xf32, #tpu.memory_space<vmem>>, %arg2: memref<256x576xf32, #tpu.memory_space<vmem>>, %arg3: memref<32x160xbf16, #tpu.memory_space<vmem>>, %arg4: memref<576x64xbf16, #tpu.memory_space<vmem>>, %arg5: memref<128x8xbf16, #tpu.memory_space<vmem>>, %arg6: memref<1x8xf32, #tpu.memory_space<vmem>>, %arg7: memref<8x128xbf16, #tpu.memory_space<vmem>>, %arg8: memref<1x128xf32, #tpu.memory_space<vmem>>, %arg9: memref<32x32xbf16, #tpu.memory_space<vmem>>, %arg10: memref<160x32xbf16, #tpu.memory_space<vmem>>, %arg11: memref<32x160xbf16, #tpu.memory_space<vmem>>, %arg12: memref<1x160xf32, #tpu.memory_space<vmem>>, %arg13: memref<160x128xbf16, #tpu.memory_space<vmem>>, %arg14: memref<256x128xf32, #tpu.memory_space<vmem>>) attributes {dimension_semantics = [#tpu.dimension_semantics<parallel>], iteration_bounds = array<i64: 2>, scalar_prefetch = 0 : i64, scratch_operands = 0 : i64, tpu.core_type = #tpu.core_type<tc>, window_params = [{transform_indices = @transform_0, window_bounds = array<i64: 256, 32>}, {pipeline_mode = #tpu.pipeline_mode<synchronous>, transform_indices = @transform_1, window_bounds = array<i64: 256, 576>}, {pipeline_mode = #tpu.pipeline_mode<synchronous>, transform_indices = @transform_2, window_bounds = array<i64: 32, 160>}, {pipeline_mode = #tpu.pipeline_mode<synchronous>, transform_indices = @transform_3, window_bounds = array<i64: 576, 64>}, {pipeline_mode = #tpu.pipeline_mode<synchronous>, transform_indices = @transform_4, window_bounds = array<i64: 128, 8>}, {pipeline_mode = #tpu.pipeline_mode<synchronous>, transform_indices = @transform_5, window_bounds = array<i64: 1, 8>}, {pipeline_mode = #tpu.pipeline_mode<synchronous>, transform_indices = @transform_6, window_bounds = array<i64: 8, 128>}, {pipeline_mode = #tpu.pipeline_mode<synchronous>, transform_indices = @transform_7, window_bounds = array<i64: 1, 128>}, {pipeline_mode = #tpu.pipeline_mode<synchronous>, transform_indices = @transform_8, window_bounds = array<i64: 32, 32>}, {pipeline_mode = #tpu.pipeline_mode<synchronous>, transform_indices = @transform_9, window_bounds = array<i64: 160, 32>}, {pipeline_mode = #tpu.pipeline_mode<synchronous>, transform_indices = @transform_10, window_bounds = array<i64: 32, 160>}, {pipeline_mode = #tpu.pipeline_mode<synchronous>, transform_indices = @transform_11, window_bounds = array<i64: 1, 160>}, {pipeline_mode = #tpu.pipeline_mode<synchronous>, transform_indices = @transform_12, window_bounds = array<i64: 160, 128>}, {transform_indices = @transform_13, window_bounds = array<i64: 256, 128>}]} {
    %c0 = arith.constant 0 : index
    %c0_0 = arith.constant 0 : index
    %0 = vector.load %arg1[%c0, %c0_0] : memref<256x32xf32, #tpu.memory_space<vmem>>, vector<256x32xf32>
    %c0_1 = arith.constant 0 : index
    %c0_2 = arith.constant 0 : index
    %1 = vector.load %arg3[%c0_1, %c0_2] : memref<32x160xbf16, #tpu.memory_space<vmem>>, vector<32x160xbf16>
    %2 = arith.truncf %0 : vector<256x32xf32> to vector<256x32xbf16>
    %cst = arith.constant dense<0.000000e+00> : vector<256x160xf32>
    %3 = tpu.matmul %2, %1, %cst {dimension_numbers = #tpu.dot_dimension_numbers<[1], [0], [0], [1], [0, 0, 1, 1], [], []>} : vector<256x32xbf16>, vector<32x160xbf16>, vector<256x160xf32> -> vector<256x160xf32>
    %4 = vector.extract_strided_slice %3 {offsets = [0, 0], sizes = [256, 32], strides = [1, 1]} : vector<256x160xf32> to vector<256x32xf32>
    %c102_i32 = arith.constant 102 : i32
    %5 = tpu.dynamic_rotate %4 by %c102_i32 dim 0 : vector<256x32xf32>, i32 -> vector<256x32xf32>
    %c96_i32 = arith.constant 96 : i32
    %6 = tpu.dynamic_rotate %4 by %c96_i32 dim 0 : vector<256x32xf32>, i32 -> vector<256x32xf32>
    %c90_i32 = arith.constant 90 : i32
    %7 = tpu.dynamic_rotate %4 by %c90_i32 dim 0 : vector<256x32xf32>, i32 -> vector<256x32xf32>
    %c6_i32 = arith.constant 6 : i32
    %8 = tpu.dynamic_rotate %4 by %c6_i32 dim 0 : vector<256x32xf32>, i32 -> vector<256x32xf32>
    %c250_i32 = arith.constant 250 : i32
    %9 = tpu.dynamic_rotate %4 by %c250_i32 dim 0 : vector<256x32xf32>, i32 -> vector<256x32xf32>
    %c166_i32 = arith.constant 166 : i32
    %10 = tpu.dynamic_rotate %4 by %c166_i32 dim 0 : vector<256x32xf32>, i32 -> vector<256x32xf32>
    %c160_i32 = arith.constant 160 : i32
    %11 = tpu.dynamic_rotate %4 by %c160_i32 dim 0 : vector<256x32xf32>, i32 -> vector<256x32xf32>
    %c154_i32 = arith.constant 154 : i32
    %12 = tpu.dynamic_rotate %4 by %c154_i32 dim 0 : vector<256x32xf32>, i32 -> vector<256x32xf32>
    %13 = vector.extract_strided_slice %3 {offsets = [0, 32], sizes = [256, 32], strides = [1, 1]} : vector<256x160xf32> to vector<256x32xf32>
    %c204_i32 = arith.constant 204 : i32
    %14 = tpu.dynamic_rotate %13 by %c204_i32 dim 0 : vector<256x32xf32>, i32 -> vector<256x32xf32>
    %c192_i32 = arith.constant 192 : i32
    %15 = tpu.dynamic_rotate %13 by %c192_i32 dim 0 : vector<256x32xf32>, i32 -> vector<256x32xf32>
    %c180_i32 = arith.constant 180 : i32
    %16 = tpu.dynamic_rotate %13 by %c180_i32 dim 0 : vector<256x32xf32>, i32 -> vector<256x32xf32>
    %c12_i32 = arith.constant 12 : i32
    %17 = tpu.dynamic_rotate %13 by %c12_i32 dim 0 : vector<256x32xf32>, i32 -> vector<256x32xf32>
    %c244_i32 = arith.constant 244 : i32
    %18 = tpu.dynamic_rotate %13 by %c244_i32 dim 0 : vector<256x32xf32>, i32 -> vector<256x32xf32>
    %c76_i32 = arith.constant 76 : i32
    %19 = tpu.dynamic_rotate %13 by %c76_i32 dim 0 : vector<256x32xf32>, i32 -> vector<256x32xf32>
    %c64_i32 = arith.constant 64 : i32
    %20 = tpu.dynamic_rotate %13 by %c64_i32 dim 0 : vector<256x32xf32>, i32 -> vector<256x32xf32>
    %c52_i32 = arith.constant 52 : i32
    %21 = tpu.dynamic_rotate %13 by %c52_i32 dim 0 : vector<256x32xf32>, i32 -> vector<256x32xf32>
    %22 = tpu.concatenate %5, %6, %7, %8, %4, %9, %10, %11, %12, %14, %15, %16, %17, %13, %18, %19 in 1 : vector<256x32xf32>, vector<256x32xf32>, vector<256x32xf32>, vector<256x32xf32>, vector<256x32xf32>, vector<256x32xf32>, vector<256x32xf32>, vector<256x32xf32>, vector<256x32xf32>, vector<256x32xf32>, vector<256x32xf32>, vector<256x32xf32>, vector<256x32xf32>, vector<256x32xf32>, vector<256x32xf32>, vector<256x32xf32> -> vector<256x512xf32>
    %23 = tpu.concatenate %20, %21 in 1 : vector<256x32xf32>, vector<256x32xf32> -> vector<256x64xf32>
    %24 = tpu.concatenate %22, %23 in 1 : vector<256x512xf32>, vector<256x64xf32> -> vector<256x576xf32>
    %c0_3 = arith.constant 0 : index
    %c0_4 = arith.constant 0 : index
    %25 = vector.load %arg2[%c0_3, %c0_4] : memref<256x576xf32, #tpu.memory_space<vmem>>, vector<256x576xf32>
    %26 = arith.mulf %24, %25 : vector<256x576xf32>
    %c0_5 = arith.constant 0 : index
    %c0_6 = arith.constant 0 : index
    %27 = vector.load %arg4[%c0_5, %c0_6] : memref<576x64xbf16, #tpu.memory_space<vmem>>, vector<576x64xbf16>
    %28 = arith.truncf %26 : vector<256x576xf32> to vector<256x576xbf16>
    %cst_7 = arith.constant dense<0.000000e+00> : vector<256x64xf32>
    %29 = tpu.matmul %28, %27, %cst_7 {dimension_numbers = #tpu.dot_dimension_numbers<[1], [0], [0], [1], [0, 0, 1, 1], [], []>} : vector<256x576xbf16>, vector<576x64xbf16>, vector<256x64xf32> -> vector<256x64xf32>
    %30 = vector.extract_strided_slice %3 {offsets = [0, 64], sizes = [256, 96], strides = [1, 1]} : vector<256x160xf32> to vector<256x96xf32>
    %31 = tpu.concatenate %29, %30 in 1 : vector<256x64xf32>, vector<256x96xf32> -> vector<256x160xf32>
    %cst_8 = arith.constant 3.906250e-03 : f32
    %32 = vector.broadcast %cst_8 : f32 to vector<1x256xf32>
    %33 = arith.truncf %32 : vector<1x256xf32> to vector<1x256xbf16>
    %34 = arith.truncf %31 : vector<256x160xf32> to vector<256x160xbf16>
    %cst_9 = arith.constant dense<0.000000e+00> : vector<1x160xf32>
    %35 = tpu.matmul %33, %34, %cst_9 {dimension_numbers = #tpu.dot_dimension_numbers<[1], [0], [0], [1], [0, 0, 1, 1], [], []>} : vector<1x256xbf16>, vector<256x160xbf16>, vector<1x160xf32> -> vector<1x160xf32>
    %36 = vector.extract_strided_slice %35 {offsets = [0, 0], sizes = [1, 128], strides = [1, 1]} : vector<1x160xf32> to vector<1x128xf32>
    %c0_10 = arith.constant 0 : index
    %c0_11 = arith.constant 0 : index
    %37 = vector.load %arg5[%c0_10, %c0_11] : memref<128x8xbf16, #tpu.memory_space<vmem>>, vector<128x8xbf16>
    %38 = arith.truncf %36 : vector<1x128xf32> to vector<1x128xbf16>
    %cst_12 = arith.constant dense<0.000000e+00> : vector<1x8xf32>
    %39 = tpu.matmul %38, %37, %cst_12 {dimension_numbers = #tpu.dot_dimension_numbers<[1], [0], [0], [1], [0, 0, 1, 1], [], []>} : vector<1x128xbf16>, vector<128x8xbf16>, vector<1x8xf32> -> vector<1x8xf32>
    %c0_13 = arith.constant 0 : index
    %c0_14 = arith.constant 0 : index
    %40 = vector.load %arg6[%c0_13, %c0_14] : memref<1x8xf32, #tpu.memory_space<vmem>>, vector<1x8xf32>
    %41 = arith.addf %39, %40 : vector<1x8xf32>
    %cst_15 = arith.constant 0.000000e+00 : f32
    %42 = vector.broadcast %cst_15 : f32 to vector<1x8xf32>
    %43 = arith.maximumf %41, %42 : vector<1x8xf32>
    %c0_16 = arith.constant 0 : index
    %c0_17 = arith.constant 0 : index
    %44 = vector.load %arg7[%c0_16, %c0_17] : memref<8x128xbf16, #tpu.memory_space<vmem>>, vector<8x128xbf16>
    %45 = arith.truncf %43 : vector<1x8xf32> to vector<1x8xbf16>
    %cst_18 = arith.constant dense<0.000000e+00> : vector<1x128xf32>
    %46 = tpu.matmul %45, %44, %cst_18 {dimension_numbers = #tpu.dot_dimension_numbers<[1], [0], [0], [1], [0, 0, 1, 1], [], []>} : vector<1x8xbf16>, vector<8x128xbf16>, vector<1x128xf32> -> vector<1x128xf32>
    %c0_19 = arith.constant 0 : index
    %c0_20 = arith.constant 0 : index
    %47 = vector.load %arg8[%c0_19, %c0_20] : memref<1x128xf32, #tpu.memory_space<vmem>>, vector<1x128xf32>
    %48 = arith.addf %46, %47 : vector<1x128xf32>
    %49 = arith.negf %48 : vector<1x128xf32>
    %50 = math.exp %49 : vector<1x128xf32>
    %cst_21 = arith.constant 1.000000e+00 : f32
    %51 = vector.broadcast %cst_21 : f32 to vector<1x128xf32>
    %52 = arith.addf %51, %50 : vector<1x128xf32>
    %53 = arith.divf %51, %52 : vector<1x128xf32>
    %54 = vector.extract_strided_slice %35 {offsets = [0, 128], sizes = [1, 32], strides = [1, 1]} : vector<1x160xf32> to vector<1x32xf32>
    %55 = vector.extract_strided_slice %31 {offsets = [0, 0], sizes = [256, 128], strides = [1, 1]} : vector<256x160xf32> to vector<256x128xf32>
    %56 = vector.broadcast %53 : vector<1x128xf32> to vector<256x128xf32>
    %57 = arith.mulf %55, %56 : vector<256x128xf32>
    %58 = vector.shape_cast %54 : vector<1x32xf32> to vector<1x32xf32>
    %59 = vector.broadcast %58 : vector<1x32xf32> to vector<256x32xf32>
    %60 = tpu.concatenate %57, %59 in 1 : vector<256x128xf32>, vector<256x32xf32> -> vector<256x160xf32>
    %c0_22 = arith.constant 0 : index
    %c0_23 = arith.constant 0 : index
    %61 = vector.load %arg9[%c0_22, %c0_23] : memref<32x32xbf16, #tpu.memory_space<vmem>>, vector<32x32xbf16>
    %62 = arith.truncf %0 : vector<256x32xf32> to vector<256x32xbf16>
    %cst_24 = arith.constant dense<0.000000e+00> : vector<256x32xf32>
    %63 = tpu.matmul %62, %61, %cst_24 {dimension_numbers = #tpu.dot_dimension_numbers<[1], [0], [0], [1], [0, 0, 1, 1], [], []>} : vector<256x32xbf16>, vector<32x32xbf16>, vector<256x32xf32> -> vector<256x32xf32>
    %c0_25 = arith.constant 0 : index
    %c0_26 = arith.constant 0 : index
    %64 = vector.load %arg10[%c0_25, %c0_26] : memref<160x32xbf16, #tpu.memory_space<vmem>>, vector<160x32xbf16>
    %65 = arith.truncf %60 : vector<256x160xf32> to vector<256x160xbf16>
    %cst_27 = arith.constant dense<0.000000e+00> : vector<256x32xf32>
    %66 = tpu.matmul %65, %64, %cst_27 {dimension_numbers = #tpu.dot_dimension_numbers<[1], [0], [0], [1], [0, 0, 1, 1], [], []>} : vector<256x160xbf16>, vector<160x32xbf16>, vector<256x32xf32> -> vector<256x32xf32>
    %67 = arith.addf %63, %66 : vector<256x32xf32>
    %c0_28 = arith.constant 0 : index
    %c0_29 = arith.constant 0 : index
    %68 = vector.load %arg11[%c0_28, %c0_29] : memref<32x160xbf16, #tpu.memory_space<vmem>>, vector<32x160xbf16>
    %69 = arith.truncf %67 : vector<256x32xf32> to vector<256x32xbf16>
    %cst_30 = arith.constant dense<0.000000e+00> : vector<256x160xf32>
    %70 = tpu.matmul %69, %68, %cst_30 {dimension_numbers = #tpu.dot_dimension_numbers<[1], [0], [0], [1], [0, 0, 1, 1], [], []>} : vector<256x32xbf16>, vector<32x160xbf16>, vector<256x160xf32> -> vector<256x160xf32>
    %c0_31 = arith.constant 0 : index
    %c0_32 = arith.constant 0 : index
    %71 = vector.load %arg12[%c0_31, %c0_32] : memref<1x160xf32, #tpu.memory_space<vmem>>, vector<1x160xf32>
    %72 = vector.broadcast %71 : vector<1x160xf32> to vector<256x160xf32>
    %73 = arith.addf %70, %72 : vector<256x160xf32>
    %74 = arith.negf %73 : vector<256x160xf32>
    %75 = math.exp %74 : vector<256x160xf32>
    %cst_33 = arith.constant 1.000000e+00 : f32
    %76 = vector.broadcast %cst_33 : f32 to vector<256x160xf32>
    %77 = arith.addf %76, %75 : vector<256x160xf32>
    %78 = arith.divf %76, %77 : vector<256x160xf32>
    %79 = arith.mulf %60, %78 : vector<256x160xf32>
    %c0_34 = arith.constant 0 : index
    %c0_35 = arith.constant 0 : index
    %80 = vector.load %arg13[%c0_34, %c0_35] : memref<160x128xbf16, #tpu.memory_space<vmem>>, vector<160x128xbf16>
    %81 = arith.truncf %79 : vector<256x160xf32> to vector<256x160xbf16>
    %cst_36 = arith.constant dense<0.000000e+00> : vector<256x128xf32>
    %82 = tpu.matmul %81, %80, %cst_36 {dimension_numbers = #tpu.dot_dimension_numbers<[1], [0], [0], [1], [0, 0, 1, 1], [], []>} : vector<256x160xbf16>, vector<160x128xbf16>, vector<256x128xf32> -> vector<256x128xf32>
    %c0_37 = arith.constant 0 : index
    %c0_38 = arith.constant 0 : index
    %83 = vector.load %arg14[%c0_37, %c0_38] : memref<256x128xf32, #tpu.memory_space<vmem>>, vector<256x128xf32>
    tpu.vector_store %arg14[%c0_37, %c0_38], %82 {strides = array<i32>} : memref<256x128xf32, #tpu.memory_space<vmem>>, vector<256x128xf32>,
    return
  }
  func.func @transform_0(%arg0: i32) -> (i32, i32) {
    %c0_i32 = arith.constant 0 : i32
    %c0_i32_0 = arith.constant 0 : i32
    return %arg0, %c0_i32 : i32, i32
  }
  func.func @transform_1(%arg0: i32) -> (i32, i32) {
    %c0_i32 = arith.constant 0 : i32
    %c0_i32_0 = arith.constant 0 : i32
    %c0_i32_1 = arith.constant 0 : i32
    return %c0_i32, %c0_i32_0 : i32, i32
  }
  func.func @transform_2(%arg0: i32) -> (i32, i32) {
    %c0_i32 = arith.constant 0 : i32
    %c0_i32_0 = arith.constant 0 : i32
    %c0_i32_1 = arith.constant 0 : i32
    return %c0_i32, %c0_i32_0 : i32, i32
  }
  func.func @transform_3(%arg0: i32) -> (i32, i32) {
    %c0_i32 = arith.constant 0 : i32
    %c0_i32_0 = arith.constant 0 : i32
    %c0_i32_1 = arith.constant 0 : i32
    return %c0_i32, %c0_i32_0 : i32, i32
  }
  func.func @transform_4(%arg0: i32) -> (i32, i32) {
    %c0_i32 = arith.constant 0 : i32
    %c0_i32_0 = arith.constant 0 : i32
    %c0_i32_1 = arith.constant 0 : i32
    return %c0_i32, %c0_i32_0 : i32, i32
  }
  func.func @transform_5(%arg0: i32) -> (i32, i32) {
    %c0_i32 = arith.constant 0 : i32
    %c0_i32_0 = arith.constant 0 : i32
    %c0_i32_1 = arith.constant 0 : i32
    return %c0_i32, %c0_i32_0 : i32, i32
  }
  func.func @transform_6(%arg0: i32) -> (i32, i32) {
    %c0_i32 = arith.constant 0 : i32
    %c0_i32_0 = arith.constant 0 : i32
    %c0_i32_1 = arith.constant 0 : i32
    return %c0_i32, %c0_i32_0 : i32, i32
  }
  func.func @transform_7(%arg0: i32) -> (i32, i32) {
    %c0_i32 = arith.constant 0 : i32
    %c0_i32_0 = arith.constant 0 : i32
    %c0_i32_1 = arith.constant 0 : i32
    return %c0_i32, %c0_i32_0 : i32, i32
  }
  func.func @transform_8(%arg0: i32) -> (i32, i32) {
    %c0_i32 = arith.constant 0 : i32
    %c0_i32_0 = arith.constant 0 : i32
    %c0_i32_1 = arith.constant 0 : i32
    return %c0_i32, %c0_i32_0 : i32, i32
  }
  func.func @transform_9(%arg0: i32) -> (i32, i32) {
    %c0_i32 = arith.constant 0 : i32
    %c0_i32_0 = arith.constant 0 : i32
    %c0_i32_1 = arith.constant 0 : i32
    return %c0_i32, %c0_i32_0 : i32, i32
  }
  func.func @transform_10(%arg0: i32) -> (i32, i32) {
    %c0_i32 = arith.constant 0 : i32
    %c0_i32_0 = arith.constant 0 : i32
    %c0_i32_1 = arith.constant 0 : i32
    return %c0_i32, %c0_i32_0 : i32, i32
  }
  func.func @transform_11(%arg0: i32) -> (i32, i32) {
    %c0_i32 = arith.constant 0 : i32
    %c0_i32_0 = arith.constant 0 : i32
    %c0_i32_1 = arith.constant 0 : i32
    return %c0_i32, %c0_i32_0 : i32, i32
  }
  func.func @transform_12(%arg0: i32) -> (i32, i32) {
    %c0_i32 = arith.constant 0 : i32
    %c0_i32_0 = arith.constant 0 : i32
    %c0_i32_1 = arith.constant 0 : i32
    return %c0_i32, %c0_i32_0 : i32, i32
  }
  func.func @transform_13(%arg0: i32) -> (i32, i32) {
    %c0_i32 = arith.constant 0 : i32
    %c0_i32_0 = arith.constant 0 : i32
    return %arg0, %c0_i32 : i32, i32
  }
}

</mosaic_0001>

<llo_original>
// kernel: tpu_custom_call.1
$region0: #{tpu_custom_call.1}
  #allocation0 [shape = 'u32[]', space=smem, size = 0x4, offset = 0x4, fixed_abs, tag = 'smem constant byte address 0x4 - core index']
  #allocation1 [shape = 'u32[144,128]{1,0:T(1,128)}', space=vmem, size = 0x12000, scoped, tag = 'internal scratch']
  %s0 = inlined_call_operand.vmem [shape: f32[512,32], index: 0, kind: input, shape index: {}]
  %s1 = inlined_call_operand.vmem [shape: f32[256,576], index: 1, kind: input, shape index: {}]
  %s2 = inlined_call_operand.vmem [shape: bf16[32,160], index: 2, kind: input, shape index: {}]
  %s3 = inlined_call_operand.vmem [shape: bf16[576,64], index: 3, kind: input, shape index: {}]
  %s4 = inlined_call_operand.vmem [shape: bf16[128,8], index: 4, kind: input, shape index: {}]
  %s5 = inlined_call_operand.vmem [shape: f32[1,8], index: 5, kind: input, shape index: {}]
  %s6 = inlined_call_operand.vmem [shape: bf16[8,128], index: 6, kind: input, shape index: {}]
  %s7 = inlined_call_operand.vmem [shape: f32[1,128], index: 7, kind: input, shape index: {}]
  %s8 = inlined_call_operand.vmem [shape: bf16[32,32], index: 8, kind: input, shape index: {}]
  %s9 = inlined_call_operand.vmem [shape: bf16[160,32], index: 9, kind: input, shape index: {}]
  %s10 = inlined_call_operand.vmem [shape: bf16[32,160], index: 10, kind: input, shape index: {}]
  %s11 = inlined_call_operand.vmem [shape: f32[1,160], index: 11, kind: input, shape index: {}]
  %s12 = inlined_call_operand.vmem [shape: bf16[160,128], index: 12, kind: input, shape index: {}]
  %s13 = inlined_call_operand.hbm [shape: f32[512,128], index: 13, kind: output, shape index: {}]
  %s14 = sld [smem:[#allocation0]]
  $region85: #{tpu_custom_call.1} parent=0
    _
  %s16 = ssub.s32 1, %s14
  %s17 = scalar_select 0, %s16, %s14
  $region1: #{tpu_custom_call.1} parent=0
    #allocation2 [shape = 'u8[262144]{0}', space=vmem, size = 0x40000, scoped, tag = 'output window, operand 0']
    #allocation3 [shape = 's32[2]{0}', space=sflag, size = 0x8, scoped, tag = 'scoped memory for tpu_custom_call.1']
    %18 = vsyncpa [#allocation3], 0
    %s19 = scalar_lea.sflag [#allocation3], 1
    %20 = vsyncpa %s19, 0
    loop: start=0, step=1, limit=4
    $region2: #{tpu_custom_call.1} parent=1 // loop_pre_header
      _
    $region3: #{tpu_custom_call.1} parent=1 // loop_header
      %s22 = sphi 0, %s26
      %p23 = scmp.ge.s32.totalorder %s22, 4
      %s32 = sphi 0, %s34
      %s35 = sphi 0, %s32
      %s36 = sphi 0, %s35
      %s52 = sphi 0, %s36
      %s56 = sphi 0, %s56
      %s58 = sphi 0, %s56
      %s59 = sphi 0, %s58
      %s73 = sphi 0, %s59
      %s77 = sphi 0, %s77
      %s79 = sphi 0, %s77
      %s80 = sphi 0, %s79
      %s94 = sphi 0, %s80
      %s98 = sphi 0, %s98
      %s100 = sphi 0, %s98
      %s101 = sphi 0, %s100
      %s115 = sphi 0, %s101
      %s119 = sphi 0, %s119
      %s121 = sphi 0, %s119
      %s122 = sphi 0, %s121
      %s136 = sphi 0, %s122
      %s140 = sphi 0, %s140
      %s142 = sphi 0, %s140
      %s143 = sphi 0, %s142
      %s157 = sphi 0, %s143
      %s161 = sphi 0, %s161
      %s163 = sphi 0, %s161
      %s164 = sphi 0, %s163
      %s178 = sphi 0, %s164
      %s182 = sphi 0, %s182
      %s184 = sphi 0, %s182
      %s185 = sphi 0, %s184
      %s199 = sphi 0, %s185
      %s203 = sphi 0, %s203
      %s205 = sphi 0, %s203
      %s206 = sphi 0, %s205
      %s220 = sphi 0, %s206
      %s224 = sphi 0, %s224
      %s226 = sphi 0, %s224
      %s227 = sphi 0, %s226
      %s241 = sphi 0, %s227
      %s245 = sphi 0, %s245
      %s247 = sphi 0, %s245
      %s248 = sphi 0, %s247
      %s262 = sphi 0, %s248
      %s266 = sphi 0, %s266
      %s268 = sphi 0, %s266
      %s269 = sphi 0, %s268
      %s283 = sphi 0, %s269
      %s287 = sphi 0, %s287
      %s289 = sphi 0, %s287
      %s290 = sphi 0, %s289
      %s304 = sphi 0, %s290
      %s310 = sphi 0, %s312
      %s313 = sphi 0, %s310
      %s314 = sphi 0, %s313
      %s330 = sphi 0, %s314
    $region4: #{tpu_custom_call.1} parent=1 // loop_header_branch
      %25 = sbr.rel (%p23) target = $region8
    $region5: #{tpu_custom_call.1} parent=1 // loop_body
      %s27 = ssub.s32 %s22, 1
      %s28 = ssub.s32 %s22, 2
      %s29 = sadd.s32 %s22, 1
      %s30 = ssub.s32 %s22, %s29
      %p31 = scmp.eq.s32.totalorder %s30, 0
      %s33 = sadd.s32 %s32, 1
      %s34 = scalar_select %p31, %s32, %s33
      %p37 = pneg %p31
      %p38 = scmp.eq.s32.totalorder %s22, 1
      %p39 = por %p37, %p38
      %p40 = scmp.ne.s32.totalorder %s32, %s35
      %p41 = scmp.eq.s32.totalorder %s22, 0
      %p42 = por %p40, %p41
      %p43 = scmp.ne.s32.totalorder %s32, %s35
      %p44 = scmp.eq.s32.totalorder %s27, 1
      %p45 = por %p43, %p44
      %p46 = scmp.ne.s32.totalorder %s35, %s36
      %p47 = scmp.eq.s32.totalorder %s27, 0
      %p48 = por %p46, %p47
      %p49 = scmp.ne.s32.totalorder %s35, %s36
      %p50 = scmp.eq.s32.totalorder %s28, 1
      %p51 = por %p49, %p50
      %p53 = scmp.ne.s32.totalorder %s36, %s52
      %p54 = scmp.eq.s32.totalorder %s28, 0
      %p55 = por %p53, %p54
      %s57 = sadd.s32 %s56, 1
      %p60 = scmp.eq.s32.totalorder %s22, 1
      %p61 = scmp.ne.s32.totalorder %s56, %s58
      %p62 = scmp.eq.s32.totalorder %s22, 0
      %p63 = por %p61, %p62
      %p64 = scmp.ne.s32.totalorder %s56, %s58
      %p65 = scmp.eq.s32.totalorder %s27, 1
      %p66 = por %p64, %p65
      %p67 = scmp.ne.s32.totalorder %s58, %s59
      %p68 = scmp.eq.s32.totalorder %s27, 0
      %p69 = por %p67, %p68
      %p70 = scmp.ne.s32.totalorder %s58, %s59
      %p71 = scmp.eq.s32.totalorder %s28, 1
      %p72 = por %p70, %p71
      %p74 = scmp.ne.s32.totalorder %s59, %s73
      %p75 = scmp.eq.s32.totalorder %s28, 0
      %p76 = por %p74, %p75
      %s78 = sadd.s32 %s77, 1
      %p81 = scmp.eq.s32.totalorder %s22, 1
      %p82 = scmp.ne.s32.totalorder %s77, %s79
      %p83 = scmp.eq.s32.totalorder %s22, 0
      %p84 = por %p82, %p83
      %p85 = scmp.ne.s32.totalorder %s77, %s79
      %p86 = scmp.eq.s32.totalorder %s27, 1
      %p87 = por %p85, %p86
      %p88 = scmp.ne.s32.totalorder %s79, %s80
      %p89 = scmp.eq.s32.totalorder %s27, 0
      %p90 = por %p88, %p89
      %p91 = scmp.ne.s32.totalorder %s79, %s80
      %p92 = scmp.eq.s32.totalorder %s28, 1
      %p93 = por %p91, %p92
      %p95 = scmp.ne.s32.totalorder %s80, %s94
      %p96 = scmp.eq.s32.totalorder %s28, 0
      %p97 = por %p95, %p96
      %s99 = sadd.s32 %s98, 1
      %p102 = scmp.eq.s32.totalorder %s22, 1
      %p103 = scmp.ne.s32.totalorder %s98, %s100
      %p104 = scmp.eq.s32.totalorder %s22, 0
      %p105 = por %p103, %p104
      %p106 = scmp.ne.s32.totalorder %s98, %s100
      %p107 = scmp.eq.s32.totalorder %s27, 1
      %p108 = por %p106, %p107
      %p109 = scmp.ne.s32.totalorder %s100, %s101
      %p110 = scmp.eq.s32.totalorder %s27, 0
      %p111 = por %p109, %p110
      %p112 = scmp.ne.s32.totalorder %s100, %s101
      %p113 = scmp.eq.s32.totalorder %s28, 1
      %p114 = por %p112, %p113
      %p116 = scmp.ne.s32.totalorder %s101, %s115
      %p117 = scmp.eq.s32.totalorder %s28, 0
      %p118 = por %p116, %p117
      %s120 = sadd.s32 %s119, 1
      %p123 = scmp.eq.s32.totalorder %s22, 1
      %p124 = scmp.ne.s32.totalorder %s119, %s121
      %p125 = scmp.eq.s32.totalorder %s22, 0
      %p126 = por %p124, %p125
      %p127 = scmp.ne.s32.totalorder %s119, %s121
      %p128 = scmp.eq.s32.totalorder %s27, 1
      %p129 = por %p127, %p128
      %p130 = scmp.ne.s32.totalorder %s121, %s122
      %p131 = scmp.eq.s32.totalorder %s27, 0
      %p132 = por %p130, %p131
      %p133 = scmp.ne.s32.totalorder %s121, %s122
      %p134 = scmp.eq.s32.totalorder %s28, 1
      %p135 = por %p133, %p134
      %p137 = scmp.ne.s32.totalorder %s122, %s136
      %p138 = scmp.eq.s32.totalorder %s28, 0
      %p139 = por %p137, %p138
      %s141 = sadd.s32 %s140, 1
      %p144 = scmp.eq.s32.totalorder %s22, 1
      %p145 = scmp.ne.s32.totalorder %s140, %s142
      %p146 = scmp.eq.s32.totalorder %s22, 0
      %p147 = por %p145, %p146
      %p148 = scmp.ne.s32.totalorder %s140, %s142
      %p149 = scmp.eq.s32.totalorder %s27, 1
      %p150 = por %p148, %p149
      %p151 = scmp.ne.s32.totalorder %s142, %s143
      %p152 = scmp.eq.s32.totalorder %s27, 0
      %p153 = por %p151, %p152
      %p154 = scmp.ne.s32.totalorder %s142, %s143
      %p155 = scmp.eq.s32.totalorder %s28, 1
      %p156 = por %p154, %p155
      %p158 = scmp.ne.s32.totalorder %s143, %s157
      %p159 = scmp.eq.s32.totalorder %s28, 0
      %p160 = por %p158, %p159
      %s162 = sadd.s32 %s161, 1
      %p165 = scmp.eq.s32.totalorder %s22, 1
      %p166 = scmp.ne.s32.totalorder %s161, %s163
      %p167 = scmp.eq.s32.totalorder %s22, 0
      %p168 = por %p166, %p167
      %p169 = scmp.ne.s32.totalorder %s161, %s163
      %p170 = scmp.eq.s32.totalorder %s27, 1
      %p171 = por %p169, %p170
      %p172 = scmp.ne.s32.totalorder %s163, %s164
      %p173 = scmp.eq.s32.totalorder %s27, 0
      %p174 = por %p172, %p173
      %p175 = scmp.ne.s32.totalorder %s163, %s164
      %p176 = scmp.eq.s32.totalorder %s28, 1
      %p177 = por %p175, %p176
      %p179 = scmp.ne.s32.totalorder %s164, %s178
      %p180 = scmp.eq.s32.totalorder %s28, 0
      %p181 = por %p179, %p180
      %s183 = sadd.s32 %s182, 1
      %p186 = scmp.eq.s32.totalorder %s22, 1
      %p187 = scmp.ne.s32.totalorder %s182, %s184
      %p188 = scmp.eq.s32.totalorder %s22, 0
      %p189 = por %p187, %p188
      %p190 = scmp.ne.s32.totalorder %s182, %s184
      %p191 = scmp.eq.s32.totalorder %s27, 1
      %p192 = por %p190, %p191
      %p193 = scmp.ne.s32.totalorder %s184, %s185
      %p194 = scmp.eq.s32.totalorder %s27, 0
      %p195 = por %p193, %p194
      %p196 = scmp.ne.s32.totalorder %s184, %s185
      %p197 = scmp.eq.s32.totalorder %s28, 1
      %p198 = por %p196, %p197
      %p200 = scmp.ne.s32.totalorder %s185, %s199
      %p201 = scmp.eq.s32.totalorder %s28, 0
      %p202 = por %p200, %p201
      %s204 = sadd.s32 %s203, 1
      %p207 = scmp.eq.s32.totalorder %s22, 1
      %p208 = scmp.ne.s32.totalorder %s203, %s205
      %p209 = scmp.eq.s32.totalorder %s22, 0
      %p210 = por %p208, %p209
      %p211 = scmp.ne.s32.totalorder %s203, %s205
      %p212 = scmp.eq.s32.totalorder %s27, 1
      %p213 = por %p211, %p212
      %p214 = scmp.ne.s32.totalorder %s205, %s206
      %p215 = scmp.eq.s32.totalorder %s27, 0
      %p216 = por %p214, %p215
      %p217 = scmp.ne.s32.totalorder %s205, %s206
      %p218 = scmp.eq.s32.totalorder %s28, 1
      %p219 = por %p217, %p218
      %p221 = scmp.ne.s32.totalorder %s206, %s220
      %p222 = scmp.eq.s32.totalorder %s28, 0
      %p223 = por %p221, %p222
      %s225 = sadd.s32 %s224, 1
      %p228 = scmp.eq.s32.totalorder %s22, 1
      %p229 = scmp.ne.s32.totalorder %s224, %s226
      %p230 = scmp.eq.s32.totalorder %s22, 0
      %p231 = por %p229, %p230
      %p232 = scmp.ne.s32.totalorder %s224, %s226
      %p233 = scmp.eq.s32.totalorder %s27, 1
      %p234 = por %p232, %p233
      %p235 = scmp.ne.s32.totalorder %s226, %s227
      %p236 = scmp.eq.s32.totalorder %s27, 0
      %p237 = por %p235, %p236
      %p238 = scmp.ne.s32.totalorder %s226, %s227
      %p239 = scmp.eq.s32.totalorder %s28, 1
      %p240 = por %p238, %p239
      %p242 = scmp.ne.s32.totalorder %s227, %s241
      %p243 = scmp.eq.s32.totalorder %s28, 0
      %p244 = por %p242, %p243
      %s246 = sadd.s32 %s245, 1
      %p249 = scmp.eq.s32.totalorder %s22, 1
      %p250 = scmp.ne.s32.totalorder %s245, %s247
      %p251 = scmp.eq.s32.totalorder %s22, 0
      %p252 = por %p250, %p251
      %p253 = scmp.ne.s32.totalorder %s245, %s247
      %p254 = scmp.eq.s32.totalorder %s27, 1
      %p255 = por %p253, %p254
      %p256 = scmp.ne.s32.totalorder %s247, %s248
      %p257 = scmp.eq.s32.totalorder %s27, 0
      %p258 = por %p256, %p257
      %p259 = scmp.ne.s32.totalorder %s247, %s248
      %p260 = scmp.eq.s32.totalorder %s28, 1
      %p261 = por %p259, %p260
      %p263 = scmp.ne.s32.totalorder %s248, %s262
      %p264 = scmp.eq.s32.totalorder %s28, 0
      %p265 = por %p263, %p264
      %s267 = sadd.s32 %s266, 1
      %p270 = scmp.eq.s32.totalorder %s22, 1
      %p271 = scmp.ne.s32.totalorder %s266, %s268
      %p272 = scmp.eq.s32.totalorder %s22, 0
      %p273 = por %p271, %p272
      %p274 = scmp.ne.s32.totalorder %s266, %s268
      %p275 = scmp.eq.s32.totalorder %s27, 1
      %p276 = por %p274, %p275
      %p277 = scmp.ne.s32.totalorder %s268, %s269
      %p278 = scmp.eq.s32.totalorder %s27, 0
      %p279 = por %p277, %p278
      %p280 = scmp.ne.s32.totalorder %s268, %s269
      %p281 = scmp.eq.s32.totalorder %s28, 1
      %p282 = por %p280, %p281
      %p284 = scmp.ne.s32.totalorder %s269, %s283
      %p285 = scmp.eq.s32.totalorder %s28, 0
      %p286 = por %p284, %p285
      %s288 = sadd.s32 %s287, 1
      %p291 = scmp.eq.s32.totalorder %s22, 1
      %p292 = scmp.ne.s32.totalorder %s287, %s289
      %p293 = scmp.eq.s32.totalorder %s22, 0
      %p294 = por %p292, %p293
      %p295 = scmp.ne.s32.totalorder %s287, %s289
      %p296 = scmp.eq.s32.totalorder %s27, 1
      %p297 = por %p295, %p296
      %p298 = scmp.ne.s32.totalorder %s289, %s290
      %p299 = scmp.eq.s32.totalorder %s27, 0
      %p300 = por %p298, %p299
      %p301 = scmp.ne.s32.totalorder %s289, %s290
      %p302 = scmp.eq.s32.totalorder %s28, 1
      %p303 = por %p301, %p302
      %p305 = scmp.ne.s32.totalorder %s290, %s304
      %p306 = scmp.eq.s32.totalorder %s28, 0
      %p307 = por %p305, %p306
      %s308 = ssub.s32 %s22, %s29
      %p309 = scmp.eq.s32.totalorder %s308, 0
      %s311 = sadd.s32 %s310, 1
      %s312 = scalar_select %p309, %s310, %s311
      %p315 = pneg %p309
      %p316 = scmp.eq.s32.totalorder %s22, 1
      %p317 = por %p315, %p316
      %p318 = scmp.ne.s32.totalorder %s310, %s313
      %p319 = scmp.eq.s32.totalorder %s22, 0
      %p320 = por %p318, %p319
      %p321 = scmp.ne.s32.totalorder %s310, %s313
      %p322 = scmp.eq.s32.totalorder %s27, 1
      %p323 = por %p321, %p322
      %p324 = scmp.ne.s32.totalorder %s313, %s314
      %p325 = scmp.eq.s32.totalorder %s27, 0
      %p326 = por %p324, %p325
      %p327 = scmp.ne.s32.totalorder %s313, %s314
      %p328 = scmp.eq.s32.totalorder %s28, 1
      %p329 = por %p327, %p328
      %p331 = scmp.ne.s32.totalorder %s314, %s330
      %p332 = scmp.eq.s32.totalorder %s28, 0
      %p333 = por %p331, %p332
      %p334 = scmp.le.s32.totalorder 1, %s22
      %p335 = scmp.lt.s32.totalorder %s22, 3
      %p336 = pnand %p334, %p335
      %p337 = pneg %p336
      // Predicated region
      $region9: #{tpu_custom_call.1} parent=5 // pred_check
        _
      $region10: #{tpu_custom_call.1} parent=5 // pred_check_branch
        %339 = sbr.rel (%p336) target = $region12
      $region11: #{tpu_custom_call.1} parent=5 // pred_region
        %s340 = ssub.s32 %s22, 1
        // Predicated region
        $region13: #{tpu_custom_call.1} parent=11 // pred_check
          %p341 = pneg %p69
        $region14: #{tpu_custom_call.1} parent=11 // pred_check_branch
          %343 = sbr.rel (%p341) target = $region16
        $region15: #{tpu_custom_call.1} parent=11 // pred_region
          _
        $region16: #{tpu_custom_call.1} parent=11 // pred_fallthru
          _
        // Predicated region
        $region17: #{tpu_custom_call.1} parent=11 // pred_check
          %p344 = pneg %p90
        $region18: #{tpu_custom_call.1} parent=11 // pred_check_branch
          %346 = sbr.rel (%p344) target = $region20
        $region19: #{tpu_custom_call.1} parent=11 // pred_region
          _
        $region20: #{tpu_custom_call.1} parent=11 // pred_fallthru
          _
        // Predicated region
        $region21: #{tpu_custom_call.1} parent=11 // pred_check
          %p347 = pneg %p111
        $region22: #{tpu_custom_call.1} parent=11 // pred_check_branch
          %349 = sbr.rel (%p347) target = $region24
        $region23: #{tpu_custom_call.1} parent=11 // pred_region
          _
        $region24: #{tpu_custom_call.1} parent=11 // pred_fallthru
          _
        // Predicated region
        $region25: #{tpu_custom_call.1} parent=11 // pred_check
          %p350 = pneg %p132
        $region26: #{tpu_custom_call.1} parent=11 // pred_check_branch
          %352 = sbr.rel (%p350) target = $region28
        $region27: #{tpu_custom_call.1} parent=11 // pred_region
          _
        $region28: #{tpu_custom_call.1} parent=11 // pred_fallthru
          _
        // Predicated region
        $region29: #{tpu_custom_call.1} parent=11 // pred_check
          %p353 = pneg %p153
        $region30: #{tpu_custom_call.1} parent=11 // pred_check_branch
          %355 = sbr.rel (%p353) target = $region32
        $region31: #{tpu_custom_call.1} parent=11 // pred_region
          _
        $region32: #{tpu_custom_call.1} parent=11 // pred_fallthru
          _
        // Predicated region
        $region33: #{tpu_custom_call.1} parent=11 // pred_check
          %p356 = pneg %p174
        $region34: #{tpu_custom_call.1} parent=11 // pred_check_branch
          %358 = sbr.rel (%p356) target = $region36
        $region35: #{tpu_custom_call.1} parent=11 // pred_region
          _
        $region36: #{tpu_custom_call.1} parent=11 // pred_fallthru
          _
        // Predicated region
        $region37: #{tpu_custom_call.1} parent=11 // pred_check
          %p359 = pneg %p195
        $region38: #{tpu_custom_call.1} parent=11 // pred_check_branch
          %361 = sbr.rel (%p359) target = $region40
        $region39: #{tpu_custom_call.1} parent=11 // pred_region
          _
        $region40: #{tpu_custom_call.1} parent=11 // pred_fallthru
          _
        // Predicated region
        $region41: #{tpu_custom_call.1} parent=11 // pred_check
          %p362 = pneg %p216
        $region42: #{tpu_custom_call.1} parent=11 // pred_check_branch
          %364 = sbr.rel (%p362) target = $region44
        $region43: #{tpu_custom_call.1} parent=11 // pred_region
          _
        $region44: #{tpu_custom_call.1} parent=11 // pred_fallthru
          _
        // Predicated region
        $region45: #{tpu_custom_call.1} parent=11 // pred_check
          %p365 = pneg %p237
        $region46: #{tpu_custom_call.1} parent=11 // pred_check_branch
          %367 = sbr.rel (%p365) target = $region48
        $region47: #{tpu_custom_call.1} parent=11 // pred_region
          _
        $region48: #{tpu_custom_call.1} parent=11 // pred_fallthru
          _
        // Predicated region
        $region49: #{tpu_custom_call.1} parent=11 // pred_check
          %p368 = pneg %p258
        $region50: #{tpu_custom_call.1} parent=11 // pred_check_branch
          %370 = sbr.rel (%p368) target = $region52
        $region51: #{tpu_custom_call.1} parent=11 // pred_region
          _
        $region52: #{tpu_custom_call.1} parent=11 // pred_fallthru
          _
        // Predicated region
        $region53: #{tpu_custom_call.1} parent=11 // pred_check
          %p371 = pneg %p279
        $region54: #{tpu_custom_call.1} parent=11 // pred_check_branch
          %373 = sbr.rel (%p371) target = $region56
        $region55: #{tpu_custom_call.1} parent=11 // pred_region
          _
        $region56: #{tpu_custom_call.1} parent=11 // pred_fallthru
          _
        // Predicated region
        $region57: #{tpu_custom_call.1} parent=11 // pred_check
          %p374 = pneg %p300
        $region58: #{tpu_custom_call.1} parent=11 // pred_check_branch
          %376 = sbr.rel (%p374) target = $region60
        $region59: #{tpu_custom_call.1} parent=11 // pred_region
          _
        $region60: #{tpu_custom_call.1} parent=11 // pred_fallthru
          _
      $region12: #{tpu_custom_call.1} parent=5 // pred_fallthru
        _
      %p377 = scmp.lt.s32.totalorder %s22, 2
      // Predicated region
      $region61: #{tpu_custom_call.1} parent=5 // pred_check
        %p378 = pneg %p377
      $region62: #{tpu_custom_call.1} parent=5 // pred_check_branch
        %380 = sbr.rel (%p378) target = $region64
      $region63: #{tpu_custom_call.1} parent=5 // pred_region
        // Predicated region
        $region65: #{tpu_custom_call.1} parent=63 // pred_check
          %p381 = pneg %p42
        $region66: #{tpu_custom_call.1} parent=63 // pred_check_branch
          %383 = sbr.rel (%p381) target = $region68
        $region67: #{tpu_custom_call.1} parent=63 // pred_region
          %s384 = smul.u32 32, %s22
          %p385 = scmp.lt.s32.totalorder %s384, 63
          %s386 = scalar_select %p385, %s384, 63
          %s387 = smul.addr %s386, 8
          %s388 = scalar_lea.vmem %s0, %s387
          %s389 = smul.u32 32, %s22
        $region68: #{tpu_custom_call.1} parent=63 // pred_fallthru
          _
      $region64: #{tpu_custom_call.1} parent=5 // pred_fallthru
        _
      %p390 = scmp.le.s32.totalorder 1, %s22
      %p391 = scmp.lt.s32.totalorder %s22, 3
      %p392 = pnand %p390, %p391
      %p393 = pneg %p392
      // Predicated region
      $region69: #{tpu_custom_call.1} parent=5 // pred_check
        _
      $region70: #{tpu_custom_call.1} parent=5 // pred_check_branch
        %395 = sbr.rel (%p392) target = $region72
      $region71: #{tpu_custom_call.1} parent=5 // pred_region
        %s396 = ssub.s32 %s22, 1
        %s397 = smul.u32 32, %s27
        %p398 = scmp.lt.s32.totalorder %s397, 63
        %s399 = scalar_select %p398, %s397, 63
        %s400 = smul.addr %s399, 8
        %s401 = scalar_lea.vmem %s0, %s400
        %p402 = pneg %p48
        %p403 = pneg %p45
        %p404 = pneg %p69
        %p405 = pneg %p66
        %p406 = pneg %p90
        %p407 = pneg %p87
        %p408 = pneg %p111
        %p409 = pneg %p108
        %p410 = pneg %p132
        %p411 = pneg %p129
        %p412 = pneg %p153
        %p413 = pneg %p150
        %p414 = pneg %p174
        %p415 = pneg %p171
        %p416 = pneg %p195
        %p417 = pneg %p192
        %p418 = pneg %p216
        %p419 = pneg %p213
        %p420 = pneg %p237
        %p421 = pneg %p234
        %p422 = pneg %p258
        %p423 = pneg %p255
        %p424 = pneg %p279
        %p425 = pneg %p276
        %p426 = pneg %p300
        %p427 = pneg %p297
        %p428 = pneg %p326
        %p429 = pneg %p323
        %s430 = sand.u32 %s313, 1
        %s431 = scalar_lea.sflag [#allocation3], %s430
        %s432 = sand.u32 %s313, 1
        %s433 = smul.addr %s432, 256
        %s434 = scalar_lea.vmem [#allocation2], %s433
        %s435 = smul.u32 32, %s27
        %p436 = scmp.lt.s32.totalorder %s435, 63
        %s437 = scalar_select %p436, %s435, 63
        %s438 = smul.addr %s437, 8
        %s439 = scalar_lea.vmem %s0, %s438
        %s440 = smul.u32 32, %s27
        %s441 = smul.u32 32, %s27
        %v444 = vld [vmem:[%s439] sm:$0xff]
        %v445 = vld [vmem:[%s439 + $0x8] sm:$0xff]
        %v446 = vld [vmem:[%s439 + $0x10] sm:$0xff]
        %v447 = vld [vmem:[%s439 + $0x18] sm:$0xff]
        %v448 = vld [vmem:[%s439 + $0x20] sm:$0xff]
        %v449 = vld [vmem:[%s439 + $0x28] sm:$0xff]
        %v450 = vld [vmem:[%s439 + $0x30] sm:$0xff]
        %v451 = vld [vmem:[%s439 + $0x38] sm:$0xff]
        %v452 = vld [vmem:[%s439 + $0x40] sm:$0xff]
        %v453 = vld [vmem:[%s439 + $0x48] sm:$0xff]
        %v454 = vld [vmem:[%s439 + $0x50] sm:$0xff]
        %v455 = vld [vmem:[%s439 + $0x58] sm:$0xff]
        %v456 = vld [vmem:[%s439 + $0x60] sm:$0xff]
        %v457 = vld [vmem:[%s439 + $0x68] sm:$0xff]
        %v458 = vld [vmem:[%s439 + $0x70] sm:$0xff]
        %v459 = vld [vmem:[%s439 + $0x78] sm:$0xff]
        %v460 = vld [vmem:[%s439 + $0x80] sm:$0xff]
        %v461 = vld [vmem:[%s439 + $0x88] sm:$0xff]
        %v462 = vld [vmem:[%s439 + $0x90] sm:$0xff]
        %v463 = vld [vmem:[%s439 + $0x98] sm:$0xff]
        %v464 = vld [vmem:[%s439 + $0xa0] sm:$0xff]
        %v465 = vld [vmem:[%s439 + $0xa8] sm:$0xff]
        %v466 = vld [vmem:[%s439 + $0xb0] sm:$0xff]
        %v467 = vld [vmem:[%s439 + $0xb8] sm:$0xff]
        %v468 = vld [vmem:[%s439 + $0xc0] sm:$0xff]
        %v469 = vld [vmem:[%s439 + $0xc8] sm:$0xff]
        %v470 = vld [vmem:[%s439 + $0xd0] sm:$0xff]
        %v471 = vld [vmem:[%s439 + $0xd8] sm:$0xff]
        %v472 = vld [vmem:[%s439 + $0xe0] sm:$0xff]
        %v473 = vld [vmem:[%s439 + $0xe8] sm:$0xff]
        %v474 = vld [vmem:[%s439 + $0xf0] sm:$0xff]
        %v475 = vld [vmem:[%s439 + $0xf8] sm:$0xff]
        %v476 = vld [vmem:[%s2] sm:$0xff]
        %v477 = vld [vmem:[%s2 + $0x8] sm:$0xff]
        %v478 = vld [vmem:[%s2 + $0x10] sm:$0xff]
        %v479 = vld [vmem:[%s2 + $0x18] sm:$0xff]
        %v480 = vpack.c.bf16 %v445, %v444
        %v481 = vpack.c.bf16 %v447, %v446
        %v482 = vpack.c.bf16 %v449, %v448
        %v483 = vpack.c.bf16 %v451, %v450
        %v484 = vpack.c.bf16 %v453, %v452
        %v485 = vpack.c.bf16 %v455, %v454
        %v486 = vpack.c.bf16 %v457, %v456
        %v487 = vpack.c.bf16 %v459, %v458
        %v488 = vpack.c.bf16 %v461, %v460
        %v489 = vpack.c.bf16 %v463, %v462
        %v490 = vpack.c.bf16 %v465, %v464
        %v491 = vpack.c.bf16 %v467, %v466
        %v492 = vpack.c.bf16 %v469, %v468
        %v493 = vpack.c.bf16 %v471, %v470
        %v494 = vpack.c.bf16 %v473, %v472
        %v495 = vpack.c.bf16 %v475, %v474
        %v500 = vunpack.c.l.b16 %v476
        %v501 = vunpack.c.h.b16 %v476
        %v502 = vunpack.c.l.b16 %v477
        %v503 = vunpack.c.h.b16 %v477
        %v504 = vunpack.c.l.b16 %v478
        %v505 = vunpack.c.h.b16 %v478
        %v506 = vunpack.c.l.b16 %v479
        %v507 = vunpack.c.h.b16 %v479
        %v508 = vpack.c.b16 %v502, %v500
        %v509 = vpack.c.b16 %v503, %v501
        %v510 = vpack.c.b16 %v506, %v504
        %v511 = vpack.c.b16 %v507, %v505
        %vm516 = vcmask 261120
        %v518 = vsel %vm516, %v480, 0
        %v521 = vsel %vm516, %v481, 0
        %v524 = vsel %vm516, %v482, 0
        %v527 = vsel %vm516, %v483, 0
        %v530 = vsel %vm516, %v484, 0
        %v533 = vsel %vm516, %v485, 0
        %v536 = vsel %vm516, %v486, 0
        %v539 = vsel %vm516, %v487, 0
        %v542 = vsel %vm516, %v488, 0
        %v545 = vsel %vm516, %v489, 0
        %v548 = vsel %vm516, %v490, 0
        %v551 = vsel %vm516, %v491, 0
        %v554 = vsel %vm516, %v492, 0
        %v557 = vsel %vm516, %v493, 0
        %v560 = vsel %vm516, %v494, 0
        %v563 = vsel %vm516, %v495, 0
        %565 = vmatprep.subr.bf16.mxu0 %v509
        %566 = vmatpush1.bf16.msra.mxu0 %v508
        %567 = vmatprep.subr.bf16.mxu0 %v511
        %568 = vmatpush1.bf16.msra.mxu0 %v510
        %569 = vmatprep.subr.bf16.mxu0 0
        %570 = vmatpush1.bf16.msra.mxu0 0
        %571 = vmatprep.subr.bf16.mxu0 0
        %572 = vmatpush1.bf16.msra.mxu0 0
        %573 = vmatprep.subr.bf16.mxu0 0
        %574 = vmatpush1.bf16.msra.mxu0 0
        %575 = vmatprep.subr.bf16.mxu0 0
        %576 = vmatpush1.bf16.msra.mxu0 0
        %577 = vmatprep.subr.bf16.mxu0 0
        %578 = vmatpush1.bf16.msra.mxu0 0
        %579 = vmatprep.subr.bf16.mxu0 0
        %580 = vmatpush1.bf16.msra.mxu0 0
        %581 = vmatprep.subr.bf16.mxu0 0
        %582 = vmatpush1.bf16.msra.mxu0 0
        %583 = vmatprep.subr.bf16.mxu0 0
        %584 = vmatpush1.bf16.msra.mxu0 0
        %585 = vmatprep.subr.bf16.mxu0 0
        %586 = vmatpush1.bf16.msra.mxu0 0
        %587 = vmatprep.subr.bf16.mxu0 0
        %588 = vmatpush1.bf16.msra.mxu0 0
        %589 = vmatprep.subr.bf16.mxu0 0
        %590 = vmatpush1.bf16.msra.mxu0 0
        %591 = vmatprep.subr.bf16.mxu0 0
        %592 = vmatpush1.bf16.msra.mxu0 0
        %593 = vmatprep.subr.bf16.mxu0 0
        %594 = vmatpush1.bf16.msra.mxu0 0
        %595 = vmatprep.subr.bf16.mxu0 0
        %596 = vmatpush1.bf16.msra.mxu0 0
        %597 = vmatprep.mubr.bf16.mxu0 0
        %598 = vmatmul.mubr.bf16.gmra.mrb[0].mxu0 %v518
        %v599 = vpop.f32.mrb[0].mxu0
        %v600 = vadd.f32 0.0, %v599
        %v601 = vpop.f32.mrb[0].mxu0
        %v602 = vadd.f32 0.0, %v601
        %v603 = vpop.f32.mrb[0].mxu0
        %v604 = vadd.f32 0.0, %v603
        %v605 = vpop.f32.mrb[0].mxu0
        %v606 = vadd.f32 0.0, %v605
        %607 = vmatprep.mubr.bf16.mxu0 0
        %608 = vmatmul.mubr.bf16.gmra.mrb[0].mxu0 %v521
        %v609 = vpop.f32.mrb[0].mxu0
        %v610 = vadd.f32 0.0, %v609
        %v611 = vpop.f32.mrb[0].mxu0
        %v612 = vadd.f32 0.0, %v611
        %v613 = vpop.f32.mrb[0].mxu0
        %v614 = vadd.f32 0.0, %v613
        %v615 = vpop.f32.mrb[0].mxu0
        %v616 = vadd.f32 0.0, %v615
        %617 = vmatprep.mubr.bf16.mxu0 0
        %618 = vmatmul.mubr.bf16.gmra.mrb[0].mxu0 %v524
        %v619 = vpop.f32.mrb[0].mxu0
        %v620 = vadd.f32 0.0, %v619
        %v621 = vpop.f32.mrb[0].mxu0
        %v622 = vadd.f32 0.0, %v621
        %v623 = vpop.f32.mrb[0].mxu0
        %v624 = vadd.f32 0.0, %v623
        %v625 = vpop.f32.mrb[0].mxu0
        %v626 = vadd.f32 0.0, %v625
        %627 = vmatprep.mubr.bf16.mxu0 0
        %628 = vmatmul.mubr.bf16.gmra.mrb[0].mxu0 %v527
        %v629 = vpop.f32.mrb[0].mxu0
        %v630 = vadd.f32 0.0, %v629
        %v631 = vpop.f32.mrb[0].mxu0
        %v632 = vadd.f32 0.0, %v631
        %v633 = vpop.f32.mrb[0].mxu0
        %v634 = vadd.f32 0.0, %v633
        %v635 = vpop.f32.mrb[0].mxu0
        %v636 = vadd.f32 0.0, %v635
        %637 = vmatprep.mubr.bf16.mxu0 0
        %638 = vmatmul.mubr.bf16.gmra.mrb[0].mxu0 %v530
        %v639 = vpop.f32.mrb[0].mxu0
        %v640 = vadd.f32 0.0, %v639
        %v641 = vpop.f32.mrb[0].mxu0
        %v642 = vadd.f32 0.0, %v641
        %v643 = vpop.f32.mrb[0].mxu0
        %v644 = vadd.f32 0.0, %v643
        %v645 = vpop.f32.mrb[0].mxu0
        %v646 = vadd.f32 0.0, %v645
        %647 = vmatprep.mubr.bf16.mxu0 0
        %648 = vmatmul.mubr.bf16.gmra.mrb[0].mxu0 %v533
        %v649 = vpop.f32.mrb[0].mxu0
        %v650 = vadd.f32 0.0, %v649
        %v651 = vpop.f32.mrb[0].mxu0
        %v652 = vadd.f32 0.0, %v651
        %v653 = vpop.f32.mrb[0].mxu0
        %v654 = vadd.f32 0.0, %v653
        %v655 = vpop.f32.mrb[0].mxu0
        %v656 = vadd.f32 0.0, %v655
        %657 = vmatprep.mubr.bf16.mxu0 0
        %658 = vmatmul.mubr.bf16.gmra.mrb[0].mxu0 %v536
        %v659 = vpop.f32.mrb[0].mxu0
        %v660 = vadd.f32 0.0, %v659
        %v661 = vpop.f32.mrb[0].mxu0
        %v662 = vadd.f32 0.0, %v661
        %v663 = vpop.f32.mrb[0].mxu0
        %v664 = vadd.f32 0.0, %v663
        %v665 = vpop.f32.mrb[0].mxu0
        %v666 = vadd.f32 0.0, %v665
        %667 = vmatprep.mubr.bf16.mxu0 0
        %668 = vmatmul.mubr.bf16.gmra.mrb[0].mxu0 %v539
        %v669 = vpop.f32.mrb[0].mxu0
        %v670 = vadd.f32 0.0, %v669
        %v671 = vpop.f32.mrb[0].mxu0
        %v672 = vadd.f32 0.0, %v671
        %v673 = vpop.f32.mrb[0].mxu0
        %v674 = vadd.f32 0.0, %v673
        %v675 = vpop.f32.mrb[0].mxu0
        %v676 = vadd.f32 0.0, %v675
        %677 = vmatprep.mubr.bf16.mxu0 0
        %678 = vmatmul.mubr.bf16.gmra.mrb[0].mxu0 %v542
        %v679 = vpop.f32.mrb[0].mxu0
        %v680 = vadd.f32 0.0, %v679
        %v681 = vpop.f32.mrb[0].mxu0
        %v682 = vadd.f32 0.0, %v681
        %v683 = vpop.f32.mrb[0].mxu0
        %v684 = vadd.f32 0.0, %v683
        %v685 = vpop.f32.mrb[0].mxu0
        %v686 = vadd.f32 0.0, %v685
        %687 = vmatprep.mubr.bf16.mxu0 0
        %688 = vmatmul.mubr.bf16.gmra.mrb[0].mxu0 %v545
        %v689 = vpop.f32.mrb[0].mxu0
        %v690 = vadd.f32 0.0, %v689
        %v691 = vpop.f32.mrb[0].mxu0
        %v692 = vadd.f32 0.0, %v691
        %v693 = vpop.f32.mrb[0].mxu0
        %v694 = vadd.f32 0.0, %v693
        %v695 = vpop.f32.mrb[0].mxu0
        %v696 = vadd.f32 0.0, %v695
        %697 = vmatprep.mubr.bf16.mxu0 0
        %698 = vmatmul.mubr.bf16.gmra.mrb[0].mxu0 %v548
        %v699 = vpop.f32.mrb[0].mxu0
        %v700 = vadd.f32 0.0, %v699
        %v701 = vpop.f32.mrb[0].mxu0
        %v702 = vadd.f32 0.0, %v701
        %v703 = vpop.f32.mrb[0].mxu0
        %v704 = vadd.f32 0.0, %v703
        %v705 = vpop.f32.mrb[0].mxu0
        %v706 = vadd.f32 0.0, %v705
        %707 = vmatprep.mubr.bf16.mxu0 0
        %708 = vmatmul.mubr.bf16.gmra.mrb[0].mxu0 %v551
        %v709 = vpop.f32.mrb[0].mxu0
        %v710 = vadd.f32 0.0, %v709
        %v711 = vpop.f32.mrb[0].mxu0
        %v712 = vadd.f32 0.0, %v711
        %v713 = vpop.f32.mrb[0].mxu0
        %v714 = vadd.f32 0.0, %v713
        %v715 = vpop.f32.mrb[0].mxu0
        %v716 = vadd.f32 0.0, %v715
        %717 = vmatprep.mubr.bf16.mxu0 0
        %718 = vmatmul.mubr.bf16.gmra.mrb[0].mxu0 %v554
        %v719 = vpop.f32.mrb[0].mxu0
        %v720 = vadd.f32 0.0, %v719
        %v721 = vpop.f32.mrb[0].mxu0
        %v722 = vadd.f32 0.0, %v721
        %v723 = vpop.f32.mrb[0].mxu0
        %v724 = vadd.f32 0.0, %v723
        %v725 = vpop.f32.mrb[0].mxu0
        %v726 = vadd.f32 0.0, %v725
        %727 = vmatprep.mubr.bf16.mxu0 0
        %728 = vmatmul.mubr.bf16.gmra.mrb[0].mxu0 %v557
        %v729 = vpop.f32.mrb[0].mxu0
        %v730 = vadd.f32 0.0, %v729
        %v731 = vpop.f32.mrb[0].mxu0
        %v732 = vadd.f32 0.0, %v731
        %v733 = vpop.f32.mrb[0].mxu0
        %v734 = vadd.f32 0.0, %v733
        %v735 = vpop.f32.mrb[0].mxu0
        %v736 = vadd.f32 0.0, %v735
        %737 = vmatprep.mubr.bf16.mxu0 0
        %738 = vmatmul.mubr.bf16.gmra.mrb[0].mxu0 %v560
        %v739 = vpop.f32.mrb[0].mxu0
        %v740 = vadd.f32 0.0, %v739
        %v741 = vpop.f32.mrb[0].mxu0
        %v742 = vadd.f32 0.0, %v741
        %v743 = vpop.f32.mrb[0].mxu0
        %v744 = vadd.f32 0.0, %v743
        %v745 = vpop.f32.mrb[0].mxu0
        %v746 = vadd.f32 0.0, %v745
        %747 = vmatprep.mubr.bf16.mxu0 0
        %748 = vmatmul.mubr.bf16.gmra.mrb[0].mxu0 %v563
        %v749 = vpop.f32.mrb[0].mxu0
        %v750 = vadd.f32 0.0, %v749
        %v751 = vpop.f32.mrb[0].mxu0
        %v752 = vadd.f32 0.0, %v751
        %v753 = vpop.f32.mrb[0].mxu0
        %v754 = vadd.f32 0.0, %v753
        %v755 = vpop.f32.mrb[0].mxu0
        %v756 = vadd.f32 0.0, %v755
        %757 = vdwg.mxu0
        %v758 = vrot.slane %v600, 2
        %v759 = vrot.slane %v604, 2
        %v760 = vrot.slane %v610, 2
        %v761 = vrot.slane %v614, 2
        %v762 = vrot.slane %v620, 2
        %v763 = vrot.slane %v624, 2
        %v764 = vrot.slane %v630, 2
        %v765 = vrot.slane %v634, 2
        %v766 = vrot.slane %v640, 2
        %v767 = vrot.slane %v644, 2
        %v768 = vrot.slane %v650, 2
        %v769 = vrot.slane %v654, 2
        %v770 = vrot.slane %v660, 2
        %v771 = vrot.slane %v664, 2
        %v772 = vrot.slane %v670, 2
        %v773 = vrot.slane %v674, 2
        %v774 = vrot.slane %v680, 2
        %v775 = vrot.slane %v684, 2
        %v776 = vrot.slane %v690, 2
        %v777 = vrot.slane %v694, 2
        %v778 = vrot.slane %v700, 2
        %v779 = vrot.slane %v704, 2
        %v780 = vrot.slane %v710, 2
        %v781 = vrot.slane %v714, 2
        %v782 = vrot.slane %v720, 2
        %v783 = vrot.slane %v724, 2
        %v784 = vrot.slane %v730, 2
        %v785 = vrot.slane %v734, 2
        %v786 = vrot.slane %v740, 2
        %v787 = vrot.slane %v744, 2
        %v788 = vrot.slane %v750, 2
        %v789 = vrot.slane %v754, 2
        %v790 = vlaneseq
        %v791 = vshrl.u32 %v790, 7
        %vm792 = vcmp.lt.s32.totalorder %v791, 6
        %v793 = vsel %vm792, %v788, %v789
        %v794 = vsel %vm792, %v787, %v788
        %v795 = vsel %vm792, %v786, %v787
        %v796 = vsel %vm792, %v785, %v786
        %v797 = vsel %vm792, %v784, %v785
        %v798 = vsel %vm792, %v783, %v784
        %v799 = vsel %vm792, %v782, %v783
        %v800 = vsel %vm792, %v781, %v782
        %v801 = vsel %vm792, %v780, %v781
        %v802 = vsel %vm792, %v779, %v780
        %v803 = vsel %vm792, %v778, %v779
        %v804 = vsel %vm792, %v777, %v778
        %v805 = vsel %vm792, %v776, %v777
        %v806 = vsel %vm792, %v775, %v776
        %v807 = vsel %vm792, %v774, %v775
        %v808 = vsel %vm792, %v773, %v774
        %v809 = vsel %vm792, %v772, %v773
        %v810 = vsel %vm792, %v771, %v772
        %v811 = vsel %vm792, %v770, %v771
        %v812 = vsel %vm792, %v769, %v770
        %v813 = vsel %vm792, %v768, %v769
        %v814 = vsel %vm792, %v767, %v768
        %v815 = vsel %vm792, %v766, %v767
        %v816 = vsel %vm792, %v765, %v766
        %v817 = vsel %vm792, %v764, %v765
        %v818 = vsel %vm792, %v763, %v764
        %v819 = vsel %vm792, %v762, %v763
        %v820 = vsel %vm792, %v761, %v762
        %v821 = vsel %vm792, %v760, %v761
        %v822 = vsel %vm792, %v759, %v760
        %v823 = vsel %vm792, %v758, %v759
        %v824 = vsel %vm792, %v789, %v758
        %v825 = vrot.slane %v600, 6
        %v826 = vrot.slane %v604, 6
        %v827 = vrot.slane %v610, 6
        %v828 = vrot.slane %v614, 6
        %v829 = vrot.slane %v620, 6
        %v830 = vrot.slane %v624, 6
        %v831 = vrot.slane %v630, 6
        %v832 = vrot.slane %v634, 6
        %v833 = vrot.slane %v640, 6
        %v834 = vrot.slane %v644, 6
        %v835 = vrot.slane %v650, 6
        %v836 = vrot.slane %v654, 6
        %v837 = vrot.slane %v660, 6
        %v838 = vrot.slane %v664, 6
        %v839 = vrot.slane %v670, 6
        %v840 = vrot.slane %v674, 6
        %v841 = vrot.slane %v680, 6
        %v842 = vrot.slane %v684, 6
        %v843 = vrot.slane %v690, 6
        %v844 = vrot.slane %v694, 6
        %v845 = vrot.slane %v700, 6
        %v846 = vrot.slane %v704, 6
        %v847 = vrot.slane %v710, 6
        %v848 = vrot.slane %v714, 6
        %v849 = vrot.slane %v720, 6
        %v850 = vrot.slane %v724, 6
        %v851 = vrot.slane %v730, 6
        %v852 = vrot.slane %v734, 6
        %v853 = vrot.slane %v740, 6
        %v854 = vrot.slane %v744, 6
        %v855 = vrot.slane %v750, 6
        %v856 = vrot.slane %v754, 6
        %vm857 = vcmp.lt.s32.totalorder %v791, 2
        %v858 = vsel %vm857, %v855, %v856
        %v859 = vsel %vm857, %v854, %v855
        %v860 = vsel %vm857, %v853, %v854
        %v861 = vsel %vm857, %v852, %v853
        %v862 = vsel %vm857, %v851, %v852
        %v863 = vsel %vm857, %v850, %v851
        %v864 = vsel %vm857, %v849, %v850
        %v865 = vsel %vm857, %v848, %v849
        %v866 = vsel %vm857, %v847, %v848
        %v867 = vsel %vm857, %v846, %v847
        %v868 = vsel %vm857, %v845, %v846
        %v869 = vsel %vm857, %v844, %v845
        %v870 = vsel %vm857, %v843, %v844
        %v871 = vsel %vm857, %v842, %v843
        %v872 = vsel %vm857, %v841, %v842
        %v873 = vsel %vm857, %v840, %v841
        %v874 = vsel %vm857, %v839, %v840
        %v875 = vsel %vm857, %v838, %v839
        %v876 = vsel %vm857, %v837, %v838
        %v877 = vsel %vm857, %v836, %v837
        %v878 = vsel %vm857, %v835, %v836
        %v879 = vsel %vm857, %v834, %v835
        %v880 = vsel %vm857, %v833, %v834
        %v881 = vsel %vm857, %v832, %v833
        %v882 = vsel %vm857, %v831, %v832
        %v883 = vsel %vm857, %v830, %v831
        %v884 = vsel %vm857, %v829, %v830
        %v885 = vsel %vm857, %v828, %v829
        %v886 = vsel %vm857, %v827, %v828
        %v887 = vsel %vm857, %v826, %v827
        %v888 = vsel %vm857, %v825, %v826
        %v889 = vsel %vm857, %v856, %v825
        %922 = vrot.lane.b32.xlu0 %v600, 96
        %v923 = vpop.permute.xlu0 %922
        %924 = vrot.lane.b32.xlu0 %v604, 96
        %v925 = vpop.permute.xlu0 %924
        %926 = vrot.lane.b32.xlu0 %v610, 96
        %v927 = vpop.permute.xlu0 %926
        %928 = vrot.lane.b32.xlu0 %v614, 96
        %v929 = vpop.permute.xlu0 %928
        %930 = vrot.lane.b32.xlu0 %v620, 96
        %v931 = vpop.permute.xlu0 %930
        %932 = vrot.lane.b32.xlu0 %v624, 96
        %v933 = vpop.permute.xlu0 %932
        %934 = vrot.lane.b32.xlu0 %v630, 96
        %v935 = vpop.permute.xlu0 %934
        %936 = vrot.lane.b32.xlu0 %v634, 96
        %v937 = vpop.permute.xlu0 %936
        %938 = vrot.lane.b32.xlu0 %v640, 96
        %v939 = vpop.permute.xlu0 %938
        %940 = vrot.lane.b32.xlu0 %v644, 96
        %v941 = vpop.permute.xlu0 %940
        %942 = vrot.lane.b32.xlu0 %v650, 96
        %v943 = vpop.permute.xlu0 %942
        %944 = vrot.lane.b32.xlu0 %v654, 96
        %v945 = vpop.permute.xlu0 %944
        %946 = vrot.lane.b32.xlu0 %v660, 96
        %v947 = vpop.permute.xlu0 %946
        %948 = vrot.lane.b32.xlu0 %v664, 96
        %v949 = vpop.permute.xlu0 %948
        %950 = vrot.lane.b32.xlu0 %v670, 96
        %v951 = vpop.permute.xlu0 %950
        %952 = vrot.lane.b32.xlu0 %v674, 96
        %v953 = vpop.permute.xlu0 %952
        %954 = vrot.lane.b32.xlu0 %v680, 96
        %v955 = vpop.permute.xlu0 %954
        %956 = vrot.lane.b32.xlu0 %v684, 96
        %v957 = vpop.permute.xlu0 %956
        %958 = vrot.lane.b32.xlu0 %v690, 96
        %v959 = vpop.permute.xlu0 %958
        %960 = vrot.lane.b32.xlu0 %v694, 96
        %v961 = vpop.permute.xlu0 %960
        %962 = vrot.lane.b32.xlu0 %v700, 96
        %v963 = vpop.permute.xlu0 %962
        %964 = vrot.lane.b32.xlu0 %v704, 96
        %v965 = vpop.permute.xlu0 %964
        %966 = vrot.lane.b32.xlu0 %v710, 96
        %v967 = vpop.permute.xlu0 %966
        %968 = vrot.lane.b32.xlu0 %v714, 96
        %v969 = vpop.permute.xlu0 %968
        %970 = vrot.lane.b32.xlu0 %v720, 96
        %v971 = vpop.permute.xlu0 %970
        %972 = vrot.lane.b32.xlu0 %v724, 96
        %v973 = vpop.permute.xlu0 %972
        %974 = vrot.lane.b32.xlu0 %v730, 96
        %v975 = vpop.permute.xlu0 %974
        %976 = vrot.lane.b32.xlu0 %v734, 96
        %v977 = vpop.permute.xlu0 %976
        %978 = vrot.lane.b32.xlu0 %v740, 96
        %v979 = vpop.permute.xlu0 %978
        %980 = vrot.lane.b32.xlu0 %v744, 96
        %v981 = vpop.permute.xlu0 %980
        %982 = vrot.lane.b32.xlu0 %v750, 96
        %v983 = vpop.permute.xlu0 %982
        %984 = vrot.lane.b32.xlu0 %v754, 96
        %v985 = vpop.permute.xlu0 %984
        %v1018 = vrot.slane %v923, 4
        %v1019 = vrot.slane %v925, 4
        %v1020 = vrot.slane %v927, 4
        %v1021 = vrot.slane %v929, 4
        %v1022 = vrot.slane %v931, 4
        %v1023 = vrot.slane %v933, 4
        %v1024 = vrot.slane %v935, 4
        %v1025 = vrot.slane %v937, 4
        %v1026 = vrot.slane %v939, 4
        %v1027 = vrot.slane %v941, 4
        %v1028 = vrot.slane %v943, 4
        %v1029 = vrot.slane %v945, 4
        %v1030 = vrot.slane %v947, 4
        %v1031 = vrot.slane %v949, 4
        %v1032 = vrot.slane %v951, 4
        %v1033 = vrot.slane %v953, 4
        %v1034 = vrot.slane %v955, 4
        %v1035 = vrot.slane %v957, 4
        %v1036 = vrot.slane %v959, 4
        %v1037 = vrot.slane %v961, 4
        %v1038 = vrot.slane %v963, 4
        %v1039 = vrot.slane %v965, 4
        %v1040 = vrot.slane %v967, 4
        %v1041 = vrot.slane %v969, 4
        %v1042 = vrot.slane %v971, 4
        %v1043 = vrot.slane %v973, 4
        %v1044 = vrot.slane %v975, 4
        %v1045 = vrot.slane %v977, 4
        %v1046 = vrot.slane %v979, 4
        %v1047 = vrot.slane %v981, 4
        %v1048 = vrot.slane %v983, 4
        %v1049 = vrot.slane %v985, 4
        %vm1050 = vcmp.lt.s32.totalorder %v791, 4
        %v1051 = vsel %vm1050, %v1048, %v1049
        %v1052 = vsel %vm1050, %v1047, %v1048
        %v1053 = vsel %vm1050, %v1046, %v1047
        %v1054 = vsel %vm1050, %v1045, %v1046
        %v1055 = vsel %vm1050, %v1044, %v1045
        %v1056 = vsel %vm1050, %v1043, %v1044
        %v1057 = vsel %vm1050, %v1042, %v1043
        %v1058 = vsel %vm1050, %v1041, %v1042
        %v1059 = vsel %vm1050, %v1040, %v1041
        %v1060 = vsel %vm1050, %v1039, %v1040
        %v1061 = vsel %vm1050, %v1038, %v1039
        %v1062 = vsel %vm1050, %v1037, %v1038
        %v1063 = vsel %vm1050, %v1036, %v1037
        %v1064 = vsel %vm1050, %v1035, %v1036
        %v1065 = vsel %vm1050, %v1034, %v1035
        %v1066 = vsel %vm1050, %v1033, %v1034
        %v1067 = vsel %vm1050, %v1032, %v1033
        %v1068 = vsel %vm1050, %v1031, %v1032
        %v1069 = vsel %vm1050, %v1030, %v1031
        %v1070 = vsel %vm1050, %v1029, %v1030
        %v1071 = vsel %vm1050, %v1028, %v1029
        %v1072 = vsel %vm1050, %v1027, %v1028
        %v1073 = vsel %vm1050, %v1026, %v1027
        %v1074 = vsel %vm1050, %v1025, %v1026
        %v1075 = vsel %vm1050, %v1024, %v1025
        %v1076 = vsel %vm1050, %v1023, %v1024
        %v1077 = vsel %vm1050, %v1022, %v1023
        %v1078 = vsel %vm1050, %v1021, %v1022
        %v1079 = vsel %vm1050, %v1020, %v1021
        %v1080 = vsel %vm1050, %v1019, %v1020
        %v1081 = vsel %vm1050, %v1018, %v1019
        %v1082 = vsel %vm1050, %v1049, %v1018
        %1083 = vrot.lane.b32.xlu0 %v700, 32
        %v1084 = vpop.permute.xlu0 %1083
        %1085 = vrot.lane.b32.xlu0 %v704, 32
        %v1086 = vpop.permute.xlu0 %1085
        %1087 = vrot.lane.b32.xlu0 %v710, 32
        %v1088 = vpop.permute.xlu0 %1087
        %1089 = vrot.lane.b32.xlu0 %v714, 32
        %v1090 = vpop.permute.xlu0 %1089
        %1091 = vrot.lane.b32.xlu0 %v720, 32
        %v1092 = vpop.permute.xlu0 %1091
        %1093 = vrot.lane.b32.xlu0 %v724, 32
        %v1094 = vpop.permute.xlu0 %1093
        %1095 = vrot.lane.b32.xlu0 %v730, 32
        %v1096 = vpop.permute.xlu0 %1095
        %1097 = vrot.lane.b32.xlu0 %v734, 32
        %v1098 = vpop.permute.xlu0 %1097
        %1099 = vrot.lane.b32.xlu0 %v740, 32
        %v1100 = vpop.permute.xlu0 %1099
        %1101 = vrot.lane.b32.xlu0 %v744, 32
        %v1102 = vpop.permute.xlu0 %1101
        %1103 = vrot.lane.b32.xlu0 %v750, 32
        %v1104 = vpop.permute.xlu0 %1103
        %1105 = vrot.lane.b32.xlu0 %v754, 32
        %v1106 = vpop.permute.xlu0 %1105
        %1107 = vrot.lane.b32.xlu0 %v600, 32
        %v1108 = vpop.permute.xlu0 %1107
        %1109 = vrot.lane.b32.xlu0 %v604, 32
        %v1110 = vpop.permute.xlu0 %1109
        %1111 = vrot.lane.b32.xlu0 %v610, 32
        %v1112 = vpop.permute.xlu0 %1111
        %1113 = vrot.lane.b32.xlu0 %v614, 32
        %v1114 = vpop.permute.xlu0 %1113
        %1115 = vrot.lane.b32.xlu0 %v620, 32
        %v1116 = vpop.permute.xlu0 %1115
        %1117 = vrot.lane.b32.xlu0 %v624, 32
        %v1118 = vpop.permute.xlu0 %1117
        %1119 = vrot.lane.b32.xlu0 %v630, 32
        %v1120 = vpop.permute.xlu0 %1119
        %1121 = vrot.lane.b32.xlu0 %v634, 32
        %v1122 = vpop.permute.xlu0 %1121
        %1123 = vrot.lane.b32.xlu0 %v640, 32
        %v1124 = vpop.permute.xlu0 %1123
        %1125 = vrot.lane.b32.xlu0 %v644, 32
        %v1126 = vpop.permute.xlu0 %1125
        %1127 = vrot.lane.b32.xlu0 %v650, 32
        %v1128 = vpop.permute.xlu0 %1127
        %1129 = vrot.lane.b32.xlu0 %v654, 32
        %v1130 = vpop.permute.xlu0 %1129
        %1131 = vrot.lane.b32.xlu0 %v660, 32
        %v1132 = vpop.permute.xlu0 %1131
        %1133 = vrot.lane.b32.xlu0 %v664, 32
        %v1134 = vpop.permute.xlu0 %1133
        %1135 = vrot.lane.b32.xlu0 %v670, 32
        %v1136 = vpop.permute.xlu0 %1135
        %1137 = vrot.lane.b32.xlu0 %v674, 32
        %v1138 = vpop.permute.xlu0 %1137
        %1139 = vrot.lane.b32.xlu0 %v680, 32
        %v1140 = vpop.permute.xlu0 %1139
        %1141 = vrot.lane.b32.xlu0 %v684, 32
        %v1142 = vpop.permute.xlu0 %1141
        %1143 = vrot.lane.b32.xlu0 %v690, 32
        %v1144 = vpop.permute.xlu0 %1143
        %1145 = vrot.lane.b32.xlu0 %v694, 32
        %v1146 = vpop.permute.xlu0 %1145
        %1211 = vrot.lane.b32.xlu0 %v868, 64
        %v1212 = vpop.permute.xlu0 %1211
        %1213 = vrot.lane.b32.xlu0 %v867, 64
        %v1214 = vpop.permute.xlu0 %1213
        %1215 = vrot.lane.b32.xlu0 %v866, 64
        %v1216 = vpop.permute.xlu0 %1215
        %1217 = vrot.lane.b32.xlu0 %v865, 64
        %v1218 = vpop.permute.xlu0 %1217
        %1219 = vrot.lane.b32.xlu0 %v864, 64
        %v1220 = vpop.permute.xlu0 %1219
        %1221 = vrot.lane.b32.xlu0 %v863, 64
        %v1222 = vpop.permute.xlu0 %1221
        %1223 = vrot.lane.b32.xlu0 %v862, 64
        %v1224 = vpop.permute.xlu0 %1223
        %1225 = vrot.lane.b32.xlu0 %v861, 64
        %v1226 = vpop.permute.xlu0 %1225
        %1227 = vrot.lane.b32.xlu0 %v860, 64
        %v1228 = vpop.permute.xlu0 %1227
        %1229 = vrot.lane.b32.xlu0 %v859, 64
        %v1230 = vpop.permute.xlu0 %1229
        %1231 = vrot.lane.b32.xlu0 %v858, 64
        %v1232 = vpop.permute.xlu0 %1231
        %1233 = vrot.lane.b32.xlu0 %v889, 64
        %v1234 = vpop.permute.xlu0 %1233
        %1235 = vrot.lane.b32.xlu0 %v888, 64
        %v1236 = vpop.permute.xlu0 %1235
        %1237 = vrot.lane.b32.xlu0 %v887, 64
        %v1238 = vpop.permute.xlu0 %1237
        %1239 = vrot.lane.b32.xlu0 %v886, 64
        %v1240 = vpop.permute.xlu0 %1239
        %1241 = vrot.lane.b32.xlu0 %v885, 64
        %v1242 = vpop.permute.xlu0 %1241
        %1243 = vrot.lane.b32.xlu0 %v884, 64
        %v1244 = vpop.permute.xlu0 %1243
        %1245 = vrot.lane.b32.xlu0 %v883, 64
        %v1246 = vpop.permute.xlu0 %1245
        %1247 = vrot.lane.b32.xlu0 %v882, 64
        %v1248 = vpop.permute.xlu0 %1247
        %1249 = vrot.lane.b32.xlu0 %v881, 64
        %v1250 = vpop.permute.xlu0 %1249
        %1251 = vrot.lane.b32.xlu0 %v880, 64
        %v1252 = vpop.permute.xlu0 %1251
        %1253 = vrot.lane.b32.xlu0 %v879, 64
        %v1254 = vpop.permute.xlu0 %1253
        %1255 = vrot.lane.b32.xlu0 %v878, 64
        %v1256 = vpop.permute.xlu0 %1255
        %1257 = vrot.lane.b32.xlu0 %v877, 64
        %v1258 = vpop.permute.xlu0 %1257
        %1259 = vrot.lane.b32.xlu0 %v876, 64
        %v1260 = vpop.permute.xlu0 %1259
        %1261 = vrot.lane.b32.xlu0 %v875, 64
        %v1262 = vpop.permute.xlu0 %1261
        %1263 = vrot.lane.b32.xlu0 %v874, 64
        %v1264 = vpop.permute.xlu0 %1263
        %1265 = vrot.lane.b32.xlu0 %v873, 64
        %v1266 = vpop.permute.xlu0 %1265
        %1267 = vrot.lane.b32.xlu0 %v872, 64
        %v1268 = vpop.permute.xlu0 %1267
        %1269 = vrot.lane.b32.xlu0 %v871, 64
        %v1270 = vpop.permute.xlu0 %1269
        %1271 = vrot.lane.b32.xlu0 %v870, 64
        %v1272 = vpop.permute.xlu0 %1271
        %1273 = vrot.lane.b32.xlu0 %v869, 64
        %v1274 = vpop.permute.xlu0 %1273
        %1339 = vrot.lane.b32.xlu0 %v824, 96
        %v1340 = vpop.permute.xlu0 %1339
        %1341 = vrot.lane.b32.xlu0 %v823, 96
        %v1342 = vpop.permute.xlu0 %1341
        %1343 = vrot.lane.b32.xlu0 %v822, 96
        %v1344 = vpop.permute.xlu0 %1343
        %1345 = vrot.lane.b32.xlu0 %v821, 96
        %v1346 = vpop.permute.xlu0 %1345
        %1347 = vrot.lane.b32.xlu0 %v820, 96
        %v1348 = vpop.permute.xlu0 %1347
        %1349 = vrot.lane.b32.xlu0 %v819, 96
        %v1350 = vpop.permute.xlu0 %1349
        %1351 = vrot.lane.b32.xlu0 %v818, 96
        %v1352 = vpop.permute.xlu0 %1351
        %1353 = vrot.lane.b32.xlu0 %v817, 96
        %v1354 = vpop.permute.xlu0 %1353
        %1355 = vrot.lane.b32.xlu0 %v816, 96
        %v1356 = vpop.permute.xlu0 %1355
        %1357 = vrot.lane.b32.xlu0 %v815, 96
        %v1358 = vpop.permute.xlu0 %1357
        %1359 = vrot.lane.b32.xlu0 %v814, 96
        %v1360 = vpop.permute.xlu0 %1359
        %1361 = vrot.lane.b32.xlu0 %v813, 96
        %v1362 = vpop.permute.xlu0 %1361
        %1363 = vrot.lane.b32.xlu0 %v812, 96
        %v1364 = vpop.permute.xlu0 %1363
        %1365 = vrot.lane.b32.xlu0 %v811, 96
        %v1366 = vpop.permute.xlu0 %1365
        %1367 = vrot.lane.b32.xlu0 %v810, 96
        %v1368 = vpop.permute.xlu0 %1367
        %1369 = vrot.lane.b32.xlu0 %v809, 96
        %v1370 = vpop.permute.xlu0 %1369
        %1371 = vrot.lane.b32.xlu0 %v808, 96
        %v1372 = vpop.permute.xlu0 %1371
        %1373 = vrot.lane.b32.xlu0 %v807, 96
        %v1374 = vpop.permute.xlu0 %1373
        %1375 = vrot.lane.b32.xlu0 %v806, 96
        %v1376 = vpop.permute.xlu0 %1375
        %1377 = vrot.lane.b32.xlu0 %v805, 96
        %v1378 = vpop.permute.xlu0 %1377
        %1379 = vrot.lane.b32.xlu0 %v804, 96
        %v1380 = vpop.permute.xlu0 %1379
        %1381 = vrot.lane.b32.xlu0 %v803, 96
        %v1382 = vpop.permute.xlu0 %1381
        %1383 = vrot.lane.b32.xlu0 %v802, 96
        %v1384 = vpop.permute.xlu0 %1383
        %1385 = vrot.lane.b32.xlu0 %v801, 96
        %v1386 = vpop.permute.xlu0 %1385
        %1387 = vrot.lane.b32.xlu0 %v800, 96
        %v1388 = vpop.permute.xlu0 %1387
        %1389 = vrot.lane.b32.xlu0 %v799, 96
        %v1390 = vpop.permute.xlu0 %1389
        %1391 = vrot.lane.b32.xlu0 %v798, 96
        %v1392 = vpop.permute.xlu0 %1391
        %1393 = vrot.lane.b32.xlu0 %v797, 96
        %v1394 = vpop.permute.xlu0 %1393
        %1395 = vrot.lane.b32.xlu0 %v796, 96
        %v1396 = vpop.permute.xlu0 %1395
        %1397 = vrot.lane.b32.xlu0 %v795, 96
        %v1398 = vpop.permute.xlu0 %1397
        %1399 = vrot.lane.b32.xlu0 %v794, 96
        %v1400 = vpop.permute.xlu0 %1399
        %1401 = vrot.lane.b32.xlu0 %v793, 96
        %v1402 = vpop.permute.xlu0 %1401
        %1435 = vrot.lane.b32.xlu0 %v888, 32
        %v1436 = vpop.permute.xlu0 %1435
        %1437 = vrot.lane.b32.xlu0 %v887, 32
        %v1438 = vpop.permute.xlu0 %1437
        %1439 = vrot.lane.b32.xlu0 %v886, 32
        %v1440 = vpop.permute.xlu0 %1439
        %1441 = vrot.lane.b32.xlu0 %v885, 32
        %v1442 = vpop.permute.xlu0 %1441
        %1443 = vrot.lane.b32.xlu0 %v884, 32
        %v1444 = vpop.permute.xlu0 %1443
        %1445 = vrot.lane.b32.xlu0 %v883, 32
        %v1446 = vpop.permute.xlu0 %1445
        %1447 = vrot.lane.b32.xlu0 %v882, 32
        %v1448 = vpop.permute.xlu0 %1447
        %1449 = vrot.lane.b32.xlu0 %v881, 32
        %v1450 = vpop.permute.xlu0 %1449
        %1451 = vrot.lane.b32.xlu0 %v880, 32
        %v1452 = vpop.permute.xlu0 %1451
        %1453 = vrot.lane.b32.xlu0 %v879, 32
        %v1454 = vpop.permute.xlu0 %1453
        %1455 = vrot.lane.b32.xlu0 %v878, 32
        %v1456 = vpop.permute.xlu0 %1455
        %1457 = vrot.lane.b32.xlu0 %v877, 32
        %v1458 = vpop.permute.xlu0 %1457
        %1459 = vrot.lane.b32.xlu0 %v876, 32
        %v1460 = vpop.permute.xlu0 %1459
        %1461 = vrot.lane.b32.xlu0 %v875, 32
        %v1462 = vpop.permute.xlu0 %1461
        %1463 = vrot.lane.b32.xlu0 %v874, 32
        %v1464 = vpop.permute.xlu0 %1463
        %1465 = vrot.lane.b32.xlu0 %v873, 32
        %v1466 = vpop.permute.xlu0 %1465
        %1467 = vrot.lane.b32.xlu0 %v872, 32
        %v1468 = vpop.permute.xlu0 %1467
        %1469 = vrot.lane.b32.xlu0 %v871, 32
        %v1470 = vpop.permute.xlu0 %1469
        %1471 = vrot.lane.b32.xlu0 %v870, 32
        %v1472 = vpop.permute.xlu0 %1471
        %1473 = vrot.lane.b32.xlu0 %v869, 32
        %v1474 = vpop.permute.xlu0 %1473
        %1475 = vrot.lane.b32.xlu0 %v868, 32
        %v1476 = vpop.permute.xlu0 %1475
        %1477 = vrot.lane.b32.xlu0 %v867, 32
        %v1478 = vpop.permute.xlu0 %1477
        %1479 = vrot.lane.b32.xlu0 %v866, 32
        %v1480 = vpop.permute.xlu0 %1479
        %1481 = vrot.lane.b32.xlu0 %v865, 32
        %v1482 = vpop.permute.xlu0 %1481
        %1483 = vrot.lane.b32.xlu0 %v864, 32
        %v1484 = vpop.permute.xlu0 %1483
        %1485 = vrot.lane.b32.xlu0 %v863, 32
        %v1486 = vpop.permute.xlu0 %1485
        %1487 = vrot.lane.b32.xlu0 %v862, 32
        %v1488 = vpop.permute.xlu0 %1487
        %1489 = vrot.lane.b32.xlu0 %v861, 32
        %v1490 = vpop.permute.xlu0 %1489
        %1491 = vrot.lane.b32.xlu0 %v860, 32
        %v1492 = vpop.permute.xlu0 %1491
        %1493 = vrot.lane.b32.xlu0 %v859, 32
        %v1494 = vpop.permute.xlu0 %1493
        %1495 = vrot.lane.b32.xlu0 %v858, 32
        %v1496 = vpop.permute.xlu0 %1495
        %1497 = vrot.lane.b32.xlu0 %v889, 32
        %v1498 = vpop.permute.xlu0 %1497
        %1531 = vrot.lane.b32.xlu0 %v812, 64
        %v1532 = vpop.permute.xlu0 %1531
        %1533 = vrot.lane.b32.xlu0 %v811, 64
        %v1534 = vpop.permute.xlu0 %1533
        %1535 = vrot.lane.b32.xlu0 %v810, 64
        %v1536 = vpop.permute.xlu0 %1535
        %1537 = vrot.lane.b32.xlu0 %v809, 64
        %v1538 = vpop.permute.xlu0 %1537
        %1539 = vrot.lane.b32.xlu0 %v808, 64
        %v1540 = vpop.permute.xlu0 %1539
        %1541 = vrot.lane.b32.xlu0 %v807, 64
        %v1542 = vpop.permute.xlu0 %1541
        %1543 = vrot.lane.b32.xlu0 %v806, 64
        %v1544 = vpop.permute.xlu0 %1543
        %1545 = vrot.lane.b32.xlu0 %v805, 64
        %v1546 = vpop.permute.xlu0 %1545
        %1547 = vrot.lane.b32.xlu0 %v804, 64
        %v1548 = vpop.permute.xlu0 %1547
        %1549 = vrot.lane.b32.xlu0 %v803, 64
        %v1550 = vpop.permute.xlu0 %1549
        %1551 = vrot.lane.b32.xlu0 %v802, 64
        %v1552 = vpop.permute.xlu0 %1551
        %1553 = vrot.lane.b32.xlu0 %v801, 64
        %v1554 = vpop.permute.xlu0 %1553
        %1555 = vrot.lane.b32.xlu0 %v800, 64
        %v1556 = vpop.permute.xlu0 %1555
        %1557 = vrot.lane.b32.xlu0 %v799, 64
        %v1558 = vpop.permute.xlu0 %1557
        %1559 = vrot.lane.b32.xlu0 %v798, 64
        %v1560 = vpop.permute.xlu0 %1559
        %1561 = vrot.lane.b32.xlu0 %v797, 64
        %v1562 = vpop.permute.xlu0 %1561
        %1563 = vrot.lane.b32.xlu0 %v796, 64
        %v1564 = vpop.permute.xlu0 %1563
        %1565 = vrot.lane.b32.xlu0 %v795, 64
        %v1566 = vpop.permute.xlu0 %1565
        %1567 = vrot.lane.b32.xlu0 %v794, 64
        %v1568 = vpop.permute.xlu0 %1567
        %1569 = vrot.lane.b32.xlu0 %v793, 64
        %v1570 = vpop.permute.xlu0 %1569
        %1571 = vrot.lane.b32.xlu0 %v824, 64
        %v1572 = vpop.permute.xlu0 %1571
        %1573 = vrot.lane.b32.xlu0 %v823, 64
        %v1574 = vpop.permute.xlu0 %1573
        %1575 = vrot.lane.b32.xlu0 %v822, 64
        %v1576 = vpop.permute.xlu0 %1575
        %1577 = vrot.lane.b32.xlu0 %v821, 64
        %v1578 = vpop.permute.xlu0 %1577
        %1579 = vrot.lane.b32.xlu0 %v820, 64
        %v1580 = vpop.permute.xlu0 %1579
        %1581 = vrot.lane.b32.xlu0 %v819, 64
        %v1582 = vpop.permute.xlu0 %1581
        %1583 = vrot.lane.b32.xlu0 %v818, 64
        %v1584 = vpop.permute.xlu0 %1583
        %1585 = vrot.lane.b32.xlu0 %v817, 64
        %v1586 = vpop.permute.xlu0 %1585
        %1587 = vrot.lane.b32.xlu0 %v816, 64
        %v1588 = vpop.permute.xlu0 %1587
        %1589 = vrot.lane.b32.xlu0 %v815, 64
        %v1590 = vpop.permute.xlu0 %1589
        %1591 = vrot.lane.b32.xlu0 %v814, 64
        %v1592 = vpop.permute.xlu0 %1591
        %1593 = vrot.lane.b32.xlu0 %v813, 64
        %v1594 = vpop.permute.xlu0 %1593
        %1659 = vrot.lane.b32.xlu0 %v1075, 32
        %v1660 = vpop.permute.xlu0 %1659
        %1661 = vrot.lane.b32.xlu0 %v1074, 32
        %v1662 = vpop.permute.xlu0 %1661
        %1663 = vrot.lane.b32.xlu0 %v1073, 32
        %v1664 = vpop.permute.xlu0 %1663
        %1665 = vrot.lane.b32.xlu0 %v1072, 32
        %v1666 = vpop.permute.xlu0 %1665
        %1667 = vrot.lane.b32.xlu0 %v1071, 32
        %v1668 = vpop.permute.xlu0 %1667
        %1669 = vrot.lane.b32.xlu0 %v1070, 32
        %v1670 = vpop.permute.xlu0 %1669
        %1671 = vrot.lane.b32.xlu0 %v1069, 32
        %v1672 = vpop.permute.xlu0 %1671
        %1673 = vrot.lane.b32.xlu0 %v1068, 32
        %v1674 = vpop.permute.xlu0 %1673
        %1675 = vrot.lane.b32.xlu0 %v1067, 32
        %v1676 = vpop.permute.xlu0 %1675
        %1677 = vrot.lane.b32.xlu0 %v1066, 32
        %v1678 = vpop.permute.xlu0 %1677
        %1679 = vrot.lane.b32.xlu0 %v1065, 32
        %v1680 = vpop.permute.xlu0 %1679
        %1681 = vrot.lane.b32.xlu0 %v1064, 32
        %v1682 = vpop.permute.xlu0 %1681
        %1683 = vrot.lane.b32.xlu0 %v1063, 32
        %v1684 = vpop.permute.xlu0 %1683
        %1685 = vrot.lane.b32.xlu0 %v1062, 32
        %v1686 = vpop.permute.xlu0 %1685
        %1687 = vrot.lane.b32.xlu0 %v1061, 32
        %v1688 = vpop.permute.xlu0 %1687
        %1689 = vrot.lane.b32.xlu0 %v1060, 32
        %v1690 = vpop.permute.xlu0 %1689
        %1691 = vrot.lane.b32.xlu0 %v1059, 32
        %v1692 = vpop.permute.xlu0 %1691
        %1693 = vrot.lane.b32.xlu0 %v1058, 32
        %v1694 = vpop.permute.xlu0 %1693
        %1695 = vrot.lane.b32.xlu0 %v1057, 32
        %v1696 = vpop.permute.xlu0 %1695
        %1697 = vrot.lane.b32.xlu0 %v1056, 32
        %v1698 = vpop.permute.xlu0 %1697
        %1699 = vrot.lane.b32.xlu0 %v1055, 32
        %v1700 = vpop.permute.xlu0 %1699
        %1701 = vrot.lane.b32.xlu0 %v1054, 32
        %v1702 = vpop.permute.xlu0 %1701
        %1703 = vrot.lane.b32.xlu0 %v1053, 32
        %v1704 = vpop.permute.xlu0 %1703
        %1705 = vrot.lane.b32.xlu0 %v1052, 32
        %v1706 = vpop.permute.xlu0 %1705
        %1707 = vrot.lane.b32.xlu0 %v1051, 32
        %v1708 = vpop.permute.xlu0 %1707
        %1709 = vrot.lane.b32.xlu0 %v1082, 32
        %v1710 = vpop.permute.xlu0 %1709
        %1711 = vrot.lane.b32.xlu0 %v1081, 32
        %v1712 = vpop.permute.xlu0 %1711
        %1713 = vrot.lane.b32.xlu0 %v1080, 32
        %v1714 = vpop.permute.xlu0 %1713
        %1715 = vrot.lane.b32.xlu0 %v1079, 32
        %v1716 = vpop.permute.xlu0 %1715
        %1717 = vrot.lane.b32.xlu0 %v1078, 32
        %v1718 = vpop.permute.xlu0 %1717
        %1719 = vrot.lane.b32.xlu0 %v1077, 32
        %v1720 = vpop.permute.xlu0 %1719
        %1721 = vrot.lane.b32.xlu0 %v1076, 32
        %v1722 = vpop.permute.xlu0 %1721
        %1755 = vrot.lane.b32.xlu0 %v939, 64
        %v1756 = vpop.permute.xlu0 %1755
        %1757 = vrot.lane.b32.xlu0 %v941, 64
        %v1758 = vpop.permute.xlu0 %1757
        %1759 = vrot.lane.b32.xlu0 %v943, 64
        %v1760 = vpop.permute.xlu0 %1759
        %1761 = vrot.lane.b32.xlu0 %v945, 64
        %v1762 = vpop.permute.xlu0 %1761
        %1763 = vrot.lane.b32.xlu0 %v947, 64
        %v1764 = vpop.permute.xlu0 %1763
        %1765 = vrot.lane.b32.xlu0 %v949, 64
        %v1766 = vpop.permute.xlu0 %1765
        %1767 = vrot.lane.b32.xlu0 %v951, 64
        %v1768 = vpop.permute.xlu0 %1767
        %1769 = vrot.lane.b32.xlu0 %v953, 64
        %v1770 = vpop.permute.xlu0 %1769
        %1771 = vrot.lane.b32.xlu0 %v955, 64
        %v1772 = vpop.permute.xlu0 %1771
        %1773 = vrot.lane.b32.xlu0 %v957, 64
        %v1774 = vpop.permute.xlu0 %1773
        %1775 = vrot.lane.b32.xlu0 %v959, 64
        %v1776 = vpop.permute.xlu0 %1775
        %1777 = vrot.lane.b32.xlu0 %v961, 64
        %v1778 = vpop.permute.xlu0 %1777
        %1779 = vrot.lane.b32.xlu0 %v963, 64
        %v1780 = vpop.permute.xlu0 %1779
        %1781 = vrot.lane.b32.xlu0 %v965, 64
        %v1782 = vpop.permute.xlu0 %1781
        %1783 = vrot.lane.b32.xlu0 %v967, 64
        %v1784 = vpop.permute.xlu0 %1783
        %1785 = vrot.lane.b32.xlu0 %v969, 64
        %v1786 = vpop.permute.xlu0 %1785
        %1787 = vrot.lane.b32.xlu0 %v971, 64
        %v1788 = vpop.permute.xlu0 %1787
        %1789 = vrot.lane.b32.xlu0 %v973, 64
        %v1790 = vpop.permute.xlu0 %1789
        %1791 = vrot.lane.b32.xlu0 %v975, 64
        %v1792 = vpop.permute.xlu0 %1791
        %1793 = vrot.lane.b32.xlu0 %v977, 64
        %v1794 = vpop.permute.xlu0 %1793
        %1795 = vrot.lane.b32.xlu0 %v979, 64
        %v1796 = vpop.permute.xlu0 %1795
        %1797 = vrot.lane.b32.xlu0 %v981, 64
        %v1798 = vpop.permute.xlu0 %1797
        %1799 = vrot.lane.b32.xlu0 %v983, 64
        %v1800 = vpop.permute.xlu0 %1799
        %1801 = vrot.lane.b32.xlu0 %v985, 64
        %v1802 = vpop.permute.xlu0 %1801
        %1803 = vrot.lane.b32.xlu0 %v923, 64
        %v1804 = vpop.permute.xlu0 %1803
        %1805 = vrot.lane.b32.xlu0 %v925, 64
        %v1806 = vpop.permute.xlu0 %1805
        %1807 = vrot.lane.b32.xlu0 %v927, 64
        %v1808 = vpop.permute.xlu0 %1807
        %1809 = vrot.lane.b32.xlu0 %v929, 64
        %v1810 = vpop.permute.xlu0 %1809
        %1811 = vrot.lane.b32.xlu0 %v931, 64
        %v1812 = vpop.permute.xlu0 %1811
        %1813 = vrot.lane.b32.xlu0 %v933, 64
        %v1814 = vpop.permute.xlu0 %1813
        %1815 = vrot.lane.b32.xlu0 %v935, 64
        %v1816 = vpop.permute.xlu0 %1815
        %1817 = vrot.lane.b32.xlu0 %v937, 64
        %v1818 = vpop.permute.xlu0 %1817
        %1851 = vrot.lane.b32.xlu0 %v1072, 96
        %v1852 = vpop.permute.xlu0 %1851
        %1853 = vrot.lane.b32.xlu0 %v1071, 96
        %v1854 = vpop.permute.xlu0 %1853
        %1855 = vrot.lane.b32.xlu0 %v1070, 96
        %v1856 = vpop.permute.xlu0 %1855
        %1857 = vrot.lane.b32.xlu0 %v1069, 96
        %v1858 = vpop.permute.xlu0 %1857
        %1859 = vrot.lane.b32.xlu0 %v1068, 96
        %v1860 = vpop.permute.xlu0 %1859
        %1861 = vrot.lane.b32.xlu0 %v1067, 96
        %v1862 = vpop.permute.xlu0 %1861
        %1863 = vrot.lane.b32.xlu0 %v1066, 96
        %v1864 = vpop.permute.xlu0 %1863
        %1865 = vrot.lane.b32.xlu0 %v1065, 96
        %v1866 = vpop.permute.xlu0 %1865
        %1867 = vrot.lane.b32.xlu0 %v1064, 96
        %v1868 = vpop.permute.xlu0 %1867
        %1869 = vrot.lane.b32.xlu0 %v1063, 96
        %v1870 = vpop.permute.xlu0 %1869
        %1871 = vrot.lane.b32.xlu0 %v1062, 96
        %v1872 = vpop.permute.xlu0 %1871
        %1873 = vrot.lane.b32.xlu0 %v1061, 96
        %v1874 = vpop.permute.xlu0 %1873
        %1875 = vrot.lane.b32.xlu0 %v1060, 96
        %v1876 = vpop.permute.xlu0 %1875
        %1877 = vrot.lane.b32.xlu0 %v1059, 96
        %v1878 = vpop.permute.xlu0 %1877
        %1879 = vrot.lane.b32.xlu0 %v1058, 96
        %v1880 = vpop.permute.xlu0 %1879
        %1881 = vrot.lane.b32.xlu0 %v1057, 96
        %v1882 = vpop.permute.xlu0 %1881
        %1883 = vrot.lane.b32.xlu0 %v1056, 96
        %v1884 = vpop.permute.xlu0 %1883
        %1885 = vrot.lane.b32.xlu0 %v1055, 96
        %v1886 = vpop.permute.xlu0 %1885
        %1887 = vrot.lane.b32.xlu0 %v1054, 96
        %v1888 = vpop.permute.xlu0 %1887
        %1889 = vrot.lane.b32.xlu0 %v1053, 96
        %v1890 = vpop.permute.xlu0 %1889
        %1891 = vrot.lane.b32.xlu0 %v1052, 96
        %v1892 = vpop.permute.xlu0 %1891
        %1893 = vrot.lane.b32.xlu0 %v1051, 96
        %v1894 = vpop.permute.xlu0 %1893
        %1895 = vrot.lane.b32.xlu0 %v1082, 96
        %v1896 = vpop.permute.xlu0 %1895
        %1897 = vrot.lane.b32.xlu0 %v1081, 96
        %v1898 = vpop.permute.xlu0 %1897
        %1899 = vrot.lane.b32.xlu0 %v1080, 96
        %v1900 = vpop.permute.xlu0 %1899
        %1901 = vrot.lane.b32.xlu0 %v1079, 96
        %v1902 = vpop.permute.xlu0 %1901
        %1903 = vrot.lane.b32.xlu0 %v1078, 96
        %v1904 = vpop.permute.xlu0 %1903
        %1905 = vrot.lane.b32.xlu0 %v1077, 96
        %v1906 = vpop.permute.xlu0 %1905
        %1907 = vrot.lane.b32.xlu0 %v1076, 96
        %v1908 = vpop.permute.xlu0 %1907
        %1909 = vrot.lane.b32.xlu0 %v1075, 96
        %v1910 = vpop.permute.xlu0 %1909
        %1911 = vrot.lane.b32.xlu0 %v1074, 96
        %v1912 = vpop.permute.xlu0 %1911
        %1913 = vrot.lane.b32.xlu0 %v1073, 96
        %v1914 = vpop.permute.xlu0 %1913
        %1947 = vrot.lane.b32.xlu0 %v1080, 64
        %v1948 = vpop.permute.xlu0 %1947
        %1949 = vrot.lane.b32.xlu0 %v1079, 64
        %v1950 = vpop.permute.xlu0 %1949
        %1951 = vrot.lane.b32.xlu0 %v1078, 64
        %v1952 = vpop.permute.xlu0 %1951
        %1953 = vrot.lane.b32.xlu0 %v1077, 64
        %v1954 = vpop.permute.xlu0 %1953
        %1955 = vrot.lane.b32.xlu0 %v1076, 64
        %v1956 = vpop.permute.xlu0 %1955
        %1957 = vrot.lane.b32.xlu0 %v1075, 64
        %v1958 = vpop.permute.xlu0 %1957
        %1959 = vrot.lane.b32.xlu0 %v1074, 64
        %v1960 = vpop.permute.xlu0 %1959
        %1961 = vrot.lane.b32.xlu0 %v1073, 64
        %v1962 = vpop.permute.xlu0 %1961
        %1963 = vrot.lane.b32.xlu0 %v1072, 64
        %v1964 = vpop.permute.xlu0 %1963
        %1965 = vrot.lane.b32.xlu0 %v1071, 64
        %v1966 = vpop.permute.xlu0 %1965
        %1967 = vrot.lane.b32.xlu0 %v1070, 64
        %v1968 = vpop.permute.xlu0 %1967
        %1969 = vrot.lane.b32.xlu0 %v1069, 64
        %v1970 = vpop.permute.xlu0 %1969
        %1971 = vrot.lane.b32.xlu0 %v1068, 64
        %v1972 = vpop.permute.xlu0 %1971
        %1973 = vrot.lane.b32.xlu0 %v1067, 64
        %v1974 = vpop.permute.xlu0 %1973
        %1975 = vrot.lane.b32.xlu0 %v1066, 64
        %v1976 = vpop.permute.xlu0 %1975
        %1977 = vrot.lane.b32.xlu0 %v1065, 64
        %v1978 = vpop.permute.xlu0 %1977
        %1979 = vrot.lane.b32.xlu0 %v1064, 64
        %v1980 = vpop.permute.xlu0 %1979
        %1981 = vrot.lane.b32.xlu0 %v1063, 64
        %v1982 = vpop.permute.xlu0 %1981
        %1983 = vrot.lane.b32.xlu0 %v1062, 64
        %v1984 = vpop.permute.xlu0 %1983
        %1985 = vrot.lane.b32.xlu0 %v1061, 64
        %v1986 = vpop.permute.xlu0 %1985
        %1987 = vrot.lane.b32.xlu0 %v1060, 64
        %v1988 = vpop.permute.xlu0 %1987
        %1989 = vrot.lane.b32.xlu0 %v1059, 64
        %v1990 = vpop.permute.xlu0 %1989
        %1991 = vrot.lane.b32.xlu0 %v1058, 64
        %v1992 = vpop.permute.xlu0 %1991
        %1993 = vrot.lane.b32.xlu0 %v1057, 64
        %v1994 = vpop.permute.xlu0 %1993
        %1995 = vrot.lane.b32.xlu0 %v1056, 64
        %v1996 = vpop.permute.xlu0 %1995
        %1997 = vrot.lane.b32.xlu0 %v1055, 64
        %v1998 = vpop.permute.xlu0 %1997
        %1999 = vrot.lane.b32.xlu0 %v1054, 64
        %v2000 = vpop.permute.xlu0 %1999
        %2001 = vrot.lane.b32.xlu0 %v1053, 64
        %v2002 = vpop.permute.xlu0 %2001
        %2003 = vrot.lane.b32.xlu0 %v1052, 64
        %v2004 = vpop.permute.xlu0 %2003
        %2005 = vrot.lane.b32.xlu0 %v1051, 64
        %v2006 = vpop.permute.xlu0 %2005
        %2007 = vrot.lane.b32.xlu0 %v1082, 64
        %v2008 = vpop.permute.xlu0 %2007
        %2009 = vrot.lane.b32.xlu0 %v1081, 64
        %v2010 = vpop.permute.xlu0 %2009
        %v2043 = vsel %vm516, %v804, %v1084
        %v2044 = vsel %vm516, %v803, %v1086
        %v2045 = vsel %vm516, %v802, %v1088
        %v2046 = vsel %vm516, %v801, %v1090
        %v2047 = vsel %vm516, %v800, %v1092
        %v2048 = vsel %vm516, %v799, %v1094
        %v2049 = vsel %vm516, %v798, %v1096
        %v2050 = vsel %vm516, %v797, %v1098
        %v2051 = vsel %vm516, %v796, %v1100
        %v2052 = vsel %vm516, %v795, %v1102
        %v2053 = vsel %vm516, %v794, %v1104
        %v2054 = vsel %vm516, %v793, %v1106
        %v2055 = vsel %vm516, %v824, %v1108
        %v2056 = vsel %vm516, %v823, %v1110
        %v2057 = vsel %vm516, %v822, %v1112
        %v2058 = vsel %vm516, %v821, %v1114
        %v2059 = vsel %vm516, %v820, %v1116
        %v2060 = vsel %vm516, %v819, %v1118
        %v2061 = vsel %vm516, %v818, %v1120
        %v2062 = vsel %vm516, %v817, %v1122
        %v2063 = vsel %vm516, %v816, %v1124
        %v2064 = vsel %vm516, %v815, %v1126
        %v2065 = vsel %vm516, %v814, %v1128
        %v2066 = vsel %vm516, %v813, %v1130
        %v2067 = vsel %vm516, %v812, %v1132
        %v2068 = vsel %vm516, %v811, %v1134
        %v2069 = vsel %vm516, %v810, %v1136
        %v2070 = vsel %vm516, %v809, %v1138
        %v2071 = vsel %vm516, %v808, %v1140
        %v2072 = vsel %vm516, %v807, %v1142
        %v2073 = vsel %vm516, %v806, %v1144
        %v2074 = vsel %vm516, %v805, %v1146
        %vm2075 = vcmask 523264
        %v2076 = vsel %vm2075, %v2043, %v1212
        %v2077 = vsel %vm2075, %v2044, %v1214
        %v2078 = vsel %vm2075, %v2045, %v1216
        %v2079 = vsel %vm2075, %v2046, %v1218
        %v2080 = vsel %vm2075, %v2047, %v1220
        %v2081 = vsel %vm2075, %v2048, %v1222
        %v2082 = vsel %vm2075, %v2049, %v1224
        %v2083 = vsel %vm2075, %v2050, %v1226
        %v2084 = vsel %vm2075, %v2051, %v1228
        %v2085 = vsel %vm2075, %v2052, %v1230
        %v2086 = vsel %vm2075, %v2053, %v1232
        %v2087 = vsel %vm2075, %v2054, %v1234
        %v2088 = vsel %vm2075, %v2055, %v1236
        %v2089 = vsel %vm2075, %v2056, %v1238
        %v2090 = vsel %vm2075, %v2057, %v1240
        %v2091 = vsel %vm2075, %v2058, %v1242
        %v2092 = vsel %vm2075, %v2059, %v1244
        %v2093 = vsel %vm2075, %v2060, %v1246
        %v2094 = vsel %vm2075, %v2061, %v1248
        %v2095 = vsel %vm2075, %v2062, %v1250
        %v2096 = vsel %vm2075, %v2063, %v1252
        %v2097 = vsel %vm2075, %v2064, %v1254
        %v2098 = vsel %vm2075, %v2065, %v1256
        %v2099 = vsel %vm2075, %v2066, %v1258
        %v2100 = vsel %vm2075, %v2067, %v1260
        %v2101 = vsel %vm2075, %v2068, %v1262
        %v2102 = vsel %vm2075, %v2069, %v1264
        %v2103 = vsel %vm2075, %v2070, %v1266
        %v2104 = vsel %vm2075, %v2071, %v1268
        %v2105 = vsel %vm2075, %v2072, %v1270
        %v2106 = vsel %vm2075, %v2073, %v1272
        %v2107 = vsel %vm2075, %v2074, %v1274
        %vm2108 = vcmask 785408
        %v2109 = vsel %vm2108, %v2076, %v1340
        %v2110 = vsel %vm2108, %v2077, %v1342
        %v2111 = vsel %vm2108, %v2078, %v1344
        %v2112 = vsel %vm2108, %v2079, %v1346
        %v2113 = vsel %vm2108, %v2080, %v1348
        %v2114 = vsel %vm2108, %v2081, %v1350
        %v2115 = vsel %vm2108, %v2082, %v1352
        %v2116 = vsel %vm2108, %v2083, %v1354
        %v2117 = vsel %vm2108, %v2084, %v1356
        %v2118 = vsel %vm2108, %v2085, %v1358
        %v2119 = vsel %vm2108, %v2086, %v1360
        %v2120 = vsel %vm2108, %v2087, %v1362
        %v2121 = vsel %vm2108, %v2088, %v1364
        %v2122 = vsel %vm2108, %v2089, %v1366
        %v2123 = vsel %vm2108, %v2090, %v1368
        %v2124 = vsel %vm2108, %v2091, %v1370
        %v2125 = vsel %vm2108, %v2092, %v1372
        %v2126 = vsel %vm2108, %v2093, %v1374
        %v2127 = vsel %vm2108, %v2094, %v1376
        %v2128 = vsel %vm2108, %v2095, %v1378
        %v2129 = vsel %vm2108, %v2096, %v1380
        %v2130 = vsel %vm2108, %v2097, %v1382
        %v2131 = vsel %vm2108, %v2098, %v1384
        %v2132 = vsel %vm2108, %v2099, %v1386
        %v2133 = vsel %vm2108, %v2100, %v1388
        %v2134 = vsel %vm2108, %v2101, %v1390
        %v2135 = vsel %vm2108, %v2102, %v1392
        %v2136 = vsel %vm2108, %v2103, %v1394
        %v2137 = vsel %vm2108, %v2104, %v1396
        %v2138 = vsel %vm2108, %v2105, %v1398
        %v2139 = vsel %vm2108, %v2106, %v1400
        %v2140 = vsel %vm2108, %v2107, %v1402
        %v2141 = vsel %vm516, %v600, %v1436
        %v2142 = vsel %vm516, %v604, %v1438
        %v2143 = vsel %vm516, %v610, %v1440
        %v2144 = vsel %vm516, %v614, %v1442
        %v2145 = vsel %vm516, %v620, %v1444
        %v2146 = vsel %vm516, %v624, %v1446
        %v2147 = vsel %vm516, %v630, %v1448
        %v2148 = vsel %vm516, %v634, %v1450
        %v2149 = vsel %vm516, %v640, %v1452
        %v2150 = vsel %vm516, %v644, %v1454
        %v2151 = vsel %vm516, %v650, %v1456
        %v2152 = vsel %vm516, %v654, %v1458
        %v2153 = vsel %vm516, %v660, %v1460
        %v2154 = vsel %vm516, %v664, %v1462
        %v2155 = vsel %vm516, %v670, %v1464
        %v2156 = vsel %vm516, %v674, %v1466
        %v2157 = vsel %vm516, %v680, %v1468
        %v2158 = vsel %vm516, %v684, %v1470
        %v2159 = vsel %vm516, %v690, %v1472
        %v2160 = vsel %vm516, %v694, %v1474
        %v2161 = vsel %vm516, %v700, %v1476
        %v2162 = vsel %vm516, %v704, %v1478
        %v2163 = vsel %vm516, %v710, %v1480
        %v2164 = vsel %vm516, %v714, %v1482
        %v2165 = vsel %vm516, %v720, %v1484
        %v2166 = vsel %vm516, %v724, %v1486
        %v2167 = vsel %vm516, %v730, %v1488
        %v2168 = vsel %vm516, %v734, %v1490
        %v2169 = vsel %vm516, %v740, %v1492
        %v2170 = vsel %vm516, %v744, %v1494
        %v2171 = vsel %vm516, %v750, %v1496
        %v2172 = vsel %vm516, %v754, %v1498
        %v2173 = vsel %vm2075, %v2141, %v1532
        %v2174 = vsel %vm2075, %v2142, %v1534
        %v2175 = vsel %vm2075, %v2143, %v1536
        %v2176 = vsel %vm2075, %v2144, %v1538
        %v2177 = vsel %vm2075, %v2145, %v1540
        %v2178 = vsel %vm2075, %v2146, %v1542
        %v2179 = vsel %vm2075, %v2147, %v1544
        %v2180 = vsel %vm2075, %v2148, %v1546
        %v2181 = vsel %vm2075, %v2149, %v1548
        %v2182 = vsel %vm2075, %v2150, %v1550
        %v2183 = vsel %vm2075, %v2151, %v1552
        %v2184 = vsel %vm2075, %v2152, %v1554
        %v2185 = vsel %vm2075, %v2153, %v1556
        %v2186 = vsel %vm2075, %v2154, %v1558
        %v2187 = vsel %vm2075, %v2155, %v1560
        %v2188 = vsel %vm2075, %v2156, %v1562
        %v2189 = vsel %vm2075, %v2157, %v1564
        %v2190 = vsel %vm2075, %v2158, %v1566
        %v2191 = vsel %vm2075, %v2159, %v1568
        %v2192 = vsel %vm2075, %v2160, %v1570
        %v2193 = vsel %vm2075, %v2161, %v1572
        %v2194 = vsel %vm2075, %v2162, %v1574
        %v2195 = vsel %vm2075, %v2163, %v1576
        %v2196 = vsel %vm2075, %v2164, %v1578
        %v2197 = vsel %vm2075, %v2165, %v1580
        %v2198 = vsel %vm2075, %v2166, %v1582
        %v2199 = vsel %vm2075, %v2167, %v1584
        %v2200 = vsel %vm2075, %v2168, %v1586
        %v2201 = vsel %vm2075, %v2169, %v1588
        %v2202 = vsel %vm2075, %v2170, %v1590
        %v2203 = vsel %vm2075, %v2171, %v1592
        %v2204 = vsel %vm2075, %v2172, %v1594
        %v2205 = vsel %vm2108, %v2173, %v947
        %v2206 = vsel %vm2108, %v2174, %v949
        %v2207 = vsel %vm2108, %v2175, %v951
        %v2208 = vsel %vm2108, %v2176, %v953
        %v2209 = vsel %vm2108, %v2177, %v955
        %v2210 = vsel %vm2108, %v2178, %v957
        %v2211 = vsel %vm2108, %v2179, %v959
        %v2212 = vsel %vm2108, %v2180, %v961
        %v2213 = vsel %vm2108, %v2181, %v963
        %v2214 = vsel %vm2108, %v2182, %v965
        %v2215 = vsel %vm2108, %v2183, %v967
        %v2216 = vsel %vm2108, %v2184, %v969
        %v2217 = vsel %vm2108, %v2185, %v971
        %v2218 = vsel %vm2108, %v2186, %v973
        %v2219 = vsel %vm2108, %v2187, %v975
        %v2220 = vsel %vm2108, %v2188, %v977
        %v2221 = vsel %vm2108, %v2189, %v979
        %v2222 = vsel %vm2108, %v2190, %v981
        %v2223 = vsel %vm2108, %v2191, %v983
        %v2224 = vsel %vm2108, %v2192, %v985
        %v2225 = vsel %vm2108, %v2193, %v923
        %v2226 = vsel %vm2108, %v2194, %v925
        %v2227 = vsel %vm2108, %v2195, %v927
        %v2228 = vsel %vm2108, %v2196, %v929
        %v2229 = vsel %vm2108, %v2197, %v931
        %v2230 = vsel %vm2108, %v2198, %v933
        %v2231 = vsel %vm2108, %v2199, %v935
        %v2232 = vsel %vm2108, %v2200, %v937
        %v2233 = vsel %vm2108, %v2201, %v939
        %v2234 = vsel %vm2108, %v2202, %v941
        %v2235 = vsel %vm2108, %v2203, %v943
        %v2236 = vsel %vm2108, %v2204, %v945
        %v2237 = vsel %vm516, %v876, %v1660
        %v2238 = vsel %vm516, %v875, %v1662
        %v2239 = vsel %vm516, %v874, %v1664
        %v2240 = vsel %vm516, %v873, %v1666
        %v2241 = vsel %vm516, %v872, %v1668
        %v2242 = vsel %vm516, %v871, %v1670
        %v2243 = vsel %vm516, %v870, %v1672
        %v2244 = vsel %vm516, %v869, %v1674
        %v2245 = vsel %vm516, %v868, %v1676
        %v2246 = vsel %vm516, %v867, %v1678
        %v2247 = vsel %vm516, %v866, %v1680
        %v2248 = vsel %vm516, %v865, %v1682
        %v2249 = vsel %vm516, %v864, %v1684
        %v2250 = vsel %vm516, %v863, %v1686
        %v2251 = vsel %vm516, %v862, %v1688
        %v2252 = vsel %vm516, %v861, %v1690
        %v2253 = vsel %vm516, %v860, %v1692
        %v2254 = vsel %vm516, %v859, %v1694
        %v2255 = vsel %vm516, %v858, %v1696
        %v2256 = vsel %vm516, %v889, %v1698
        %v2257 = vsel %vm516, %v888, %v1700
        %v2258 = vsel %vm516, %v887, %v1702
        %v2259 = vsel %vm516, %v886, %v1704
        %v2260 = vsel %vm516, %v885, %v1706
        %v2261 = vsel %vm516, %v884, %v1708
        %v2262 = vsel %vm516, %v883, %v1710
        %v2263 = vsel %vm516, %v882, %v1712
        %v2264 = vsel %vm516, %v881, %v1714
        %v2265 = vsel %vm516, %v880, %v1716
        %v2266 = vsel %vm516, %v879, %v1718
        %v2267 = vsel %vm516, %v878, %v1720
        %v2268 = vsel %vm516, %v877, %v1722
        %v2269 = vsel %vm2075, %v2237, %v1756
        %v2270 = vsel %vm2075, %v2238, %v1758
        %v2271 = vsel %vm2075, %v2239, %v1760
        %v2272 = vsel %vm2075, %v2240, %v1762
        %v2273 = vsel %vm2075, %v2241, %v1764
        %v2274 = vsel %vm2075, %v2242, %v1766
        %v2275 = vsel %vm2075, %v2243, %v1768
        %v2276 = vsel %vm2075, %v2244, %v1770
        %v2277 = vsel %vm2075, %v2245, %v1772
        %v2278 = vsel %vm2075, %v2246, %v1774
        %v2279 = vsel %vm2075, %v2247, %v1776
        %v2280 = vsel %vm2075, %v2248, %v1778
        %v2281 = vsel %vm2075, %v2249, %v1780
        %v2282 = vsel %vm2075, %v2250, %v1782
        %v2283 = vsel %vm2075, %v2251, %v1784
        %v2284 = vsel %vm2075, %v2252, %v1786
        %v2285 = vsel %vm2075, %v2253, %v1788
        %v2286 = vsel %vm2075, %v2254, %v1790
        %v2287 = vsel %vm2075, %v2255, %v1792
        %v2288 = vsel %vm2075, %v2256, %v1794
        %v2289 = vsel %vm2075, %v2257, %v1796
        %v2290 = vsel %vm2075, %v2258, %v1798
        %v2291 = vsel %vm2075, %v2259, %v1800
        %v2292 = vsel %vm2075, %v2260, %v1802
        %v2293 = vsel %vm2075, %v2261, %v1804
        %v2294 = vsel %vm2075, %v2262, %v1806
        %v2295 = vsel %vm2075, %v2263, %v1808
        %v2296 = vsel %vm2075, %v2264, %v1810
        %v2297 = vsel %vm2075, %v2265, %v1812
        %v2298 = vsel %vm2075, %v2266, %v1814
        %v2299 = vsel %vm2075, %v2267, %v1816
        %v2300 = vsel %vm2075, %v2268, %v1818
        %v2301 = vsel %vm2108, %v2269, %v1852
        %v2302 = vsel %vm2108, %v2270, %v1854
        %v2303 = vsel %vm2108, %v2271, %v1856
        %v2304 = vsel %vm2108, %v2272, %v1858
        %v2305 = vsel %vm2108, %v2273, %v1860
        %v2306 = vsel %vm2108, %v2274, %v1862
        %v2307 = vsel %vm2108, %v2275, %v1864
        %v2308 = vsel %vm2108, %v2276, %v1866
        %v2309 = vsel %vm2108, %v2277, %v1868
        %v2310 = vsel %vm2108, %v2278, %v1870
        %v2311 = vsel %vm2108, %v2279, %v1872
        %v2312 = vsel %vm2108, %v2280, %v1874
        %v2313 = vsel %vm2108, %v2281, %v1876
        %v2314 = vsel %vm2108, %v2282, %v1878
        %v2315 = vsel %vm2108, %v2283, %v1880
        %v2316 = vsel %vm2108, %v2284, %v1882
        %v2317 = vsel %vm2108, %v2285, %v1884
        %v2318 = vsel %vm2108, %v2286, %v1886
        %v2319 = vsel %vm2108, %v2287, %v1888
        %v2320 = vsel %vm2108, %v2288, %v1890
        %v2321 = vsel %vm2108, %v2289, %v1892
        %v2322 = vsel %vm2108, %v2290, %v1894
        %v2323 = vsel %vm2108, %v2291, %v1896
        %v2324 = vsel %vm2108, %v2292, %v1898
        %v2325 = vsel %vm2108, %v2293, %v1900
        %v2326 = vsel %vm2108, %v2294, %v1902
        %v2327 = vsel %vm2108, %v2295, %v1904
        %v2328 = vsel %vm2108, %v2296, %v1906
        %v2329 = vsel %vm2108, %v2297, %v1908
        %v2330 = vsel %vm2108, %v2298, %v1910
        %v2331 = vsel %vm2108, %v2299, %v1912
        %v2332 = vsel %vm2108, %v2300, %v1914
        %v2333 = vsel %vm516, %v1051, %v600
        %v2334 = vsel %vm516, %v1082, %v604
        %v2335 = vsel %vm516, %v1081, %v610
        %v2336 = vsel %vm516, %v1080, %v614
        %v2337 = vsel %vm516, %v1079, %v620
        %v2338 = vsel %vm516, %v1078, %v624
        %v2339 = vsel %vm516, %v1077, %v630
        %v2340 = vsel %vm516, %v1076, %v634
        %v2341 = vsel %vm516, %v1075, %v640
        %v2342 = vsel %vm516, %v1074, %v644
        %v2343 = vsel %vm516, %v1073, %v650
        %v2344 = vsel %vm516, %v1072, %v654
        %v2345 = vsel %vm516, %v1071, %v660
        %v2346 = vsel %vm516, %v1070, %v664
        %v2347 = vsel %vm516, %v1069, %v670
        %v2348 = vsel %vm516, %v1068, %v674
        %v2349 = vsel %vm516, %v1067, %v680
        %v2350 = vsel %vm516, %v1066, %v684
        %v2351 = vsel %vm516, %v1065, %v690
        %v2352 = vsel %vm516, %v1064, %v694
        %v2353 = vsel %vm516, %v1063, %v700
        %v2354 = vsel %vm516, %v1062, %v704
        %v2355 = vsel %vm516, %v1061, %v710
        %v2356 = vsel %vm516, %v1060, %v714
        %v2357 = vsel %vm516, %v1059, %v720
        %v2358 = vsel %vm516, %v1058, %v724
        %v2359 = vsel %vm516, %v1057, %v730
        %v2360 = vsel %vm516, %v1056, %v734
        %v2361 = vsel %vm516, %v1055, %v740
        %v2362 = vsel %vm516, %v1054, %v744
        %v2363 = vsel %vm516, %v1053, %v750
        %v2364 = vsel %vm516, %v1052, %v754
        %v2365 = vsel %vm2075, %v2333, %v1948
        %v2366 = vsel %vm2075, %v2334, %v1950
        %v2367 = vsel %vm2075, %v2335, %v1952
        %v2368 = vsel %vm2075, %v2336, %v1954
        %v2369 = vsel %vm2075, %v2337, %v1956
        %v2370 = vsel %vm2075, %v2338, %v1958
        %v2371 = vsel %vm2075, %v2339, %v1960
        %v2372 = vsel %vm2075, %v2340, %v1962
        %v2373 = vsel %vm2075, %v2341, %v1964
        %v2374 = vsel %vm2075, %v2342, %v1966
        %v2375 = vsel %vm2075, %v2343, %v1968
        %v2376 = vsel %vm2075, %v2344, %v1970
        %v2377 = vsel %vm2075, %v2345, %v1972
        %v2378 = vsel %vm2075, %v2346, %v1974
        %v2379 = vsel %vm2075, %v2347, %v1976
        %v2380 = vsel %vm2075, %v2348, %v1978
        %v2381 = vsel %vm2075, %v2349, %v1980
        %v2382 = vsel %vm2075, %v2350, %v1982
        %v2383 = vsel %vm2075, %v2351, %v1984
        %v2384 = vsel %vm2075, %v2352, %v1986
        %v2385 = vsel %vm2075, %v2353, %v1988
        %v2386 = vsel %vm2075, %v2354, %v1990
        %v2387 = vsel %vm2075, %v2355, %v1992
        %v2388 = vsel %vm2075, %v2356, %v1994
        %v2389 = vsel %vm2075, %v2357, %v1996
        %v2390 = vsel %vm2075, %v2358, %v1998
        %v2391 = vsel %vm2075, %v2359, %v2000
        %v2392 = vsel %vm2075, %v2360, %v2002
        %v2393 = vsel %vm2075, %v2361, %v2004
        %v2394 = vsel %vm2075, %v2362, %v2006
        %v2395 = vsel %vm2075, %v2363, %v2008
        %v2396 = vsel %vm2075, %v2364, %v2010
        %v2397 = vsel %vm2108, %v2365, %v1878
        %v2398 = vsel %vm2108, %v2366, %v1880
        %v2399 = vsel %vm2108, %v2367, %v1882
        %v2400 = vsel %vm2108, %v2368, %v1884
        %v2401 = vsel %vm2108, %v2369, %v1886
        %v2402 = vsel %vm2108, %v2370, %v1888
        %v2403 = vsel %vm2108, %v2371, %v1890
        %v2404 = vsel %vm2108, %v2372, %v1892
        %v2405 = vsel %vm2108, %v2373, %v1894
        %v2406 = vsel %vm2108, %v2374, %v1896
        %v2407 = vsel %vm2108, %v2375, %v1898
        %v2408 = vsel %vm2108, %v2376, %v1900
        %v2409 = vsel %vm2108, %v2377, %v1902
        %v2410 = vsel %vm2108, %v2378, %v1904
        %v2411 = vsel %vm2108, %v2379, %v1906
        %v2412 = vsel %vm2108, %v2380, %v1908
        %v2413 = vsel %vm2108, %v2381, %v1910
        %v2414 = vsel %vm2108, %v2382, %v1912
        %v2415 = vsel %vm2108, %v2383, %v1914
        %v2416 = vsel %vm2108, %v2384, %v1852
        %v2417 = vsel %vm2108, %v2385, %v1854
        %v2418 = vsel %vm2108, %v2386, %v1856
        %v2419 = vsel %vm2108, %v2387, %v1858
        %v2420 = vsel %vm2108, %v2388, %v1860
        %v2421 = vsel %vm2108, %v2389, %v1862
        %v2422 = vsel %vm2108, %v2390, %v1864
        %v2423 = vsel %vm2108, %v2391, %v1866
        %v2424 = vsel %vm2108, %v2392, %v1868
        %v2425 = vsel %vm2108, %v2393, %v1870
        %v2426 = vsel %vm2108, %v2394, %v1872
        %v2427 = vsel %vm2108, %v2395, %v1874
        %v2428 = vsel %vm2108, %v2396, %v1876
        %v2429 = vsel %vm516, %v971, %v1698
        %v2430 = vsel %vm516, %v973, %v1700
        %v2431 = vsel %vm516, %v975, %v1702
        %v2432 = vsel %vm516, %v977, %v1704
        %v2433 = vsel %vm516, %v979, %v1706
        %v2434 = vsel %vm516, %v981, %v1708
        %v2435 = vsel %vm516, %v983, %v1710
        %v2436 = vsel %vm516, %v985, %v1712
        %v2437 = vsel %vm516, %v923, %v1714
        %v2438 = vsel %vm516, %v925, %v1716
        %v2439 = vsel %vm516, %v927, %v1718
        %v2440 = vsel %vm516, %v929, %v1720
        %v2441 = vsel %vm516, %v931, %v1722
        %v2442 = vsel %vm516, %v933, %v1660
        %v2443 = vsel %vm516, %v935, %v1662
        %v2444 = vsel %vm516, %v937, %v1664
        %v2445 = vsel %vm516, %v939, %v1666
        %v2446 = vsel %vm516, %v941, %v1668
        %v2447 = vsel %vm516, %v943, %v1670
        %v2448 = vsel %vm516, %v945, %v1672
        %v2449 = vsel %vm516, %v947, %v1674
        %v2450 = vsel %vm516, %v949, %v1676
        %v2451 = vsel %vm516, %v951, %v1678
        %v2452 = vsel %vm516, %v953, %v1680
        %v2453 = vsel %vm516, %v955, %v1682
        %v2454 = vsel %vm516, %v957, %v1684
        %v2455 = vsel %vm516, %v959, %v1686
        %v2456 = vsel %vm516, %v961, %v1688
        %v2457 = vsel %vm516, %v963, %v1690
        %v2458 = vsel %vm516, %v965, %v1692
        %v2459 = vsel %vm516, %v967, %v1694
        %v2460 = vsel %vm516, %v969, %v1696
        %v2461 = vld [vmem:[%s1] sm:$0xff]
        %v2462 = vld [vmem:[%s1 + $0x8] sm:$0xff]
        %v2463 = vld [vmem:[%s1 + $0x10] sm:$0xff]
        %v2464 = vld [vmem:[%s1 + $0x18] sm:$0xff]
        %v2465 = vld [vmem:[%s1 + $0x20] sm:$0xff]
        %v2466 = vld [vmem:[%s1 + $0x28] sm:$0xff]
        %v2467 = vld [vmem:[%s1 + $0x30] sm:$0xff]
        %v2468 = vld [vmem:[%s1 + $0x38] sm:$0xff]
        %v2469 = vld [vmem:[%s1 + $0x40] sm:$0xff]
        %v2470 = vld [vmem:[%s1 + $0x48] sm:$0xff]
        %v2471 = vld [vmem:[%s1 + $0x50] sm:$0xff]
        %v2472 = vld [vmem:[%s1 + $0x58] sm:$0xff]
        %v2473 = vld [vmem:[%s1 + $0x60] sm:$0xff]
        %v2474 = vld [vmem:[%s1 + $0x68] sm:$0xff]
        %v2475 = vld [vmem:[%s1 + $0x70] sm:$0xff]
        %v2476 = vld [vmem:[%s1 + $0x78] sm:$0xff]
        %v2477 = vld [vmem:[%s1 + $0x80] sm:$0xff]
        %v2478 = vld [vmem:[%s1 + $0x88] sm:$0xff]
        %v2479 = vld [vmem:[%s1 + $0x90] sm:$0xff]
        %v2480 = vld [vmem:[%s1 + $0x98] sm:$0xff]
        %v2481 = vld [vmem:[%s1 + $0xa0] sm:$0xff]
        %v2482 = vld [vmem:[%s1 + $0xa8] sm:$0xff]
        %v2483 = vld [vmem:[%s1 + $0xb0] sm:$0xff]
        %v2484 = vld [vmem:[%s1 + $0xb8] sm:$0xff]
        %v2485 = vld [vmem:[%s1 + $0xc0] sm:$0xff]
        %v2486 = vld [vmem:[%s1 + $0xc8] sm:$0xff]
        %v2487 = vld [vmem:[%s1 + $0xd0] sm:$0xff]
        %v2488 = vld [vmem:[%s1 + $0xd8] sm:$0xff]
        %v2489 = vld [vmem:[%s1 + $0xe0] sm:$0xff]
        %v2490 = vld [vmem:[%s1 + $0xe8] sm:$0xff]
        %v2491 = vld [vmem:[%s1 + $0xf0] sm:$0xff]
        %v2492 = vld [vmem:[%s1 + $0xf8] sm:$0xff]
        %v2493 = vld [vmem:[%s1 + $0x100] sm:$0xff]
        %v2494 = vld [vmem:[%s1 + $0x108] sm:$0xff]
        %v2495 = vld [vmem:[%s1 + $0x110] sm:$0xff]
        %v2496 = vld [vmem:[%s1 + $0x118] sm:$0xff]
        %v2497 = vld [vmem:[%s1 + $0x120] sm:$0xff]
        %v2498 = vld [vmem:[%s1 + $0x128] sm:$0xff]
        %v2499 = vld [vmem:[%s1 + $0x130] sm:$0xff]
        %v2500 = vld [vmem:[%s1 + $0x138] sm:$0xff]
        %v2501 = vld [vmem:[%s1 + $0x140] sm:$0xff]
        %v2502 = vld [vmem:[%s1 + $0x148] sm:$0xff]
        %v2503 = vld [vmem:[%s1 + $0x150] sm:$0xff]
        %v2504 = vld [vmem:[%s1 + $0x158] sm:$0xff]
        %v2505 = vld [vmem:[%s1 + $0x160] sm:$0xff]
        %v2506 = vld [vmem:[%s1 + $0x168] sm:$0xff]
        %v2507 = vld [vmem:[%s1 + $0x170] sm:$0xff]
        %v2508 = vld [vmem:[%s1 + $0x178] sm:$0xff]
        %v2509 = vld [vmem:[%s1 + $0x180] sm:$0xff]
        %v2510 = vld [vmem:[%s1 + $0x188] sm:$0xff]
        %v2511 = vld [vmem:[%s1 + $0x190] sm:$0xff]
        %v2512 = vld [vmem:[%s1 + $0x198] sm:$0xff]
        %v2513 = vld [vmem:[%s1 + $0x1a0] sm:$0xff]
        %v2514 = vld [vmem:[%s1 + $0x1a8] sm:$0xff]
        %v2515 = vld [vmem:[%s1 + $0x1b0] sm:$0xff]
        %v2516 = vld [vmem:[%s1 + $0x1b8] sm:$0xff]
        %v2517 = vld [vmem:[%s1 + $0x1c0] sm:$0xff]
        %v2518 = vld [vmem:[%s1 + $0x1c8] sm:$0xff]
        %v2519 = vld [vmem:[%s1 + $0x1d0] sm:$0xff]
        %v2520 = vld [vmem:[%s1 + $0x1d8] sm:$0xff]
        %v2521 = vld [vmem:[%s1 + $0x1e0] sm:$0xff]
        %v2522 = vld [vmem:[%s1 + $0x1e8] sm:$0xff]
        %v2523 = vld [vmem:[%s1 + $0x1f0] sm:$0xff]
        %v2524 = vld [vmem:[%s1 + $0x1f8] sm:$0xff]
        %v2525 = vld [vmem:[%s1 + $0x200] sm:$0xff]
        %v2526 = vld [vmem:[%s1 + $0x208] sm:$0xff]
        %v2527 = vld [vmem:[%s1 + $0x210] sm:$0xff]
        %v2528 = vld [vmem:[%s1 + $0x218] sm:$0xff]
        %v2529 = vld [vmem:[%s1 + $0x220] sm:$0xff]
        %v2530 = vld [vmem:[%s1 + $0x228] sm:$0xff]
        %v2531 = vld [vmem:[%s1 + $0x230] sm:$0xff]
        %v2532 = vld [vmem:[%s1 + $0x238] sm:$0xff]
        %v2533 = vld [vmem:[%s1 + $0x240] sm:$0xff]
        %v2534 = vld [vmem:[%s1 + $0x248] sm:$0xff]
        %v2535 = vld [vmem:[%s1 + $0x250] sm:$0xff]
        %v2536 = vld [vmem:[%s1 + $0x258] sm:$0xff]
        %v2537 = vld [vmem:[%s1 + $0x260] sm:$0xff]
        %v2538 = vld [vmem:[%s1 + $0x268] sm:$0xff]
        %v2539 = vld [vmem:[%s1 + $0x270] sm:$0xff]
        %v2540 = vld [vmem:[%s1 + $0x278] sm:$0xff]
        %v2541 = vld [vmem:[%s1 + $0x280] sm:$0xff]
        %v2542 = vld [vmem:[%s1 + $0x288] sm:$0xff]
        %v2543 = vld [vmem:[%s1 + $0x290] sm:$0xff]
        %v2544 = vld [vmem:[%s1 + $0x298] sm:$0xff]
        %v2545 = vld [vmem:[%s1 + $0x2a0] sm:$0xff]
        %v2546 = vld [vmem:[%s1 + $0x2a8] sm:$0xff]
        %v2547 = vld [vmem:[%s1 + $0x2b0] sm:$0xff]
        %v2548 = vld [vmem:[%s1 + $0x2b8] sm:$0xff]
        %v2549 = vld [vmem:[%s1 + $0x2c0] sm:$0xff]
        %v2550 = vld [vmem:[%s1 + $0x2c8] sm:$0xff]
        %v2551 = vld [vmem:[%s1 + $0x2d0] sm:$0xff]
        %v2552 = vld [vmem:[%s1 + $0x2d8] sm:$0xff]
        %v2553 = vld [vmem:[%s1 + $0x2e0] sm:$0xff]
        %v2554 = vld [vmem:[%s1 + $0x2e8] sm:$0xff]
        %v2555 = vld [vmem:[%s1 + $0x2f0] sm:$0xff]
        %v2556 = vld [vmem:[%s1 + $0x2f8] sm:$0xff]
        %v2557 = vld [vmem:[%s1 + $0x300] sm:$0xff]
        %v2558 = vld [vmem:[%s1 + $0x308] sm:$0xff]
        %v2559 = vld [vmem:[%s1 + $0x310] sm:$0xff]
        %v2560 = vld [vmem:[%s1 + $0x318] sm:$0xff]
        %v2561 = vld [vmem:[%s1 + $0x320] sm:$0xff]
        %v2562 = vld [vmem:[%s1 + $0x328] sm:$0xff]
        %v2563 = vld [vmem:[%s1 + $0x330] sm:$0xff]
        %v2564 = vld [vmem:[%s1 + $0x338] sm:$0xff]
        %v2565 = vld [vmem:[%s1 + $0x340] sm:$0xff]
        %v2566 = vld [vmem:[%s1 + $0x348] sm:$0xff]
        %v2567 = vld [vmem:[%s1 + $0x350] sm:$0xff]
        %v2568 = vld [vmem:[%s1 + $0x358] sm:$0xff]
        %v2569 = vld [vmem:[%s1 + $0x360] sm:$0xff]
        %v2570 = vld [vmem:[%s1 + $0x368] sm:$0xff]
        %v2571 = vld [vmem:[%s1 + $0x370] sm:$0xff]
        %v2572 = vld [vmem:[%s1 + $0x378] sm:$0xff]
        %v2573 = vld [vmem:[%s1 + $0x380] sm:$0xff]
        %v2574 = vld [vmem:[%s1 + $0x388] sm:$0xff]
        %v2575 = vld [vmem:[%s1 + $0x390] sm:$0xff]
        %v2576 = vld [vmem:[%s1 + $0x398] sm:$0xff]
        %v2577 = vld [vmem:[%s1 + $0x3a0] sm:$0xff]
        %v2578 = vld [vmem:[%s1 + $0x3a8] sm:$0xff]
        %v2579 = vld [vmem:[%s1 + $0x3b0] sm:$0xff]
        %v2580 = vld [vmem:[%s1 + $0x3b8] sm:$0xff]
        %v2581 = vld [vmem:[%s1 + $0x3c0] sm:$0xff]
        %v2582 = vld [vmem:[%s1 + $0x3c8] sm:$0xff]
        %v2583 = vld [vmem:[%s1 + $0x3d0] sm:$0xff]
        %v2584 = vld [vmem:[%s1 + $0x3d8] sm:$0xff]
        %v2585 = vld [vmem:[%s1 + $0x3e0] sm:$0xff]
        %v2586 = vld [vmem:[%s1 + $0x3e8] sm:$0xff]
        %v2587 = vld [vmem:[%s1 + $0x3f0] sm:$0xff]
        %v2588 = vld [vmem:[%s1 + $0x3f8] sm:$0xff]
        %v2589 = vld [vmem:[%s1 + $0x400] sm:$0xff]
        %v2590 = vld [vmem:[%s1 + $0x408] sm:$0xff]
        %v2591 = vld [vmem:[%s1 + $0x410] sm:$0xff]
        %v2592 = vld [vmem:[%s1 + $0x418] sm:$0xff]
        %v2593 = vld [vmem:[%s1 + $0x420] sm:$0xff]
        %v2594 = vld [vmem:[%s1 + $0x428] sm:$0xff]
        %v2595 = vld [vmem:[%s1 + $0x430] sm:$0xff]
        %v2596 = vld [vmem:[%s1 + $0x438] sm:$0xff]
        %v2597 = vld [vmem:[%s1 + $0x440] sm:$0xff]
        %v2598 = vld [vmem:[%s1 + $0x448] sm:$0xff]
        %v2599 = vld [vmem:[%s1 + $0x450] sm:$0xff]
        %v2600 = vld [vmem:[%s1 + $0x458] sm:$0xff]
        %v2601 = vld [vmem:[%s1 + $0x460] sm:$0xff]
        %v2602 = vld [vmem:[%s1 + $0x468] sm:$0xff]
        %v2603 = vld [vmem:[%s1 + $0x470] sm:$0xff]
        %v2604 = vld [vmem:[%s1 + $0x478] sm:$0xff]
        %v2605 = vld [vmem:[%s1 + $0x480] sm:$0xff]
        %v2606 = vld [vmem:[%s1 + $0x488] sm:$0xff]
        %v2607 = vld [vmem:[%s1 + $0x490] sm:$0xff]
        %v2608 = vld [vmem:[%s1 + $0x498] sm:$0xff]
        %v2609 = vld [vmem:[%s1 + $0x4a0] sm:$0xff]
        %v2610 = vld [vmem:[%s1 + $0x4a8] sm:$0xff]
        %v2611 = vld [vmem:[%s1 + $0x4b0] sm:$0xff]
        %v2612 = vld [vmem:[%s1 + $0x4b8] sm:$0xff]
        %v2613 = vld [vmem:[%s1 + $0x4c0] sm:$0xff]
        %v2614 = vld [vmem:[%s1 + $0x4c8] sm:$0xff]
        %v2615 = vld [vmem:[%s1 + $0x4d0] sm:$0xff]
        %v2616 = vld [vmem:[%s1 + $0x4d8] sm:$0xff]
        %v2617 = vld [vmem:[%s1 + $0x4e0] sm:$0xff]
        %v2618 = vld [vmem:[%s1 + $0x4e8] sm:$0xff]
        %v2619 = vld [vmem:[%s1 + $0x4f0] sm:$0xff]
        %v2620 = vld [vmem:[%s1 + $0x4f8] sm:$0xff]
        %v2621 = vmul.f32 %v2109, %v2461
        %v2622 = vmul.f32 %v2205, %v2462
        %v2623 = vmul.f32 %v2301, %v2463
        %v2624 = vmul.f32 %v2397, %v2464
        %v2625 = vmul.f32 %v2429, %v2465
        %v2626 = vmul.f32 %v2110, %v2466
        %v2627 = vmul.f32 %v2206, %v2467
        %v2628 = vmul.f32 %v2302, %v2468
        %v2629 = vmul.f32 %v2398, %v2469
        %v2630 = vmul.f32 %v2430, %v2470
        %v2631 = vmul.f32 %v2111, %v2471
        %v2632 = vmul.f32 %v2207, %v2472
        %v2633 = vmul.f32 %v2303, %v2473
        %v2634 = vmul.f32 %v2399, %v2474
        %v2635 = vmul.f32 %v2431, %v2475
        %v2636 = vmul.f32 %v2112, %v2476
        %v2637 = vmul.f32 %v2208, %v2477
        %v2638 = vmul.f32 %v2304, %v2478
        %v2639 = vmul.f32 %v2400, %v2479
        %v2640 = vmul.f32 %v2432, %v2480
        %v2641 = vmul.f32 %v2113, %v2481
        %v2642 = vmul.f32 %v2209, %v2482
        %v2643 = vmul.f32 %v2305, %v2483
        %v2644 = vmul.f32 %v2401, %v2484
        %v2645 = vmul.f32 %v2433, %v2485
        %v2646 = vmul.f32 %v2114, %v2486
        %v2647 = vmul.f32 %v2210, %v2487
        %v2648 = vmul.f32 %v2306, %v2488
        %v2649 = vmul.f32 %v2402, %v2489
        %v2650 = vmul.f32 %v2434, %v2490
        %v2651 = vmul.f32 %v2115, %v2491
        %v2652 = vmul.f32 %v2211, %v2492
        %v2653 = vmul.f32 %v2307, %v2493
        %v2654 = vmul.f32 %v2403, %v2494
        %v2655 = vmul.f32 %v2435, %v2495
        %v2656 = vmul.f32 %v2116, %v2496
        %v2657 = vmul.f32 %v2212, %v2497
        %v2658 = vmul.f32 %v2308, %v2498
        %v2659 = vmul.f32 %v2404, %v2499
        %v2660 = vmul.f32 %v2436, %v2500
        %v2661 = vmul.f32 %v2117, %v2501
        %v2662 = vmul.f32 %v2213, %v2502
        %v2663 = vmul.f32 %v2309, %v2503
        %v2664 = vmul.f32 %v2405, %v2504
        %v2665 = vmul.f32 %v2437, %v2505
        %v2666 = vmul.f32 %v2118, %v2506
        %v2667 = vmul.f32 %v2214, %v2507
        %v2668 = vmul.f32 %v2310, %v2508
        %v2669 = vmul.f32 %v2406, %v2509
        %v2670 = vmul.f32 %v2438, %v2510
        %v2671 = vmul.f32 %v2119, %v2511
        %v2672 = vmul.f32 %v2215, %v2512
        %v2673 = vmul.f32 %v2311, %v2513
        %v2674 = vmul.f32 %v2407, %v2514
        %v2675 = vmul.f32 %v2439, %v2515
        %v2676 = vmul.f32 %v2120, %v2516
        %v2677 = vmul.f32 %v2216, %v2517
        %v2678 = vmul.f32 %v2312, %v2518
        %v2679 = vmul.f32 %v2408, %v2519
        %v2680 = vmul.f32 %v2440, %v2520
        %v2681 = vmul.f32 %v2121, %v2521
        %v2682 = vmul.f32 %v2217, %v2522
        %v2683 = vmul.f32 %v2313, %v2523
        %v2684 = vmul.f32 %v2409, %v2524
        %v2685 = vmul.f32 %v2441, %v2525
        %v2686 = vmul.f32 %v2122, %v2526
        %v2687 = vmul.f32 %v2218, %v2527
        %v2688 = vmul.f32 %v2314, %v2528
        %v2689 = vmul.f32 %v2410, %v2529
        %v2690 = vmul.f32 %v2442, %v2530
        %v2691 = vmul.f32 %v2123, %v2531
        %v2692 = vmul.f32 %v2219, %v2532
        %v2693 = vmul.f32 %v2315, %v2533
        %v2694 = vmul.f32 %v2411, %v2534
        %v2695 = vmul.f32 %v2443, %v2535
        %v2696 = vmul.f32 %v2124, %v2536
        %v2697 = vmul.f32 %v2220, %v2537
        %v2698 = vmul.f32 %v2316, %v2538
        %v2699 = vmul.f32 %v2412, %v2539
        %v2700 = vmul.f32 %v2444, %v2540
        %v2701 = vmul.f32 %v2125, %v2541
        %v2702 = vmul.f32 %v2221, %v2542
        %v2703 = vmul.f32 %v2317, %v2543
        %v2704 = vmul.f32 %v2413, %v2544
        %v2705 = vmul.f32 %v2445, %v2545
        %v2706 = vmul.f32 %v2126, %v2546
        %v2707 = vmul.f32 %v2222, %v2547
        %v2708 = vmul.f32 %v2318, %v2548
        %v2709 = vmul.f32 %v2414, %v2549
        %v2710 = vmul.f32 %v2446, %v2550
        %v2711 = vmul.f32 %v2127, %v2551
        %v2712 = vmul.f32 %v2223, %v2552
        %v2713 = vmul.f32 %v2319, %v2553
        %v2714 = vmul.f32 %v2415, %v2554
        %v2715 = vmul.f32 %v2447, %v2555
        %v2716 = vmul.f32 %v2128, %v2556
        %v2717 = vmul.f32 %v2224, %v2557
        %v2718 = vmul.f32 %v2320, %v2558
        %v2719 = vmul.f32 %v2416, %v2559
        %v2720 = vmul.f32 %v2448, %v2560
        %v2721 = vmul.f32 %v2129, %v2561
        %v2722 = vmul.f32 %v2225, %v2562
        %v2723 = vmul.f32 %v2321, %v2563
        %v2724 = vmul.f32 %v2417, %v2564
        %v2725 = vmul.f32 %v2449, %v2565
        %v2726 = vmul.f32 %v2130, %v2566
        %v2727 = vmul.f32 %v2226, %v2567
        %v2728 = vmul.f32 %v2322, %v2568
        %v2729 = vmul.f32 %v2418, %v2569
        %v2730 = vmul.f32 %v2450, %v2570
        %v2731 = vmul.f32 %v2131, %v2571
        %v2732 = vmul.f32 %v2227, %v2572
        %v2733 = vmul.f32 %v2323, %v2573
        %v2734 = vmul.f32 %v2419, %v2574
        %v2735 = vmul.f32 %v2451, %v2575
        %v2736 = vmul.f32 %v2132, %v2576
        %v2737 = vmul.f32 %v2228, %v2577
        %v2738 = vmul.f32 %v2324, %v2578
        %v2739 = vmul.f32 %v2420, %v2579
        %v2740 = vmul.f32 %v2452, %v2580
        %v2741 = vmul.f32 %v2133, %v2581
        %v2742 = vmul.f32 %v2229, %v2582
        %v2743 = vmul.f32 %v2325, %v2583
        %v2744 = vmul.f32 %v2421, %v2584
        %v2745 = vmul.f32 %v2453, %v2585
        %v2746 = vmul.f32 %v2134, %v2586
        %v2747 = vmul.f32 %v2230, %v2587
        %v2748 = vmul.f32 %v2326, %v2588
        %v2749 = vmul.f32 %v2422, %v2589
        %v2750 = vmul.f32 %v2454, %v2590
        %v2751 = vmul.f32 %v2135, %v2591
        %v2752 = vmul.f32 %v2231, %v2592
        %v2753 = vmul.f32 %v2327, %v2593
        %v2754 = vmul.f32 %v2423, %v2594
        %v2755 = vmul.f32 %v2455, %v2595
        %v2756 = vmul.f32 %v2136, %v2596
        %v2757 = vmul.f32 %v2232, %v2597
        %v2758 = vmul.f32 %v2328, %v2598
        %v2759 = vmul.f32 %v2424, %v2599
        %v2760 = vmul.f32 %v2456, %v2600
        %v2761 = vmul.f32 %v2137, %v2601
        %v2762 = vmul.f32 %v2233, %v2602
        %v2763 = vmul.f32 %v2329, %v2603
        %v2764 = vmul.f32 %v2425, %v2604
        %v2765 = vmul.f32 %v2457, %v2605
        %v2766 = vmul.f32 %v2138, %v2606
        %v2767 = vmul.f32 %v2234, %v2607
        %v2768 = vmul.f32 %v2330, %v2608
        %v2769 = vmul.f32 %v2426, %v2609
        %v2770 = vmul.f32 %v2458, %v2610
        %v2771 = vmul.f32 %v2139, %v2611
        %v2772 = vmul.f32 %v2235, %v2612
        %v2773 = vmul.f32 %v2331, %v2613
        %v2774 = vmul.f32 %v2427, %v2614
        %v2775 = vmul.f32 %v2459, %v2615
        %v2776 = vmul.f32 %v2140, %v2616
        %v2777 = vmul.f32 %v2236, %v2617
        %v2778 = vmul.f32 %v2332, %v2618
        %v2779 = vmul.f32 %v2428, %v2619
        %v2780 = vmul.f32 %v2460, %v2620
        %v2781 = vld [vmem:[%s3] sm:$0xf]
        %v2782 = vld [vmem:[%s3 + $0x4] sm:$0xf]
        %v2783 = vld [vmem:[%s3 + $0x8] sm:$0xf]
        %v2784 = vld [vmem:[%s3 + $0xc] sm:$0xf]
        %v2785 = vld [vmem:[%s3 + $0x10] sm:$0xf]
        %v2786 = vld [vmem:[%s3 + $0x14] sm:$0xf]
        %v2787 = vld [vmem:[%s3 + $0x18] sm:$0xf]
        %v2788 = vld [vmem:[%s3 + $0x1c] sm:$0xf]
        %v2789 = vld [vmem:[%s3 + $0x20] sm:$0xf]
        %v2790 = vld [vmem:[%s3 + $0x24] sm:$0xf]
        %v2791 = vld [vmem:[%s3 + $0x28] sm:$0xf]
        %v2792 = vld [vmem:[%s3 + $0x2c] sm:$0xf]
        %v2793 = vld [vmem:[%s3 + $0x30] sm:$0xf]
        %v2794 = vld [vmem:[%s3 + $0x34] sm:$0xf]
        %v2795 = vld [vmem:[%s3 + $0x38] sm:$0xf]
        %v2796 = vld [vmem:[%s3 + $0x3c] sm:$0xf]
        %v2797 = vld [vmem:[%s3 + $0x40] sm:$0xf]
        %v2798 = vld [vmem:[%s3 + $0x44] sm:$0xf]
        %v2799 = vld [vmem:[%s3 + $0x48] sm:$0xf]
        %v2800 = vld [vmem:[%s3 + $0x4c] sm:$0xf]
        %v2801 = vld [vmem:[%s3 + $0x50] sm:$0xf]
        %v2802 = vld [vmem:[%s3 + $0x54] sm:$0xf]
        %v2803 = vld [vmem:[%s3 + $0x58] sm:$0xf]
        %v2804 = vld [vmem:[%s3 + $0x5c] sm:$0xf]
        %v2805 = vld [vmem:[%s3 + $0x60] sm:$0xf]
        %v2806 = vld [vmem:[%s3 + $0x64] sm:$0xf]
        %v2807 = vld [vmem:[%s3 + $0x68] sm:$0xf]
        %v2808 = vld [vmem:[%s3 + $0x6c] sm:$0xf]
        %v2809 = vld [vmem:[%s3 + $0x70] sm:$0xf]
        %v2810 = vld [vmem:[%s3 + $0x74] sm:$0xf]
        %v2811 = vld [vmem:[%s3 + $0x78] sm:$0xf]
        %v2812 = vld [vmem:[%s3 + $0x7c] sm:$0xf]
        %v2813 = vld [vmem:[%s3 + $0x80] sm:$0xf]
        %v2814 = vld [vmem:[%s3 + $0x84] sm:$0xf]
        %v2815 = vld [vmem:[%s3 + $0x88] sm:$0xf]
        %v2816 = vld [vmem:[%s3 + $0x8c] sm:$0xf]
        %v2817 = vld [vmem:[%s3 + $0x90] sm:$0xf]
        %v2818 = vld [vmem:[%s3 + $0x94] sm:$0xf]
        %v2819 = vld [vmem:[%s3 + $0x98] sm:$0xf]
        %v2820 = vld [vmem:[%s3 + $0x9c] sm:$0xf]
        %v2821 = vld [vmem:[%s3 + $0xa0] sm:$0xf]
        %v2822 = vld [vmem:[%s3 + $0xa4] sm:$0xf]
        %v2823 = vld [vmem:[%s3 + $0xa8] sm:$0xf]
        %v2824 = vld [vmem:[%s3 + $0xac] sm:$0xf]
        %v2825 = vld [vmem:[%s3 + $0xb0] sm:$0xf]
        %v2826 = vld [vmem:[%s3 + $0xb4] sm:$0xf]
        %v2827 = vld [vmem:[%s3 + $0xb8] sm:$0xf]
        %v2828 = vld [vmem:[%s3 + $0xbc] sm:$0xf]
        %v2829 = vld [vmem:[%s3 + $0xc0] sm:$0xf]
        %v2830 = vld [vmem:[%s3 + $0xc4] sm:$0xf]
        %v2831 = vld [vmem:[%s3 + $0xc8] sm:$0xf]
        %v2832 = vld [vmem:[%s3 + $0xcc] sm:$0xf]
        %v2833 = vld [vmem:[%s3 + $0xd0] sm:$0xf]
        %v2834 = vld [vmem:[%s3 + $0xd4] sm:$0xf]
        %v2835 = vld [vmem:[%s3 + $0xd8] sm:$0xf]
        %v2836 = vld [vmem:[%s3 + $0xdc] sm:$0xf]
        %v2837 = vld [vmem:[%s3 + $0xe0] sm:$0xf]
        %v2838 = vld [vmem:[%s3 + $0xe4] sm:$0xf]
        %v2839 = vld [vmem:[%s3 + $0xe8] sm:$0xf]
        %v2840 = vld [vmem:[%s3 + $0xec] sm:$0xf]
        %v2841 = vld [vmem:[%s3 + $0xf0] sm:$0xf]
        %v2842 = vld [vmem:[%s3 + $0xf4] sm:$0xf]
        %v2843 = vld [vmem:[%s3 + $0xf8] sm:$0xf]
        %v2844 = vld [vmem:[%s3 + $0xfc] sm:$0xf]
        %v2845 = vld [vmem:[%s3 + $0x100] sm:$0xf]
        %v2846 = vld [vmem:[%s3 + $0x104] sm:$0xf]
        %v2847 = vld [vmem:[%s3 + $0x108] sm:$0xf]
        %v2848 = vld [vmem:[%s3 + $0x10c] sm:$0xf]
        %v2849 = vld [vmem:[%s3 + $0x110] sm:$0xf]
        %v2850 = vld [vmem:[%s3 + $0x114] sm:$0xf]
        %v2851 = vld [vmem:[%s3 + $0x118] sm:$0xf]
        %v2852 = vld [vmem:[%s3 + $0x11c] sm:$0xf]
        %v2853 = vpack.c.bf16 %v2626, %v2621
        %v2854 = vpack.c.bf16 %v2627, %v2622
        %v2855 = vpack.c.bf16 %v2628, %v2623
        %v2856 = vpack.c.bf16 %v2629, %v2624
        %v2857 = vpack.c.bf16 %v2630, %v2625
        %v2858 = vpack.c.bf16 %v2636, %v2631
        %v2859 = vpack.c.bf16 %v2637, %v2632
        %v2860 = vpack.c.bf16 %v2638, %v2633
        %v2861 = vpack.c.bf16 %v2639, %v2634
        %v2862 = vpack.c.bf16 %v2640, %v2635
        %v2863 = vpack.c.bf16 %v2646, %v2641
        %v2864 = vpack.c.bf16 %v2647, %v2642
        %v2865 = vpack.c.bf16 %v2648, %v2643
        %v2866 = vpack.c.bf16 %v2649, %v2644
        %v2867 = vpack.c.bf16 %v2650, %v2645
        %v2868 = vpack.c.bf16 %v2656, %v2651
        %v2869 = vpack.c.bf16 %v2657, %v2652
        %v2870 = vpack.c.bf16 %v2658, %v2653
        %v2871 = vpack.c.bf16 %v2659, %v2654
        %v2872 = vpack.c.bf16 %v2660, %v2655
        %v2873 = vpack.c.bf16 %v2666, %v2661
        %v2874 = vpack.c.bf16 %v2667, %v2662
        %v2875 = vpack.c.bf16 %v2668, %v2663
        %v2876 = vpack.c.bf16 %v2669, %v2664
        %v2877 = vpack.c.bf16 %v2670, %v2665
        %v2878 = vpack.c.bf16 %v2676, %v2671
        %v2879 = vpack.c.bf16 %v2677, %v2672
        %v2880 = vpack.c.bf16 %v2678, %v2673
        %v2881 = vpack.c.bf16 %v2679, %v2674
        %v2882 = vpack.c.bf16 %v2680, %v2675
        %v2883 = vpack.c.bf16 %v2686, %v2681
        %v2884 = vpack.c.bf16 %v2687, %v2682
        %v2885 = vpack.c.bf16 %v2688, %v2683
        %v2886 = vpack.c.bf16 %v2689, %v2684
        %v2887 = vpack.c.bf16 %v2690, %v2685
        %v2888 = vpack.c.bf16 %v2696, %v2691
        %v2889 = vpack.c.bf16 %v2697, %v2692
        %v2890 = vpack.c.bf16 %v2698, %v2693
        %v2891 = vpack.c.bf16 %v2699, %v2694
        %v2892 = vpack.c.bf16 %v2700, %v2695
        %v2893 = vpack.c.bf16 %v2706, %v2701
        %v2894 = vpack.c.bf16 %v2707, %v2702
        %v2895 = vpack.c.bf16 %v2708, %v2703
        %v2896 = vpack.c.bf16 %v2709, %v2704
        %v2897 = vpack.c.bf16 %v2710, %v2705
        %v2898 = vpack.c.bf16 %v2716, %v2711
        %v2899 = vpack.c.bf16 %v2717, %v2712
        %v2900 = vpack.c.bf16 %v2718, %v2713
        %v2901 = vpack.c.bf16 %v2719, %v2714
        %v2902 = vpack.c.bf16 %v2720, %v2715
        %v2903 = vpack.c.bf16 %v2726, %v2721
        %v2904 = vpack.c.bf16 %v2727, %v2722
        %v2905 = vpack.c.bf16 %v2728, %v2723
        %v2906 = vpack.c.bf16 %v2729, %v2724
        %v2907 = vpack.c.bf16 %v2730, %v2725
        %v2908 = vpack.c.bf16 %v2736, %v2731
        %v2909 = vpack.c.bf16 %v2737, %v2732
        %v2910 = vpack.c.bf16 %v2738, %v2733
        %v2911 = vpack.c.bf16 %v2739, %v2734
        %v2912 = vpack.c.bf16 %v2740, %v2735
        %v2913 = vpack.c.bf16 %v2746, %v2741
        %v2914 = vpack.c.bf16 %v2747, %v2742
        %v2915 = vpack.c.bf16 %v2748, %v2743
        %v2916 = vpack.c.bf16 %v2749, %v2744
        %v2917 = vpack.c.bf16 %v2750, %v2745
        %v2918 = vpack.c.bf16 %v2756, %v2751
        %v2919 = vpack.c.bf16 %v2757, %v2752
        %v2920 = vpack.c.bf16 %v2758, %v2753
        %v2921 = vpack.c.bf16 %v2759, %v2754
        %v2922 = vpack.c.bf16 %v2760, %v2755
        %v2923 = vpack.c.bf16 %v2766, %v2761
        %v2924 = vpack.c.bf16 %v2767, %v2762
        %v2925 = vpack.c.bf16 %v2768, %v2763
        %v2926 = vpack.c.bf16 %v2769, %v2764
        %v2927 = vpack.c.bf16 %v2770, %v2765
        %v2928 = vpack.c.bf16 %v2776, %v2771
        %v2929 = vpack.c.bf16 %v2777, %v2772
        %v2930 = vpack.c.bf16 %v2778, %v2773
        %v2931 = vpack.c.bf16 %v2779, %v2774
        %v2932 = vpack.c.bf16 %v2780, %v2775
        %v3005 = vunpack.c.l.b16 %v2781
        %v3006 = vunpack.c.l.b16 %v2782
        %v3007 = vunpack.c.l.b16 %v2783
        %v3008 = vunpack.c.l.b16 %v2784
        %v3009 = vunpack.c.l.b16 %v2785
        %v3010 = vunpack.c.l.b16 %v2786
        %v3011 = vunpack.c.l.b16 %v2787
        %v3012 = vunpack.c.l.b16 %v2788
        %v3013 = vunpack.c.l.b16 %v2789
        %v3014 = vunpack.c.l.b16 %v2790
        %v3015 = vunpack.c.l.b16 %v2791
        %v3016 = vunpack.c.l.b16 %v2792
        %v3017 = vunpack.c.l.b16 %v2793
        %v3018 = vunpack.c.l.b16 %v2794
        %v3019 = vunpack.c.l.b16 %v2795
        %v3020 = vunpack.c.l.b16 %v2796
        %v3021 = vunpack.c.l.b16 %v2797
        %v3022 = vunpack.c.l.b16 %v2798
        %v3023 = vunpack.c.l.b16 %v2799
        %v3024 = vunpack.c.l.b16 %v2800
        %v3025 = vunpack.c.l.b16 %v2801
        %v3026 = vunpack.c.l.b16 %v2802
        %v3027 = vunpack.c.l.b16 %v2803
        %v3028 = vunpack.c.l.b16 %v2804
        %v3029 = vunpack.c.l.b16 %v2805
        %v3030 = vunpack.c.l.b16 %v2806
        %v3031 = vunpack.c.l.b16 %v2807
        %v3032 = vunpack.c.l.b16 %v2808
        %v3033 = vunpack.c.l.b16 %v2809
        %v3034 = vunpack.c.l.b16 %v2810
        %v3035 = vunpack.c.l.b16 %v2811
        %v3036 = vunpack.c.l.b16 %v2812
        %v3037 = vunpack.c.l.b16 %v2813
        %v3038 = vunpack.c.l.b16 %v2814
        %v3039 = vunpack.c.l.b16 %v2815
        %v3040 = vunpack.c.l.b16 %v2816
        %v3041 = vunpack.c.l.b16 %v2817
        %v3042 = vunpack.c.l.b16 %v2818
        %v3043 = vunpack.c.l.b16 %v2819
        %v3044 = vunpack.c.l.b16 %v2820
        %v3045 = vunpack.c.l.b16 %v2821
        %v3046 = vunpack.c.l.b16 %v2822
        %v3047 = vunpack.c.l.b16 %v2823
        %v3048 = vunpack.c.l.b16 %v2824
        %v3049 = vunpack.c.l.b16 %v2825
        %v3050 = vunpack.c.l.b16 %v2826
        %v3051 = vunpack.c.l.b16 %v2827
        %v3052 = vunpack.c.l.b16 %v2828
        %v3053 = vunpack.c.l.b16 %v2829
        %v3054 = vunpack.c.l.b16 %v2830
        %v3055 = vunpack.c.l.b16 %v2831
        %v3056 = vunpack.c.l.b16 %v2832
        %v3057 = vunpack.c.l.b16 %v2833
        %v3058 = vunpack.c.l.b16 %v2834
        %v3059 = vunpack.c.l.b16 %v2835
        %v3060 = vunpack.c.l.b16 %v2836
        %v3061 = vunpack.c.l.b16 %v2837
        %v3062 = vunpack.c.l.b16 %v2838
        %v3063 = vunpack.c.l.b16 %v2839
        %v3064 = vunpack.c.l.b16 %v2840
        %v3065 = vunpack.c.l.b16 %v2841
        %v3066 = vunpack.c.l.b16 %v2842
        %v3067 = vunpack.c.l.b16 %v2843
        %v3068 = vunpack.c.l.b16 %v2844
        %v3069 = vunpack.c.l.b16 %v2845
        %v3070 = vunpack.c.l.b16 %v2846
        %v3071 = vunpack.c.l.b16 %v2847
        %v3072 = vunpack.c.l.b16 %v2848
        %v3073 = vunpack.c.l.b16 %v2849
        %v3074 = vunpack.c.l.b16 %v2850
        %v3075 = vunpack.c.l.b16 %v2851
        %v3076 = vunpack.c.l.b16 %v2852
        %v3077 = vpack.c.b16 %v3006, %v3005
        %v3078 = vpack.c.b16 %v3008, %v3007
        %v3079 = vpack.c.b16 %v3010, %v3009
        %v3080 = vpack.c.b16 %v3012, %v3011
        %v3081 = vpack.c.b16 %v3014, %v3013
        %v3082 = vpack.c.b16 %v3016, %v3015
        %v3083 = vpack.c.b16 %v3018, %v3017
        %v3084 = vpack.c.b16 %v3020, %v3019
        %v3085 = vpack.c.b16 %v3022, %v3021
        %v3086 = vpack.c.b16 %v3024, %v3023
        %v3087 = vpack.c.b16 %v3026, %v3025
        %v3088 = vpack.c.b16 %v3028, %v3027
        %v3089 = vpack.c.b16 %v3030, %v3029
        %v3090 = vpack.c.b16 %v3032, %v3031
        %v3091 = vpack.c.b16 %v3034, %v3033
        %v3092 = vpack.c.b16 %v3036, %v3035
        %v3093 = vpack.c.b16 %v3038, %v3037
        %v3094 = vpack.c.b16 %v3040, %v3039
        %v3095 = vpack.c.b16 %v3042, %v3041
        %v3096 = vpack.c.b16 %v3044, %v3043
        %v3097 = vpack.c.b16 %v3046, %v3045
        %v3098 = vpack.c.b16 %v3048, %v3047
        %v3099 = vpack.c.b16 %v3050, %v3049
        %v3100 = vpack.c.b16 %v3052, %v3051
        %v3101 = vpack.c.b16 %v3054, %v3053
        %v3102 = vpack.c.b16 %v3056, %v3055
        %v3103 = vpack.c.b16 %v3058, %v3057
        %v3104 = vpack.c.b16 %v3060, %v3059
        %v3105 = vpack.c.b16 %v3062, %v3061
        %v3106 = vpack.c.b16 %v3064, %v3063
        %v3107 = vpack.c.b16 %v3066, %v3065
        %v3108 = vpack.c.b16 %v3068, %v3067
        %v3109 = vpack.c.b16 %v3070, %v3069
        %v3110 = vpack.c.b16 %v3072, %v3071
        %v3111 = vpack.c.b16 %v3074, %v3073
        %v3112 = vpack.c.b16 %v3076, %v3075
        %v3150 = vsel %vm2075, %v2857, 0
        %v3153 = vsel %vm2075, %v2862, 0
        %v3156 = vsel %vm2075, %v2867, 0
        %v3159 = vsel %vm2075, %v2872, 0
        %v3162 = vsel %vm2075, %v2877, 0
        %v3165 = vsel %vm2075, %v2882, 0
        %v3168 = vsel %vm2075, %v2887, 0
        %v3171 = vsel %vm2075, %v2892, 0
        %v3174 = vsel %vm2075, %v2897, 0
        %v3177 = vsel %vm2075, %v2902, 0
        %v3180 = vsel %vm2075, %v2907, 0
        %v3183 = vsel %vm2075, %v2912, 0
        %v3186 = vsel %vm2075, %v2917, 0
        %v3189 = vsel %vm2075, %v2922, 0
        %v3192 = vsel %vm2075, %v2927, 0
        %v3195 = vsel %vm2075, %v2932, 0
        %3197 = vmatprep.subr.bf16.mxu0 0
        %3198 = vmatpush1.bf16.msra.mxu0 %v3077
        %3199 = vmatprep.subr.bf16.mxu0 0
        %3200 = vmatpush1.bf16.msra.mxu0 %v3078
        %3201 = vmatprep.subr.bf16.mxu0 0
        %3202 = vmatpush1.bf16.msra.mxu0 %v3079
        %3203 = vmatprep.subr.bf16.mxu0 0
        %3204 = vmatpush1.bf16.msra.mxu0 %v3080
        %3205 = vmatprep.subr.bf16.mxu0 0
        %3206 = vmatpush1.bf16.msra.mxu0 %v3081
        %3207 = vmatprep.subr.bf16.mxu0 0
        %3208 = vmatpush1.bf16.msra.mxu0 %v3082
        %3209 = vmatprep.subr.bf16.mxu0 0
        %3210 = vmatpush1.bf16.msra.mxu0 %v3083
        %3211 = vmatprep.subr.bf16.mxu0 0
        %3212 = vmatpush1.bf16.msra.mxu0 %v3084
        %3213 = vmatprep.subr.bf16.mxu0 0
        %3214 = vmatpush1.bf16.msra.mxu0 %v3085
        %3215 = vmatprep.subr.bf16.mxu0 0
        %3216 = vmatpush1.bf16.msra.mxu0 %v3086
        %3217 = vmatprep.subr.bf16.mxu0 0
        %3218 = vmatpush1.bf16.msra.mxu0 %v3087
        %3219 = vmatprep.subr.bf16.mxu0 0
        %3220 = vmatpush1.bf16.msra.mxu0 %v3088
        %3221 = vmatprep.subr.bf16.mxu0 0
        %3222 = vmatpush1.bf16.msra.mxu0 %v3089
        %3223 = vmatprep.subr.bf16.mxu0 0
        %3224 = vmatpush1.bf16.msra.mxu0 %v3090
        %3225 = vmatprep.subr.bf16.mxu0 0
        %3226 = vmatpush1.bf16.msra.mxu0 %v3091
        %3227 = vmatprep.subr.bf16.mxu0 0
        %3228 = vmatpush1.bf16.msra.mxu0 %v3092
        %3229 = vmatprep.mubr.bf16.mxu0 %v2854
        %3230 = vmatmul.mubr.bf16.gmra.mrb[0].mxu0 %v2853
        %v3231 = vpop.f32.mrb[0].mxu0
        %v3232 = vadd.f32 0.0, %v3231
        %v3233 = vpop.f32.mrb[0].mxu0
        %v3234 = vpop.f32.mrb[0].mxu0
        %v3235 = vadd.f32 0.0, %v3234
        %v3236 = vpop.f32.mrb[0].mxu0
        %3237 = vmatprep.mubr.bf16.mxu0 %v2859
        %3238 = vmatmul.mubr.bf16.gmra.mrb[0].mxu0 %v2858
        %v3239 = vpop.f32.mrb[0].mxu0
        %v3240 = vadd.f32 0.0, %v3239
        %v3241 = vpop.f32.mrb[0].mxu0
        %v3242 = vpop.f32.mrb[0].mxu0
        %v3243 = vadd.f32 0.0, %v3242
        %v3244 = vpop.f32.mrb[0].mxu0
        %3245 = vmatprep.mubr.bf16.mxu0 %v2864
        %3246 = vmatmul.mubr.bf16.gmra.mrb[0].mxu0 %v2863
        %v3247 = vpop.f32.mrb[0].mxu0
        %v3248 = vadd.f32 0.0, %v3247
        %v3249 = vpop.f32.mrb[0].mxu0
        %v3250 = vpop.f32.mrb[0].mxu0
        %v3251 = vadd.f32 0.0, %v3250
        %v3252 = vpop.f32.mrb[0].mxu0
        %3253 = vmatprep.mubr.bf16.mxu0 %v2869
        %3254 = vmatmul.mubr.bf16.gmra.mrb[0].mxu0 %v2868
        %v3255 = vpop.f32.mrb[0].mxu0
        %v3256 = vadd.f32 0.0, %v3255
        %v3257 = vpop.f32.mrb[0].mxu0
        %v3258 = vpop.f32.mrb[0].mxu0
        %v3259 = vadd.f32 0.0, %v3258
        %v3260 = vpop.f32.mrb[0].mxu0
        %3261 = vmatprep.mubr.bf16.mxu0 %v2874
        %3262 = vmatmul.mubr.bf16.gmra.mrb[0].mxu0 %v2873
        %v3263 = vpop.f32.mrb[0].mxu0
        %v3264 = vadd.f32 0.0, %v3263
        %v3265 = vpop.f32.mrb[0].mxu0
        %v3266 = vpop.f32.mrb[0].mxu0
        %v3267 = vadd.f32 0.0, %v3266
        %v3268 = vpop.f32.mrb[0].mxu0
        %3269 = vmatprep.mubr.bf16.mxu0 %v2879
        %3270 = vmatmul.mubr.bf16.gmra.mrb[0].mxu0 %v2878
        %v3271 = vpop.f32.mrb[0].mxu0
        %v3272 = vadd.f32 0.0, %v3271
        %v3273 = vpop.f32.mrb[0].mxu0
        %v3274 = vpop.f32.mrb[0].mxu0
        %v3275 = vadd.f32 0.0, %v3274
        %v3276 = vpop.f32.mrb[0].mxu0
        %3277 = vmatprep.mubr.bf16.mxu0 %v2884
        %3278 = vmatmul.mubr.bf16.gmra.mrb[0].mxu0 %v2883
        %v3279 = vpop.f32.mrb[0].mxu0
        %v3280 = vadd.f32 0.0, %v3279
        %v3281 = vpop.f32.mrb[0].mxu0
        %v3282 = vpop.f32.mrb[0].mxu0
        %v3283 = vadd.f32 0.0, %v3282
        %v3284 = vpop.f32.mrb[0].mxu0
        %3285 = vmatprep.mubr.bf16.mxu0 %v2889
        %3286 = vmatmul.mubr.bf16.gmra.mrb[0].mxu0 %v2888
        %v3287 = vpop.f32.mrb[0].mxu0
        %v3288 = vadd.f32 0.0, %v3287
        %v3289 = vpop.f32.mrb[0].mxu0
        %v3290 = vpop.f32.mrb[0].mxu0
        %v3291 = vadd.f32 0.0, %v3290
        %v3292 = vpop.f32.mrb[0].mxu0
        %3293 = vmatprep.mubr.bf16.mxu0 %v2894
        %3294 = vmatmul.mubr.bf16.gmra.mrb[0].mxu0 %v2893
        %v3295 = vpop.f32.mrb[0].mxu0
        %v3296 = vadd.f32 0.0, %v3295
        %v3297 = vpop.f32.mrb[0].mxu0
        %v3298 = vpop.f32.mrb[0].mxu0
        %v3299 = vadd.f32 0.0, %v3298
        %v3300 = vpop.f32.mrb[0].mxu0
        %3301 = vmatprep.mubr.bf16.mxu0 %v2899
        %3302 = vmatmul.mubr.bf16.gmra.mrb[0].mxu0 %v2898
        %v3303 = vpop.f32.mrb[0].mxu0
        %v3304 = vadd.f32 0.0, %v3303
        %v3305 = vpop.f32.mrb[0].mxu0
        %v3306 = vpop.f32.mrb[0].mxu0
        %v3307 = vadd.f32 0.0, %v3306
        %v3308 = vpop.f32.mrb[0].mxu0
        %3309 = vmatprep.mubr.bf16.mxu0 %v2904
        %3310 = vmatmul.mubr.bf16.gmra.mrb[0].mxu0 %v2903
        %v3311 = vpop.f32.mrb[0].mxu0
        %v3312 = vadd.f32 0.0, %v3311
        %v3313 = vpop.f32.mrb[0].mxu0
        %v3314 = vpop.f32.mrb[0].mxu0
        %v3315 = vadd.f32 0.0, %v3314
        %v3316 = vpop.f32.mrb[0].mxu0
        %3317 = vmatprep.mubr.bf16.mxu0 %v2909
        %3318 = vmatmul.mubr.bf16.gmra.mrb[0].mxu0 %v2908
        %v3319 = vpop.f32.mrb[0].mxu0
        %v3320 = vadd.f32 0.0, %v3319
        %v3321 = vpop.f32.mrb[0].mxu0
        %v3322 = vpop.f32.mrb[0].mxu0
        %v3323 = vadd.f32 0.0, %v3322
        %v3324 = vpop.f32.mrb[0].mxu0
        %3325 = vmatprep.mubr.bf16.mxu0 %v2914
        %3326 = vmatmul.mubr.bf16.gmra.mrb[0].mxu0 %v2913
        %v3327 = vpop.f32.mrb[0].mxu0
        %v3328 = vadd.f32 0.0, %v3327
        %v3329 = vpop.f32.mrb[0].mxu0
        %v3330 = vpop.f32.mrb[0].mxu0
        %v3331 = vadd.f32 0.0, %v3330
        %v3332 = vpop.f32.mrb[0].mxu0
        %3333 = vmatprep.mubr.bf16.mxu0 %v2919
        %3334 = vmatmul.mubr.bf16.gmra.mrb[0].mxu0 %v2918
        %v3335 = vpop.f32.mrb[0].mxu0
        %v3336 = vadd.f32 0.0, %v3335
        %v3337 = vpop.f32.mrb[0].mxu0
        %v3338 = vpop.f32.mrb[0].mxu0
        %v3339 = vadd.f32 0.0, %v3338
        %v3340 = vpop.f32.mrb[0].mxu0
        %3341 = vmatprep.mubr.bf16.mxu0 %v2924
        %3342 = vmatmul.mubr.bf16.gmra.mrb[0].mxu0 %v2923
        %v3343 = vpop.f32.mrb[0].mxu0
        %v3344 = vadd.f32 0.0, %v3343
        %v3345 = vpop.f32.mrb[0].mxu0
        %v3346 = vpop.f32.mrb[0].mxu0
        %v3347 = vadd.f32 0.0, %v3346
        %v3348 = vpop.f32.mrb[0].mxu0
        %3349 = vmatprep.mubr.bf16.mxu0 %v2929
        %3350 = vmatmul.mubr.bf16.gmra.mrb[0].mxu0 %v2928
        %v3351 = vpop.f32.mrb[0].mxu0
        %v3352 = vadd.f32 0.0, %v3351
        %v3353 = vpop.f32.mrb[0].mxu0
        %v3354 = vpop.f32.mrb[0].mxu0
        %v3355 = vadd.f32 0.0, %v3354
        %v3356 = vpop.f32.mrb[0].mxu0
        %3357 = vdwg.mxu0
        %3358 = vmatprep.subr.bf16.mxu0 0
        %3359 = vmatpush1.bf16.msra.mxu0 %v3093
        %3360 = vmatprep.subr.bf16.mxu0 0
        %3361 = vmatpush1.bf16.msra.mxu0 %v3094
        %3362 = vmatprep.subr.bf16.mxu0 0
        %3363 = vmatpush1.bf16.msra.mxu0 %v3095
        %3364 = vmatprep.subr.bf16.mxu0 0
        %3365 = vmatpush1.bf16.msra.mxu0 %v3096
        %3366 = vmatprep.subr.bf16.mxu0 0
        %3367 = vmatpush1.bf16.msra.mxu0 %v3097
        %3368 = vmatprep.subr.bf16.mxu0 0
        %3369 = vmatpush1.bf16.msra.mxu0 %v3098
        %3370 = vmatprep.subr.bf16.mxu0 0
        %3371 = vmatpush1.bf16.msra.mxu0 %v3099
        %3372 = vmatprep.subr.bf16.mxu0 0
        %3373 = vmatpush1.bf16.msra.mxu0 %v3100
        %3374 = vmatprep.subr.bf16.mxu0 0
        %3375 = vmatpush1.bf16.msra.mxu0 %v3101
        %3376 = vmatprep.subr.bf16.mxu0 0
        %3377 = vmatpush1.bf16.msra.mxu0 %v3102
        %3378 = vmatprep.subr.bf16.mxu0 0
        %3379 = vmatpush1.bf16.msra.mxu0 %v3103
        %3380 = vmatprep.subr.bf16.mxu0 0
        %3381 = vmatpush1.bf16.msra.mxu0 %v3104
        %3382 = vmatprep.subr.bf16.mxu0 0
        %3383 = vmatpush1.bf16.msra.mxu0 %v3105
        %3384 = vmatprep.subr.bf16.mxu0 0
        %3385 = vmatpush1.bf16.msra.mxu0 %v3106
        %3386 = vmatprep.subr.bf16.mxu0 0
        %3387 = vmatpush1.bf16.msra.mxu0 %v3107
        %3388 = vmatprep.subr.bf16.mxu0 0
        %3389 = vmatpush1.bf16.msra.mxu0 %v3108
        %3390 = vmatprep.mubr.bf16.mxu0 %v2856
        %3391 = vmatmul.mubr.bf16.gmra.mrb[0].mxu0 %v2855
        %v3392 = vpop.f32.mrb[0].mxu0
        %v3393 = vadd.f32 %v3232, %v3392
        %v3394 = vpop.f32.mrb[0].mxu0
        %v3395 = vpop.f32.mrb[0].mxu0
        %v3396 = vadd.f32 %v3235, %v3395
        %v3397 = vpop.f32.mrb[0].mxu0
        %3398 = vmatprep.mubr.bf16.mxu0 %v2861
        %3399 = vmatmul.mubr.bf16.gmra.mrb[0].mxu0 %v2860
        %v3400 = vpop.f32.mrb[0].mxu0
        %v3401 = vadd.f32 %v3240, %v3400
        %v3402 = vpop.f32.mrb[0].mxu0
        %v3403 = vpop.f32.mrb[0].mxu0
        %v3404 = vadd.f32 %v3243, %v3403
        %v3405 = vpop.f32.mrb[0].mxu0
        %3406 = vmatprep.mubr.bf16.mxu0 %v2866
        %3407 = vmatmul.mubr.bf16.gmra.mrb[0].mxu0 %v2865
        %v3408 = vpop.f32.mrb[0].mxu0
        %v3409 = vadd.f32 %v3248, %v3408
        %v3410 = vpop.f32.mrb[0].mxu0
        %v3411 = vpop.f32.mrb[0].mxu0
        %v3412 = vadd.f32 %v3251, %v3411
        %v3413 = vpop.f32.mrb[0].mxu0
        %3414 = vmatprep.mubr.bf16.mxu0 %v2871
        %3415 = vmatmul.mubr.bf16.gmra.mrb[0].mxu0 %v2870
        %v3416 = vpop.f32.mrb[0].mxu0
        %v3417 = vadd.f32 %v3256, %v3416
        %v3418 = vpop.f32.mrb[0].mxu0
        %v3419 = vpop.f32.mrb[0].mxu0
        %v3420 = vadd.f32 %v3259, %v3419
        %v3421 = vpop.f32.mrb[0].mxu0
        %3422 = vmatprep.mubr.bf16.mxu0 %v2876
        %3423 = vmatmul.mubr.bf16.gmra.mrb[0].mxu0 %v2875
        %v3424 = vpop.f32.mrb[0].mxu0
        %v3425 = vadd.f32 %v3264, %v3424
        %v3426 = vpop.f32.mrb[0].mxu0
        %v3427 = vpop.f32.mrb[0].mxu0
        %v3428 = vadd.f32 %v3267, %v3427
        %v3429 = vpop.f32.mrb[0].mxu0
        %3430 = vmatprep.mubr.bf16.mxu0 %v2881
        %3431 = vmatmul.mubr.bf16.gmra.mrb[0].mxu0 %v2880
        %v3432 = vpop.f32.mrb[0].mxu0
        %v3433 = vadd.f32 %v3272, %v3432
        %v3434 = vpop.f32.mrb[0].mxu0
        %v3435 = vpop.f32.mrb[0].mxu0
        %v3436 = vadd.f32 %v3275, %v3435
        %v3437 = vpop.f32.mrb[0].mxu0
        %3438 = vmatprep.mubr.bf16.mxu0 %v2886
        %3439 = vmatmul.mubr.bf16.gmra.mrb[0].mxu0 %v2885
        %v3440 = vpop.f32.mrb[0].mxu0
        %v3441 = vadd.f32 %v3280, %v3440
        %v3442 = vpop.f32.mrb[0].mxu0
        %v3443 = vpop.f32.mrb[0].mxu0
        %v3444 = vadd.f32 %v3283, %v3443
        %v3445 = vpop.f32.mrb[0].mxu0
        %3446 = vmatprep.mubr.bf16.mxu0 %v2891
        %3447 = vmatmul.mubr.bf16.gmra.mrb[0].mxu0 %v2890
        %v3448 = vpop.f32.mrb[0].mxu0
        %v3449 = vadd.f32 %v3288, %v3448
        %v3450 = vpop.f32.mrb[0].mxu0
        %v3451 = vpop.f32.mrb[0].mxu0
        %v3452 = vadd.f32 %v3291, %v3451
        %v3453 = vpop.f32.mrb[0].mxu0
        %3454 = vmatprep.mubr.bf16.mxu0 %v2896
        %3455 = vmatmul.mubr.bf16.gmra.mrb[0].mxu0 %v2895
        %v3456 = vpop.f32.mrb[0].mxu0
        %v3457 = vadd.f32 %v3296, %v3456
        %v3458 = vpop.f32.mrb[0].mxu0
        %v3459 = vpop.f32.mrb[0].mxu0
        %v3460 = vadd.f32 %v3299, %v3459
        %v3461 = vpop.f32.mrb[0].mxu0
        %3462 = vmatprep.mubr.bf16.mxu0 %v2901
        %3463 = vmatmul.mubr.bf16.gmra.mrb[0].mxu0 %v2900
        %v3464 = vpop.f32.mrb[0].mxu0
        %v3465 = vadd.f32 %v3304, %v3464
        %v3466 = vpop.f32.mrb[0].mxu0
        %v3467 = vpop.f32.mrb[0].mxu0
        %v3468 = vadd.f32 %v3307, %v3467
        %v3469 = vpop.f32.mrb[0].mxu0
        %3470 = vmatprep.mubr.bf16.mxu0 %v2906
        %3471 = vmatmul.mubr.bf16.gmra.mrb[0].mxu0 %v2905
        %v3472 = vpop.f32.mrb[0].mxu0
        %v3473 = vadd.f32 %v3312, %v3472
        %v3474 = vpop.f32.mrb[0].mxu0
        %v3475 = vpop.f32.mrb[0].mxu0
        %v3476 = vadd.f32 %v3315, %v3475
        %v3477 = vpop.f32.mrb[0].mxu0
        %3478 = vmatprep.mubr.bf16.mxu0 %v2911
        %3479 = vmatmul.mubr.bf16.gmra.mrb[0].mxu0 %v2910
        %v3480 = vpop.f32.mrb[0].mxu0
        %v3481 = vadd.f32 %v3320, %v3480
        %v3482 = vpop.f32.mrb[0].mxu0
        %v3483 = vpop.f32.mrb[0].mxu0
        %v3484 = vadd.f32 %v3323, %v3483
        %v3485 = vpop.f32.mrb[0].mxu0
        %3486 = vmatprep.mubr.bf16.mxu0 %v2916
        %3487 = vmatmul.mubr.bf16.gmra.mrb[0].mxu0 %v2915
        %v3488 = vpop.f32.mrb[0].mxu0
        %v3489 = vadd.f32 %v3328, %v3488
        %v3490 = vpop.f32.mrb[0].mxu0
        %v3491 = vpop.f32.mrb[0].mxu0
        %v3492 = vadd.f32 %v3331, %v3491
        %v3493 = vpop.f32.mrb[0].mxu0
        %3494 = vmatprep.mubr.bf16.mxu0 %v2921
        %3495 = vmatmul.mubr.bf16.gmra.mrb[0].mxu0 %v2920
        %v3496 = vpop.f32.mrb[0].mxu0
        %v3497 = vadd.f32 %v3336, %v3496
        %v3498 = vpop.f32.mrb[0].mxu0
        %v3499 = vpop.f32.mrb[0].mxu0
        %v3500 = vadd.f32 %v3339, %v3499
        %v3501 = vpop.f32.mrb[0].mxu0
        %3502 = vmatprep.mubr.bf16.mxu0 %v2926
        %3503 = vmatmul.mubr.bf16.gmra.mrb[0].mxu0 %v2925
        %v3504 = vpop.f32.mrb[0].mxu0
        %v3505 = vadd.f32 %v3344, %v3504
        %v3506 = vpop.f32.mrb[0].mxu0
        %v3507 = vpop.f32.mrb[0].mxu0
        %v3508 = vadd.f32 %v3347, %v3507
        %v3509 = vpop.f32.mrb[0].mxu0
        %3510 = vmatprep.mubr.bf16.mxu0 %v2931
        %3511 = vmatmul.mubr.bf16.gmra.mrb[0].mxu0 %v2930
        %v3512 = vpop.f32.mrb[0].mxu0
        %v3513 = vadd.f32 %v3352, %v3512
        %v3514 = vpop.f32.mrb[0].mxu0
        %v3515 = vpop.f32.mrb[0].mxu0
        %v3516 = vadd.f32 %v3355, %v3515
        %v3517 = vpop.f32.mrb[0].mxu0
        %3518 = vdwg.mxu0
        %3519 = vmatprep.subr.bf16.mxu0 0
        %3520 = vmatpush1.bf16.msra.mxu0 %v3109
        %3521 = vmatprep.subr.bf16.mxu0 0
        %3522 = vmatpush1.bf16.msra.mxu0 %v3110
        %3523 = vmatprep.subr.bf16.mxu0 0
        %3524 = vmatpush1.bf16.msra.mxu0 %v3111
        %3525 = vmatprep.subr.bf16.mxu0 0
        %3526 = vmatpush1.bf16.msra.mxu0 %v3112
        %3527 = vmatprep.subr.bf16.mxu0 0
        %3528 = vmatpush1.bf16.msra.mxu0 0
        %3529 = vmatprep.subr.bf16.mxu0 0
        %3530 = vmatpush1.bf16.msra.mxu0 0
        %3531 = vmatprep.subr.bf16.mxu0 0
        %3532 = vmatpush1.bf16.msra.mxu0 0
        %3533 = vmatprep.subr.bf16.mxu0 0
        %3534 = vmatpush1.bf16.msra.mxu0 0
        %3535 = vmatprep.subr.bf16.mxu0 0
        %3536 = vmatpush1.bf16.msra.mxu0 0
        %3537 = vmatprep.subr.bf16.mxu0 0
        %3538 = vmatpush1.bf16.msra.mxu0 0
        %3539 = vmatprep.subr.bf16.mxu0 0
        %3540 = vmatpush1.bf16.msra.mxu0 0
        %3541 = vmatprep.subr.bf16.mxu0 0
        %3542 = vmatpush1.bf16.msra.mxu0 0
        %3543 = vmatprep.subr.bf16.mxu0 0
        %3544 = vmatpush1.bf16.msra.mxu0 0
        %3545 = vmatprep.subr.bf16.mxu0 0
        %3546 = vmatpush1.bf16.msra.mxu0 0
        %3547 = vmatprep.subr.bf16.mxu0 0
        %3548 = vmatpush1.bf16.msra.mxu0 0
        %3549 = vmatprep.subr.bf16.mxu0 0
        %3550 = vmatpush1.bf16.msra.mxu0 0
        %3551 = vmatprep.mubr.bf16.mxu0 0
        %3552 = vmatmul.mubr.bf16.gmra.mrb[0].mxu0 %v3150
        %v3553 = vpop.f32.mrb[0].mxu0
        %v3554 = vadd.f32 %v3393, %v3553
        %v3555 = vpop.f32.mrb[0].mxu0
        %v3556 = vpop.f32.mrb[0].mxu0
        %v3557 = vadd.f32 %v3396, %v3556
        %v3558 = vpop.f32.mrb[0].mxu0
        %3559 = vmatprep.mubr.bf16.mxu0 0
        %3560 = vmatmul.mubr.bf16.gmra.mrb[0].mxu0 %v3153
        %v3561 = vpop.f32.mrb[0].mxu0
        %v3562 = vadd.f32 %v3401, %v3561
        %v3563 = vpop.f32.mrb[0].mxu0
        %v3564 = vpop.f32.mrb[0].mxu0
        %v3565 = vadd.f32 %v3404, %v3564
        %v3566 = vpop.f32.mrb[0].mxu0
        %3567 = vmatprep.mubr.bf16.mxu0 0
        %3568 = vmatmul.mubr.bf16.gmra.mrb[0].mxu0 %v3156
        %v3569 = vpop.f32.mrb[0].mxu0
        %v3570 = vadd.f32 %v3409, %v3569
        %v3571 = vpop.f32.mrb[0].mxu0
        %v3572 = vpop.f32.mrb[0].mxu0
        %v3573 = vadd.f32 %v3412, %v3572
        %v3574 = vpop.f32.mrb[0].mxu0
        %3575 = vmatprep.mubr.bf16.mxu0 0
        %3576 = vmatmul.mubr.bf16.gmra.mrb[0].mxu0 %v3159
        %v3577 = vpop.f32.mrb[0].mxu0
        %v3578 = vadd.f32 %v3417, %v3577
        %v3579 = vpop.f32.mrb[0].mxu0
        %v3580 = vpop.f32.mrb[0].mxu0
        %v3581 = vadd.f32 %v3420, %v3580
        %v3582 = vpop.f32.mrb[0].mxu0
        %3583 = vmatprep.mubr.bf16.mxu0 0
        %3584 = vmatmul.mubr.bf16.gmra.mrb[0].mxu0 %v3162
        %v3585 = vpop.f32.mrb[0].mxu0
        %v3586 = vadd.f32 %v3425, %v3585
        %v3587 = vpop.f32.mrb[0].mxu0
        %v3588 = vpop.f32.mrb[0].mxu0
        %v3589 = vadd.f32 %v3428, %v3588
        %v3590 = vpop.f32.mrb[0].mxu0
        %3591 = vmatprep.mubr.bf16.mxu0 0
        %3592 = vmatmul.mubr.bf16.gmra.mrb[0].mxu0 %v3165
        %v3593 = vpop.f32.mrb[0].mxu0
        %v3594 = vadd.f32 %v3433, %v3593
        %v3595 = vpop.f32.mrb[0].mxu0
        %v3596 = vpop.f32.mrb[0].mxu0
        %v3597 = vadd.f32 %v3436, %v3596
        %v3598 = vpop.f32.mrb[0].mxu0
        %3599 = vmatprep.mubr.bf16.mxu0 0
        %3600 = vmatmul.mubr.bf16.gmra.mrb[0].mxu0 %v3168
        %v3601 = vpop.f32.mrb[0].mxu0
        %v3602 = vadd.f32 %v3441, %v3601
        %v3603 = vpop.f32.mrb[0].mxu0
        %v3604 = vpop.f32.mrb[0].mxu0
        %v3605 = vadd.f32 %v3444, %v3604
        %v3606 = vpop.f32.mrb[0].mxu0
        %3607 = vmatprep.mubr.bf16.mxu0 0
        %3608 = vmatmul.mubr.bf16.gmra.mrb[0].mxu0 %v3171
        %v3609 = vpop.f32.mrb[0].mxu0
        %v3610 = vadd.f32 %v3449, %v3609
        %v3611 = vpop.f32.mrb[0].mxu0
        %v3612 = vpop.f32.mrb[0].mxu0
        %v3613 = vadd.f32 %v3452, %v3612
        %v3614 = vpop.f32.mrb[0].mxu0
        %3615 = vmatprep.mubr.bf16.mxu0 0
        %3616 = vmatmul.mubr.bf16.gmra.mrb[0].mxu0 %v3174
        %v3617 = vpop.f32.mrb[0].mxu0
        %v3618 = vadd.f32 %v3457, %v3617
        %v3619 = vpop.f32.mrb[0].mxu0
        %v3620 = vpop.f32.mrb[0].mxu0
        %v3621 = vadd.f32 %v3460, %v3620
        %v3622 = vpop.f32.mrb[0].mxu0
        %3623 = vmatprep.mubr.bf16.mxu0 0
        %3624 = vmatmul.mubr.bf16.gmra.mrb[0].mxu0 %v3177
        %v3625 = vpop.f32.mrb[0].mxu0
        %v3626 = vadd.f32 %v3465, %v3625
        %v3627 = vpop.f32.mrb[0].mxu0
        %v3628 = vpop.f32.mrb[0].mxu0
        %v3629 = vadd.f32 %v3468, %v3628
        %v3630 = vpop.f32.mrb[0].mxu0
        %3631 = vmatprep.mubr.bf16.mxu0 0
        %3632 = vmatmul.mubr.bf16.gmra.mrb[0].mxu0 %v3180
        %v3633 = vpop.f32.mrb[0].mxu0
        %v3634 = vadd.f32 %v3473, %v3633
        %v3635 = vpop.f32.mrb[0].mxu0
        %v3636 = vpop.f32.mrb[0].mxu0
        %v3637 = vadd.f32 %v3476, %v3636
        %v3638 = vpop.f32.mrb[0].mxu0
        %3639 = vmatprep.mubr.bf16.mxu0 0
        %3640 = vmatmul.mubr.bf16.gmra.mrb[0].mxu0 %v3183
        %v3641 = vpop.f32.mrb[0].mxu0
        %v3642 = vadd.f32 %v3481, %v3641
        %v3643 = vpop.f32.mrb[0].mxu0
        %v3644 = vpop.f32.mrb[0].mxu0
        %v3645 = vadd.f32 %v3484, %v3644
        %v3646 = vpop.f32.mrb[0].mxu0
        %3647 = vmatprep.mubr.bf16.mxu0 0
        %3648 = vmatmul.mubr.bf16.gmra.mrb[0].mxu0 %v3186
        %v3649 = vpop.f32.mrb[0].mxu0
        %v3650 = vadd.f32 %v3489, %v3649
        %v3651 = vpop.f32.mrb[0].mxu0
        %v3652 = vpop.f32.mrb[0].mxu0
        %v3653 = vadd.f32 %v3492, %v3652
        %v3654 = vpop.f32.mrb[0].mxu0
        %3655 = vmatprep.mubr.bf16.mxu0 0
        %3656 = vmatmul.mubr.bf16.gmra.mrb[0].mxu0 %v3189
        %v3657 = vpop.f32.mrb[0].mxu0
        %v3658 = vadd.f32 %v3497, %v3657
        %v3659 = vpop.f32.mrb[0].mxu0
        %v3660 = vpop.f32.mrb[0].mxu0
        %v3661 = vadd.f32 %v3500, %v3660
        %v3662 = vpop.f32.mrb[0].mxu0
        %3663 = vmatprep.mubr.bf16.mxu0 0
        %3664 = vmatmul.mubr.bf16.gmra.mrb[0].mxu0 %v3192
        %v3665 = vpop.f32.mrb[0].mxu0
        %v3666 = vadd.f32 %v3505, %v3665
        %v3667 = vpop.f32.mrb[0].mxu0
        %v3668 = vpop.f32.mrb[0].mxu0
        %v3669 = vadd.f32 %v3508, %v3668
        %v3670 = vpop.f32.mrb[0].mxu0
        %3671 = vmatprep.mubr.bf16.mxu0 0
        %3672 = vmatmul.mubr.bf16.gmra.mrb[0].mxu0 %v3195
        %v3673 = vpop.f32.mrb[0].mxu0
        %v3674 = vadd.f32 %v3513, %v3673
        %v3675 = vpop.f32.mrb[0].mxu0
        %v3676 = vpop.f32.mrb[0].mxu0
        %v3677 = vadd.f32 %v3516, %v3676
        %v3678 = vpop.f32.mrb[0].mxu0
        %3679 = vdwg.mxu0
        %v3680 = vsel %vm2075, %v3554, %v600
        %v3681 = vsel %vm2075, %v3557, %v604
        %v3682 = vsel %vm2075, %v3562, %v610
        %v3683 = vsel %vm2075, %v3565, %v614
        %v3684 = vsel %vm2075, %v3570, %v620
        %v3685 = vsel %vm2075, %v3573, %v624
        %v3686 = vsel %vm2075, %v3578, %v630
        %v3687 = vsel %vm2075, %v3581, %v634
        %v3688 = vsel %vm2075, %v3586, %v640
        %v3689 = vsel %vm2075, %v3589, %v644
        %v3690 = vsel %vm2075, %v3594, %v650
        %v3691 = vsel %vm2075, %v3597, %v654
        %v3692 = vsel %vm2075, %v3602, %v660
        %v3693 = vsel %vm2075, %v3605, %v664
        %v3694 = vsel %vm2075, %v3610, %v670
        %v3695 = vsel %vm2075, %v3613, %v674
        %v3696 = vsel %vm2075, %v3618, %v680
        %v3697 = vsel %vm2075, %v3621, %v684
        %v3698 = vsel %vm2075, %v3626, %v690
        %v3699 = vsel %vm2075, %v3629, %v694
        %v3700 = vsel %vm2075, %v3634, %v700
        %v3701 = vsel %vm2075, %v3637, %v704
        %v3702 = vsel %vm2075, %v3642, %v710
        %v3703 = vsel %vm2075, %v3645, %v714
        %v3704 = vsel %vm2075, %v3650, %v720
        %v3705 = vsel %vm2075, %v3653, %v724
        %v3706 = vsel %vm2075, %v3658, %v730
        %v3707 = vsel %vm2075, %v3661, %v734
        %v3708 = vsel %vm2075, %v3666, %v740
        %v3709 = vsel %vm2075, %v3669, %v744
        %v3710 = vsel %vm2075, %v3674, %v750
        %v3711 = vsel %vm2075, %v3677, %v754
        %v3712 = vpack.c.bf16 %v3681, %v3680
        %v3713 = vpack.c.bf16 %v606, %v602
        %v3714 = vpack.c.bf16 %v3683, %v3682
        %v3715 = vpack.c.bf16 %v616, %v612
        %v3716 = vpack.c.bf16 %v3685, %v3684
        %v3717 = vpack.c.bf16 %v626, %v622
        %v3718 = vpack.c.bf16 %v3687, %v3686
        %v3719 = vpack.c.bf16 %v636, %v632
        %v3720 = vpack.c.bf16 %v3689, %v3688
        %v3721 = vpack.c.bf16 %v646, %v642
        %v3722 = vpack.c.bf16 %v3691, %v3690
        %v3723 = vpack.c.bf16 %v656, %v652
        %v3724 = vpack.c.bf16 %v3693, %v3692
        %v3725 = vpack.c.bf16 %v666, %v662
        %v3726 = vpack.c.bf16 %v3695, %v3694
        %v3727 = vpack.c.bf16 %v676, %v672
        %v3728 = vpack.c.bf16 %v3697, %v3696
        %v3729 = vpack.c.bf16 %v686, %v682
        %v3730 = vpack.c.bf16 %v3699, %v3698
        %v3731 = vpack.c.bf16 %v696, %v692
        %v3732 = vpack.c.bf16 %v3701, %v3700
        %v3733 = vpack.c.bf16 %v706, %v702
        %v3734 = vpack.c.bf16 %v3703, %v3702
        %v3735 = vpack.c.bf16 %v716, %v712
        %v3736 = vpack.c.bf16 %v3705, %v3704
        %v3737 = vpack.c.bf16 %v726, %v722
        %v3738 = vpack.c.bf16 %v3707, %v3706
        %v3739 = vpack.c.bf16 %v736, %v732
        %v3740 = vpack.c.bf16 %v3709, %v3708
        %v3741 = vpack.c.bf16 %v746, %v742
        %v3742 = vpack.c.bf16 %v3711, %v3710
        %v3743 = vpack.c.bf16 %v756, %v752
        %3744 = vmatprep.subr.bf16.mxu0 %v3713
        %3745 = vmatpush1.bf16.msra.mxu0 %v3712
        %3746 = vmatprep.subr.bf16.mxu0 %v3715
        %3747 = vmatpush1.bf16.msra.mxu0 %v3714
        %3748 = vmatprep.subr.bf16.mxu0 %v3717
        %3749 = vmatpush1.bf16.msra.mxu0 %v3716
        %3750 = vmatprep.subr.bf16.mxu0 %v3719
        %3751 = vmatpush1.bf16.msra.mxu0 %v3718
        %3752 = vmatprep.subr.bf16.mxu0 %v3721
        %3753 = vmatpush1.bf16.msra.mxu0 %v3720
        %3754 = vmatprep.subr.bf16.mxu0 %v3723
        %3755 = vmatpush1.bf16.msra.mxu0 %v3722
        %3756 = vmatprep.subr.bf16.mxu0 %v3725
        %3757 = vmatpush1.bf16.msra.mxu0 %v3724
        %3758 = vmatprep.subr.bf16.mxu0 %v3727
        %3759 = vmatpush1.bf16.msra.mxu0 %v3726
        %3760 = vmatprep.subr.bf16.mxu0 %v3729
        %3761 = vmatpush1.bf16.msra.mxu0 %v3728
        %3762 = vmatprep.subr.bf16.mxu0 %v3731
        %3763 = vmatpush1.bf16.msra.mxu0 %v3730
        %3764 = vmatprep.subr.bf16.mxu0 %v3733
        %3765 = vmatpush1.bf16.msra.mxu0 %v3732
        %3766 = vmatprep.subr.bf16.mxu0 %v3735
        %3767 = vmatpush1.bf16.msra.mxu0 %v3734
        %3768 = vmatprep.subr.bf16.mxu0 %v3737
        %3769 = vmatpush1.bf16.msra.mxu0 %v3736
        %3770 = vmatprep.subr.bf16.mxu0 %v3739
        %3771 = vmatpush1.bf16.msra.mxu0 %v3738
        %3772 = vmatprep.subr.bf16.mxu0 %v3741
        %3773 = vmatpush1.bf16.msra.mxu0 %v3740
        %3774 = vmatprep.subr.bf16.mxu0 %v3743
        %3775 = vmatpush1.bf16.msra.mxu0 %v3742
        %3776 = vmatprep.mubr.bf16.mxu0 998259584
        %3777 = vmatmul.mubr.bf16.gmra.mrb[0].mxu0 998259584
        %v3778 = vpop.f32.mrb[0].mxu0
        %v3779 = vadd.f32 0.0, %v3778
        %v3780 = vpop.f32.mrb[0].mxu0
        %v3781 = vadd.f32 0.0, %v3780
        %v3782 = vpop.f32.mrb[0].mxu0
        %v3783 = vpop.f32.mrb[0].mxu0
        %3784 = vdwg.mxu0
        %v3785 = vld [vmem:[%s4] sm:$0xf]
        %v3786 = vld [vmem:[%s4 + $0x4] sm:$0xf]
        %v3787 = vld [vmem:[%s4 + $0x8] sm:$0xf]
        %v3788 = vld [vmem:[%s4 + $0xc] sm:$0xf]
        %v3789 = vld [vmem:[%s4 + $0x10] sm:$0xf]
        %v3790 = vld [vmem:[%s4 + $0x14] sm:$0xf]
        %v3791 = vld [vmem:[%s4 + $0x18] sm:$0xf]
        %v3792 = vld [vmem:[%s4 + $0x1c] sm:$0xf]
        %v3793 = vld [vmem:[%s4 + $0x20] sm:$0xf]
        %v3794 = vld [vmem:[%s4 + $0x24] sm:$0xf]
        %v3795 = vld [vmem:[%s4 + $0x28] sm:$0xf]
        %v3796 = vld [vmem:[%s4 + $0x2c] sm:$0xf]
        %v3797 = vld [vmem:[%s4 + $0x30] sm:$0xf]
        %v3798 = vld [vmem:[%s4 + $0x34] sm:$0xf]
        %v3799 = vld [vmem:[%s4 + $0x38] sm:$0xf]
        %v3800 = vld [vmem:[%s4 + $0x3c] sm:$0xf]
        %v3801 = vpack.c.bf16 %v3779, %v3779
        %v3802 = vld [vmem:[%s5] sm:$0x1]
        %v3819 = vunpack.c.l.b16 %v3785
        %v3820 = vunpack.c.l.b16 %v3786
        %v3821 = vunpack.c.l.b16 %v3787
        %v3822 = vunpack.c.l.b16 %v3788
        %v3823 = vunpack.c.l.b16 %v3789
        %v3824 = vunpack.c.l.b16 %v3790
        %v3825 = vunpack.c.l.b16 %v3791
        %v3826 = vunpack.c.l.b16 %v3792
        %v3827 = vunpack.c.l.b16 %v3793
        %v3828 = vunpack.c.l.b16 %v3794
        %v3829 = vunpack.c.l.b16 %v3795
        %v3830 = vunpack.c.l.b16 %v3796
        %v3831 = vunpack.c.l.b16 %v3797
        %v3832 = vunpack.c.l.b16 %v3798
        %v3833 = vunpack.c.l.b16 %v3799
        %v3834 = vunpack.c.l.b16 %v3800
        %v3835 = vpack.c.b16 %v3820, %v3819
        %v3836 = vpack.c.b16 %v3822, %v3821
        %v3837 = vpack.c.b16 %v3824, %v3823
        %v3838 = vpack.c.b16 %v3826, %v3825
        %v3839 = vpack.c.b16 %v3828, %v3827
        %v3840 = vpack.c.b16 %v3830, %v3829
        %v3841 = vpack.c.b16 %v3832, %v3831
        %v3842 = vpack.c.b16 %v3834, %v3833
        %3851 = vmatprep.subr.bf16.mxu0 0
        %3852 = vmatpush1.bf16.msra.mxu0 %v3835
        %3853 = vmatprep.subr.bf16.mxu0 0
        %3854 = vmatpush1.bf16.msra.mxu0 %v3836
        %3855 = vmatprep.subr.bf16.mxu0 0
        %3856 = vmatpush1.bf16.msra.mxu0 %v3837
        %3857 = vmatprep.subr.bf16.mxu0 0
        %3858 = vmatpush1.bf16.msra.mxu0 %v3838
        %3859 = vmatprep.subr.bf16.mxu0 0
        %3860 = vmatpush1.bf16.msra.mxu0 %v3839
        %3861 = vmatprep.subr.bf16.mxu0 0
        %3862 = vmatpush1.bf16.msra.mxu0 %v3840
        %3863 = vmatprep.subr.bf16.mxu0 0
        %3864 = vmatpush1.bf16.msra.mxu0 %v3841
        %3865 = vmatprep.subr.bf16.mxu0 0
        %3866 = vmatpush1.bf16.msra.mxu0 %v3842
        %3867 = vmatprep.subr.bf16.mxu0 0
        %3868 = vmatpush1.bf16.msra.mxu0 0
        %3869 = vmatprep.subr.bf16.mxu0 0
        %3870 = vmatpush1.bf16.msra.mxu0 0
        %3871 = vmatprep.subr.bf16.mxu0 0
        %3872 = vmatpush1.bf16.msra.mxu0 0
        %3873 = vmatprep.subr.bf16.mxu0 0
        %3874 = vmatpush1.bf16.msra.mxu0 0
        %3875 = vmatprep.subr.bf16.mxu0 0
        %3876 = vmatpush1.bf16.msra.mxu0 0
        %3877 = vmatprep.subr.bf16.mxu0 0
        %3878 = vmatpush1.bf16.msra.mxu0 0
        %3879 = vmatprep.subr.bf16.mxu0 0
        %3880 = vmatpush1.bf16.msra.mxu0 0
        %3881 = vmatprep.subr.bf16.mxu0 0
        %3882 = vmatpush1.bf16.msra.mxu0 0
        %3883 = vmatprep.mubr.bf16.mxu0 0
        %3884 = vmatmul.mubr.bf16.gmra.mrb[0].mxu0 %v3801
        %v3885 = vpop.f32.mrb[0].mxu0
        %v3886 = vadd.f32 %v3802, %v3885
        %v3887 = vpop.f32.mrb[0].mxu0
        %v3888 = vpop.f32.mrb[0].mxu0
        %v3889 = vpop.f32.mrb[0].mxu0
        %3890 = vdwg.mxu0
        %v3891 = vmax.f32 %v3886, 0.0
        %v3892 = vld [vmem:[%s6] sm:$0xf]
        %v3893 = vpack.c.bf16 %v3891, %v3891
        %v3894 = vld [vmem:[%s7] sm:$0x1]
        %vm3895 = vcmask 64512
        %v3897 = vsel %vm3895, %v3893, 0
        %vm3899 = vcmask 1043456
        %v3901 = vsel %vm3899, %v3892, 0
        %3903 = vmatprep.subr.bf16.mxu0 0
        %3904 = vmatpush1.bf16.msra.mxu0 %v3901
        %3905 = vmatprep.subr.bf16.mxu0 0
        %3906 = vmatpush1.bf16.msra.mxu0 0
        %3907 = vmatprep.subr.bf16.mxu0 0
        %3908 = vmatpush1.bf16.msra.mxu0 0
        %3909 = vmatprep.subr.bf16.mxu0 0
        %3910 = vmatpush1.bf16.msra.mxu0 0
        %3911 = vmatprep.subr.bf16.mxu0 0
        %3912 = vmatpush1.bf16.msra.mxu0 0
        %3913 = vmatprep.subr.bf16.mxu0 0
        %3914 = vmatpush1.bf16.msra.mxu0 0
        %3915 = vmatprep.subr.bf16.mxu0 0
        %3916 = vmatpush1.bf16.msra.mxu0 0
        %3917 = vmatprep.subr.bf16.mxu0 0
        %3918 = vmatpush1.bf16.msra.mxu0 0
        %3919 = vmatprep.subr.bf16.mxu0 0
        %3920 = vmatpush1.bf16.msra.mxu0 0
        %3921 = vmatprep.subr.bf16.mxu0 0
        %3922 = vmatpush1.bf16.msra.mxu0 0
        %3923 = vmatprep.subr.bf16.mxu0 0
        %3924 = vmatpush1.bf16.msra.mxu0 0
        %3925 = vmatprep.subr.bf16.mxu0 0
        %3926 = vmatpush1.bf16.msra.mxu0 0
        %3927 = vmatprep.subr.bf16.mxu0 0
        %3928 = vmatpush1.bf16.msra.mxu0 0
        %3929 = vmatprep.subr.bf16.mxu0 0
        %3930 = vmatpush1.bf16.msra.mxu0 0
        %3931 = vmatprep.subr.bf16.mxu0 0
        %3932 = vmatpush1.bf16.msra.mxu0 0
        %3933 = vmatprep.subr.bf16.mxu0 0
        %3934 = vmatpush1.bf16.msra.mxu0 0
        %3935 = vmatprep.mubr.bf16.mxu0 0
        %3936 = vmatmul.mubr.bf16.gmra.mrb[0].mxu0 %v3897
        %v3937 = vpop.f32.mrb[0].mxu0
        %v3938 = vadd.f32 %v3894, %v3937
        %v3939 = vpop.f32.mrb[0].mxu0
        %v3940 = vpop.f32.mrb[0].mxu0
        %v3941 = vpop.f32.mrb[0].mxu0
        %3942 = vdwg.mxu0
        %v3943 = vxor.u32 %v3938, 2147483648
        %v3944 = vmul.f32 %v3943, 1.442695
        %v3945 = vpow.pop %v3944
        %v3946 = vadd.f32 %v3945, 1.0
        %v3947 = vrcp.pop %v3946
        %v3948 = vmul.f32 1.0, %v3947
        %v3949 = vlaneseq
        %v3950 = vshrl.u32 %v3949, 7
        %v3951 = vsub.s32 0, %v3950
        %v3952 = vrot.slane %v3948, %v3951
        %v3953 = vmul.f32 %v3680, %v3952
        %v3954 = vmul.f32 %v3681, %v3952
        %v3955 = vmul.f32 %v3682, %v3952
        %v3956 = vmul.f32 %v3683, %v3952
        %v3957 = vmul.f32 %v3684, %v3952
        %v3958 = vmul.f32 %v3685, %v3952
        %v3959 = vmul.f32 %v3686, %v3952
        %v3960 = vmul.f32 %v3687, %v3952
        %v3961 = vmul.f32 %v3688, %v3952
        %v3962 = vmul.f32 %v3689, %v3952
        %v3963 = vmul.f32 %v3690, %v3952
        %v3964 = vmul.f32 %v3691, %v3952
        %v3965 = vmul.f32 %v3692, %v3952
        %v3966 = vmul.f32 %v3693, %v3952
        %v3967 = vmul.f32 %v3694, %v3952
        %v3968 = vmul.f32 %v3695, %v3952
        %v3969 = vmul.f32 %v3696, %v3952
        %v3970 = vmul.f32 %v3697, %v3952
        %v3971 = vmul.f32 %v3698, %v3952
        %v3972 = vmul.f32 %v3699, %v3952
        %v3973 = vmul.f32 %v3700, %v3952
        %v3974 = vmul.f32 %v3701, %v3952
        %v3975 = vmul.f32 %v3702, %v3952
        %v3976 = vmul.f32 %v3703, %v3952
        %v3977 = vmul.f32 %v3704, %v3952
        %v3978 = vmul.f32 %v3705, %v3952
        %v3979 = vmul.f32 %v3706, %v3952
        %v3980 = vmul.f32 %v3707, %v3952
        %v3981 = vmul.f32 %v3708, %v3952
        %v3982 = vmul.f32 %v3709, %v3952
        %v3983 = vmul.f32 %v3710, %v3952
        %v3984 = vmul.f32 %v3711, %v3952
        %v3985 = vlaneseq
        %v3986 = vshrl.u32 %v3985, 7
        %v3987 = vsub.s32 0, %v3986
        %v3988 = vrot.slane %v3781, %v3987
        %v3989 = vld [vmem:[%s8] sm:$0xf]
        %v3990 = vld [vmem:[%s8 + $0x4] sm:$0xf]
        %v3991 = vld [vmem:[%s8 + $0x8] sm:$0xf]
        %v3992 = vld [vmem:[%s8 + $0xc] sm:$0xf]
        %v3993 = vld [vmem:[%s9] sm:$0xf]
        %v3994 = vld [vmem:[%s9 + $0x4] sm:$0xf]
        %v3995 = vld [vmem:[%s9 + $0x8] sm:$0xf]
        %v3996 = vld [vmem:[%s9 + $0xc] sm:$0xf]
        %v3997 = vld [vmem:[%s9 + $0x10] sm:$0xf]
        %v3998 = vld [vmem:[%s9 + $0x14] sm:$0xf]
        %v3999 = vld [vmem:[%s9 + $0x18] sm:$0xf]
        %v4000 = vld [vmem:[%s9 + $0x1c] sm:$0xf]
        %v4001 = vld [vmem:[%s9 + $0x20] sm:$0xf]
        %v4002 = vld [vmem:[%s9 + $0x24] sm:$0xf]
        %v4003 = vld [vmem:[%s9 + $0x28] sm:$0xf]
        %v4004 = vld [vmem:[%s9 + $0x2c] sm:$0xf]
        %v4005 = vld [vmem:[%s9 + $0x30] sm:$0xf]
        %v4006 = vld [vmem:[%s9 + $0x34] sm:$0xf]
        %v4007 = vld [vmem:[%s9 + $0x38] sm:$0xf]
        %v4008 = vld [vmem:[%s9 + $0x3c] sm:$0xf]
        %v4009 = vld [vmem:[%s9 + $0x40] sm:$0xf]
        %v4010 = vld [vmem:[%s9 + $0x44] sm:$0xf]
        %v4011 = vld [vmem:[%s9 + $0x48] sm:$0xf]
        %v4012 = vld [vmem:[%s9 + $0x4c] sm:$0xf]
        %v4013 = vpack.c.bf16 %v3954, %v3953
        %v4014 = vpack.c.bf16 %v3988, %v3988
        %v4015 = vpack.c.bf16 %v3956, %v3955
        %v4016 = vpack.c.bf16 %v3958, %v3957
        %v4017 = vpack.c.bf16 %v3960, %v3959
        %v4018 = vpack.c.bf16 %v3962, %v3961
        %v4019 = vpack.c.bf16 %v3964, %v3963
        %v4020 = vpack.c.bf16 %v3966, %v3965
        %v4021 = vpack.c.bf16 %v3968, %v3967
        %v4022 = vpack.c.bf16 %v3970, %v3969
        %v4023 = vpack.c.bf16 %v3972, %v3971
        %v4024 = vpack.c.bf16 %v3974, %v3973
        %v4025 = vpack.c.bf16 %v3976, %v3975
        %v4026 = vpack.c.bf16 %v3978, %v3977
        %v4027 = vpack.c.bf16 %v3980, %v3979
        %v4028 = vpack.c.bf16 %v3982, %v3981
        %v4029 = vpack.c.bf16 %v3984, %v3983
        %v4050 = vunpack.c.l.b16 %v3993
        %v4051 = vunpack.c.l.b16 %v3994
        %v4052 = vunpack.c.l.b16 %v3995
        %v4053 = vunpack.c.l.b16 %v3996
        %v4054 = vunpack.c.l.b16 %v3997
        %v4055 = vunpack.c.l.b16 %v3998
        %v4056 = vunpack.c.l.b16 %v3999
        %v4057 = vunpack.c.l.b16 %v4000
        %v4058 = vunpack.c.l.b16 %v4001
        %v4059 = vunpack.c.l.b16 %v4002
        %v4060 = vunpack.c.l.b16 %v4003
        %v4061 = vunpack.c.l.b16 %v4004
        %v4062 = vunpack.c.l.b16 %v4005
        %v4063 = vunpack.c.l.b16 %v4006
        %v4064 = vunpack.c.l.b16 %v4007
        %v4065 = vunpack.c.l.b16 %v4008
        %v4066 = vunpack.c.l.b16 %v4009
        %v4067 = vunpack.c.l.b16 %v4010
        %v4068 = vunpack.c.l.b16 %v4011
        %v4069 = vunpack.c.l.b16 %v4012
        %v4070 = vpack.c.b16 %v4051, %v4050
        %v4071 = vpack.c.b16 %v4053, %v4052
        %v4072 = vpack.c.b16 %v4055, %v4054
        %v4073 = vpack.c.b16 %v4057, %v4056
        %v4074 = vpack.c.b16 %v4059, %v4058
        %v4075 = vpack.c.b16 %v4061, %v4060
        %v4076 = vpack.c.b16 %v4063, %v4062
        %v4077 = vpack.c.b16 %v4065, %v4064
        %v4078 = vpack.c.b16 %v4067, %v4066
        %v4079 = vpack.c.b16 %v4069, %v4068
        %v4091 = vsel %vm516, %v4014, 0
        %4093 = vmatprep.subr.bf16.mxu0 0
        %4094 = vmatpush1.bf16.msra.mxu0 %v4070
        %4095 = vmatprep.subr.bf16.mxu0 0
        %4096 = vmatpush1.bf16.msra.mxu0 %v4071
        %4097 = vmatprep.subr.bf16.mxu0 0
        %4098 = vmatpush1.bf16.msra.mxu0 %v4072
        %4099 = vmatprep.subr.bf16.mxu0 0
        %4100 = vmatpush1.bf16.msra.mxu0 %v4073
        %4101 = vmatprep.subr.bf16.mxu0 0
        %4102 = vmatpush1.bf16.msra.mxu0 %v4074
        %4103 = vmatprep.subr.bf16.mxu0 0
        %4104 = vmatpush1.bf16.msra.mxu0 %v4075
        %4105 = vmatprep.subr.bf16.mxu0 0
        %4106 = vmatpush1.bf16.msra.mxu0 %v4076
        %4107 = vmatprep.subr.bf16.mxu0 0
        %4108 = vmatpush1.bf16.msra.mxu0 %v4077
        %4109 = vmatprep.subr.bf16.mxu0 0
        %4110 = vmatpush1.bf16.msra.mxu0 %v4078
        %4111 = vmatprep.subr.bf16.mxu0 0
        %4112 = vmatpush1.bf16.msra.mxu0 %v4079
        %4113 = vmatprep.subr.bf16.mxu0 0
        %4114 = vmatpush1.bf16.msra.mxu0 0
        %4115 = vmatprep.subr.bf16.mxu0 0
        %4116 = vmatpush1.bf16.msra.mxu0 0
        %4117 = vmatprep.subr.bf16.mxu0 0
        %4118 = vmatpush1.bf16.msra.mxu0 0
        %4119 = vmatprep.subr.bf16.mxu0 0
        %4120 = vmatpush1.bf16.msra.mxu0 0
        %4121 = vmatprep.subr.bf16.mxu0 0
        %4122 = vmatpush1.bf16.msra.mxu0 0
        %4123 = vmatprep.subr.bf16.mxu0 0
        %4124 = vmatpush1.bf16.msra.mxu0 0
        %4125 = vmatprep.mubr.bf16.mxu0 %v4091
        %4126 = vmatmul.mubr.bf16.gmra.mrb[0].mxu0 %v4013
        %v4127 = vpop.f32.mrb[0].mxu0
        %v4128 = vadd.f32 0.0, %v4127
        %v4129 = vpop.f32.mrb[0].mxu0
        %v4130 = vpop.f32.mrb[0].mxu0
        %v4131 = vadd.f32 0.0, %v4130
        %v4132 = vpop.f32.mrb[0].mxu0
        %4133 = vmatprep.mubr.bf16.mxu0 %v4091
        %4134 = vmatmul.mubr.bf16.gmra.mrb[0].mxu0 %v4015
        %v4135 = vpop.f32.mrb[0].mxu0
        %v4136 = vadd.f32 0.0, %v4135
        %v4137 = vpop.f32.mrb[0].mxu0
        %v4138 = vpop.f32.mrb[0].mxu0
        %v4139 = vadd.f32 0.0, %v4138
        %v4140 = vpop.f32.mrb[0].mxu0
        %4141 = vmatprep.mubr.bf16.mxu0 %v4091
        %4142 = vmatmul.mubr.bf16.gmra.mrb[0].mxu0 %v4016
        %v4143 = vpop.f32.mrb[0].mxu0
        %v4144 = vadd.f32 0.0, %v4143
        %v4145 = vpop.f32.mrb[0].mxu0
        %v4146 = vpop.f32.mrb[0].mxu0
        %v4147 = vadd.f32 0.0, %v4146
        %v4148 = vpop.f32.mrb[0].mxu0
        %4149 = vmatprep.mubr.bf16.mxu0 %v4091
        %4150 = vmatmul.mubr.bf16.gmra.mrb[0].mxu0 %v4017
        %v4151 = vpop.f32.mrb[0].mxu0
        %v4152 = vadd.f32 0.0, %v4151
        %v4153 = vpop.f32.mrb[0].mxu0
        %v4154 = vpop.f32.mrb[0].mxu0
        %v4155 = vadd.f32 0.0, %v4154
        %v4156 = vpop.f32.mrb[0].mxu0
        %4157 = vmatprep.mubr.bf16.mxu0 %v4091
        %4158 = vmatmul.mubr.bf16.gmra.mrb[0].mxu0 %v4018
        %v4159 = vpop.f32.mrb[0].mxu0
        %v4160 = vadd.f32 0.0, %v4159
        %v4161 = vpop.f32.mrb[0].mxu0
        %v4162 = vpop.f32.mrb[0].mxu0
        %v4163 = vadd.f32 0.0, %v4162
        %v4164 = vpop.f32.mrb[0].mxu0
        %4165 = vmatprep.mubr.bf16.mxu0 %v4091
        %4166 = vmatmul.mubr.bf16.gmra.mrb[0].mxu0 %v4019
        %v4167 = vpop.f32.mrb[0].mxu0
        %v4168 = vadd.f32 0.0, %v4167
        %v4169 = vpop.f32.mrb[0].mxu0
        %v4170 = vpop.f32.mrb[0].mxu0
        %v4171 = vadd.f32 0.0, %v4170
        %v4172 = vpop.f32.mrb[0].mxu0
        %4173 = vmatprep.mubr.bf16.mxu0 %v4091
        %4174 = vmatmul.mubr.bf16.gmra.mrb[0].mxu0 %v4020
        %v4175 = vpop.f32.mrb[0].mxu0
        %v4176 = vadd.f32 0.0, %v4175
        %v4177 = vpop.f32.mrb[0].mxu0
        %v4178 = vpop.f32.mrb[0].mxu0
        %v4179 = vadd.f32 0.0, %v4178
        %v4180 = vpop.f32.mrb[0].mxu0
        %4181 = vmatprep.mubr.bf16.mxu0 %v4091
        %4182 = vmatmul.mubr.bf16.gmra.mrb[0].mxu0 %v4021
        %v4183 = vpop.f32.mrb[0].mxu0
        %v4184 = vadd.f32 0.0, %v4183
        %v4185 = vpop.f32.mrb[0].mxu0
        %v4186 = vpop.f32.mrb[0].mxu0
        %v4187 = vadd.f32 0.0, %v4186
        %v4188 = vpop.f32.mrb[0].mxu0
        %4189 = vmatprep.mubr.bf16.mxu0 %v4091
        %4190 = vmatmul.mubr.bf16.gmra.mrb[0].mxu0 %v4022
        %v4191 = vpop.f32.mrb[0].mxu0
        %v4192 = vadd.f32 0.0, %v4191
        %v4193 = vpop.f32.mrb[0].mxu0
        %v4194 = vpop.f32.mrb[0].mxu0
        %v4195 = vadd.f32 0.0, %v4194
        %v4196 = vpop.f32.mrb[0].mxu0
        %4197 = vmatprep.mubr.bf16.mxu0 %v4091
        %4198 = vmatmul.mubr.bf16.gmra.mrb[0].mxu0 %v4023
        %v4199 = vpop.f32.mrb[0].mxu0
        %v4200 = vadd.f32 0.0, %v4199
        %v4201 = vpop.f32.mrb[0].mxu0
        %v4202 = vpop.f32.mrb[0].mxu0
        %v4203 = vadd.f32 0.0, %v4202
        %v4204 = vpop.f32.mrb[0].mxu0
        %4205 = vmatprep.mubr.bf16.mxu0 %v4091
        %4206 = vmatmul.mubr.bf16.gmra.mrb[0].mxu0 %v4024
        %v4207 = vpop.f32.mrb[0].mxu0
        %v4208 = vadd.f32 0.0, %v4207
        %v4209 = vpop.f32.mrb[0].mxu0
        %v4210 = vpop.f32.mrb[0].mxu0
        %v4211 = vadd.f32 0.0, %v4210
        %v4212 = vpop.f32.mrb[0].mxu0
        %4213 = vmatprep.mubr.bf16.mxu0 %v4091
        %4214 = vmatmul.mubr.bf16.gmra.mrb[0].mxu0 %v4025
        %v4215 = vpop.f32.mrb[0].mxu0
        %v4216 = vadd.f32 0.0, %v4215
        %v4217 = vpop.f32.mrb[0].mxu0
        %v4218 = vpop.f32.mrb[0].mxu0
        %v4219 = vadd.f32 0.0, %v4218
        %v4220 = vpop.f32.mrb[0].mxu0
        %4221 = vmatprep.mubr.bf16.mxu0 %v4091
        %4222 = vmatmul.mubr.bf16.gmra.mrb[0].mxu0 %v4026
        %v4223 = vpop.f32.mrb[0].mxu0
        %v4224 = vadd.f32 0.0, %v4223
        %v4225 = vpop.f32.mrb[0].mxu0
        %v4226 = vpop.f32.mrb[0].mxu0
        %v4227 = vadd.f32 0.0, %v4226
        %v4228 = vpop.f32.mrb[0].mxu0
        %4229 = vmatprep.mubr.bf16.mxu0 %v4091
        %4230 = vmatmul.mubr.bf16.gmra.mrb[0].mxu0 %v4027
        %v4231 = vpop.f32.mrb[0].mxu0
        %v4232 = vadd.f32 0.0, %v4231
        %v4233 = vpop.f32.mrb[0].mxu0
        %v4234 = vpop.f32.mrb[0].mxu0
        %v4235 = vadd.f32 0.0, %v4234
        %v4236 = vpop.f32.mrb[0].mxu0
        %4237 = vmatprep.mubr.bf16.mxu0 %v4091
        %4238 = vmatmul.mubr.bf16.gmra.mrb[0].mxu0 %v4028
        %v4239 = vpop.f32.mrb[0].mxu0
        %v4240 = vadd.f32 0.0, %v4239
        %v4241 = vpop.f32.mrb[0].mxu0
        %v4242 = vpop.f32.mrb[0].mxu0
        %v4243 = vadd.f32 0.0, %v4242
        %v4244 = vpop.f32.mrb[0].mxu0
        %4245 = vmatprep.mubr.bf16.mxu0 %v4091
        %4246 = vmatmul.mubr.bf16.gmra.mrb[0].mxu0 %v4029
        %v4247 = vpop.f32.mrb[0].mxu0
        %v4248 = vadd.f32 0.0, %v4247
        %v4249 = vpop.f32.mrb[0].mxu0
        %v4250 = vpop.f32.mrb[0].mxu0
        %v4251 = vadd.f32 0.0, %v4250
        %v4252 = vpop.f32.mrb[0].mxu0
        %4253 = vdwg.mxu0
        %v4258 = vunpack.c.l.b16 %v3989
        %v4259 = vunpack.c.l.b16 %v3990
        %v4260 = vunpack.c.l.b16 %v3991
        %v4261 = vunpack.c.l.b16 %v3992
        %v4262 = vpack.c.b16 %v4259, %v4258
        %v4263 = vpack.c.b16 %v4261, %v4260
        %4266 = vmatprep.subr.bf16.mxu0 0
        %4267 = vmatpush1.bf16.msra.mxu0 %v4262
        %4268 = vmatprep.subr.bf16.mxu0 0
        %4269 = vmatpush1.bf16.msra.mxu0 %v4263
        %4270 = vmatprep.subr.bf16.mxu0 0
        %4271 = vmatpush1.bf16.msra.mxu0 0
        %4272 = vmatprep.subr.bf16.mxu0 0
        %4273 = vmatpush1.bf16.msra.mxu0 0
        %4274 = vmatprep.subr.bf16.mxu0 0
        %4275 = vmatpush1.bf16.msra.mxu0 0
        %4276 = vmatprep.subr.bf16.mxu0 0
        %4277 = vmatpush1.bf16.msra.mxu0 0
        %4278 = vmatprep.subr.bf16.mxu0 0
        %4279 = vmatpush1.bf16.msra.mxu0 0
        %4280 = vmatprep.subr.bf16.mxu0 0
        %4281 = vmatpush1.bf16.msra.mxu0 0
        %4282 = vmatprep.subr.bf16.mxu0 0
        %4283 = vmatpush1.bf16.msra.mxu0 0
        %4284 = vmatprep.subr.bf16.mxu0 0
        %4285 = vmatpush1.bf16.msra.mxu0 0
        %4286 = vmatprep.subr.bf16.mxu0 0
        %4287 = vmatpush1.bf16.msra.mxu0 0
        %4288 = vmatprep.subr.bf16.mxu0 0
        %4289 = vmatpush1.bf16.msra.mxu0 0
        %4290 = vmatprep.subr.bf16.mxu0 0
        %4291 = vmatpush1.bf16.msra.mxu0 0
        %4292 = vmatprep.subr.bf16.mxu0 0
        %4293 = vmatpush1.bf16.msra.mxu0 0
        %4294 = vmatprep.subr.bf16.mxu0 0
        %4295 = vmatpush1.bf16.msra.mxu0 0
        %4296 = vmatprep.subr.bf16.mxu0 0
        %4297 = vmatpush1.bf16.msra.mxu0 0
        %4298 = vmatprep.mubr.bf16.mxu0 0
        %4299 = vmatmul.mubr.bf16.gmra.mrb[0].mxu0 %v518
        %v4300 = vpop.f32.mrb[0].mxu0
        %v4301 = vadd.f32 %v4128, %v4300
        %v4302 = vpop.f32.mrb[0].mxu0
        %v4303 = vpop.f32.mrb[0].mxu0
        %v4304 = vadd.f32 %v4131, %v4303
        %v4305 = vpop.f32.mrb[0].mxu0
        %4306 = vmatprep.mubr.bf16.mxu0 0
        %4307 = vmatmul.mubr.bf16.gmra.mrb[0].mxu0 %v521
        %v4308 = vpop.f32.mrb[0].mxu0
        %v4309 = vadd.f32 %v4136, %v4308
        %v4310 = vpop.f32.mrb[0].mxu0
        %v4311 = vpop.f32.mrb[0].mxu0
        %v4312 = vadd.f32 %v4139, %v4311
        %v4313 = vpop.f32.mrb[0].mxu0
        %4314 = vmatprep.mubr.bf16.mxu0 0
        %4315 = vmatmul.mubr.bf16.gmra.mrb[0].mxu0 %v524
        %v4316 = vpop.f32.mrb[0].mxu0
        %v4317 = vadd.f32 %v4144, %v4316
        %v4318 = vpop.f32.mrb[0].mxu0
        %v4319 = vpop.f32.mrb[0].mxu0
        %v4320 = vadd.f32 %v4147, %v4319
        %v4321 = vpop.f32.mrb[0].mxu0
        %4322 = vmatprep.mubr.bf16.mxu0 0
        %4323 = vmatmul.mubr.bf16.gmra.mrb[0].mxu0 %v527
        %v4324 = vpop.f32.mrb[0].mxu0
        %v4325 = vadd.f32 %v4152, %v4324
        %v4326 = vpop.f32.mrb[0].mxu0
        %v4327 = vpop.f32.mrb[0].mxu0
        %v4328 = vadd.f32 %v4155, %v4327
        %v4329 = vpop.f32.mrb[0].mxu0
        %4330 = vmatprep.mubr.bf16.mxu0 0
        %4331 = vmatmul.mubr.bf16.gmra.mrb[0].mxu0 %v530
        %v4332 = vpop.f32.mrb[0].mxu0
        %v4333 = vadd.f32 %v4160, %v4332
        %v4334 = vpop.f32.mrb[0].mxu0
        %v4335 = vpop.f32.mrb[0].mxu0
        %v4336 = vadd.f32 %v4163, %v4335
        %v4337 = vpop.f32.mrb[0].mxu0
        %4338 = vmatprep.mubr.bf16.mxu0 0
        %4339 = vmatmul.mubr.bf16.gmra.mrb[0].mxu0 %v533
        %v4340 = vpop.f32.mrb[0].mxu0
        %v4341 = vadd.f32 %v4168, %v4340
        %v4342 = vpop.f32.mrb[0].mxu0
        %v4343 = vpop.f32.mrb[0].mxu0
        %v4344 = vadd.f32 %v4171, %v4343
        %v4345 = vpop.f32.mrb[0].mxu0
        %4346 = vmatprep.mubr.bf16.mxu0 0
        %4347 = vmatmul.mubr.bf16.gmra.mrb[0].mxu0 %v536
        %v4348 = vpop.f32.mrb[0].mxu0
        %v4349 = vadd.f32 %v4176, %v4348
        %v4350 = vpop.f32.mrb[0].mxu0
        %v4351 = vpop.f32.mrb[0].mxu0
        %v4352 = vadd.f32 %v4179, %v4351
        %v4353 = vpop.f32.mrb[0].mxu0
        %4354 = vmatprep.mubr.bf16.mxu0 0
        %4355 = vmatmul.mubr.bf16.gmra.mrb[0].mxu0 %v539
        %v4356 = vpop.f32.mrb[0].mxu0
        %v4357 = vadd.f32 %v4184, %v4356
        %v4358 = vpop.f32.mrb[0].mxu0
        %v4359 = vpop.f32.mrb[0].mxu0
        %v4360 = vadd.f32 %v4187, %v4359
        %v4361 = vpop.f32.mrb[0].mxu0
        %4362 = vmatprep.mubr.bf16.mxu0 0
        %4363 = vmatmul.mubr.bf16.gmra.mrb[0].mxu0 %v542
        %v4364 = vpop.f32.mrb[0].mxu0
        %v4365 = vadd.f32 %v4192, %v4364
        %v4366 = vpop.f32.mrb[0].mxu0
        %v4367 = vpop.f32.mrb[0].mxu0
        %v4368 = vadd.f32 %v4195, %v4367
        %v4369 = vpop.f32.mrb[0].mxu0
        %4370 = vmatprep.mubr.bf16.mxu0 0
        %4371 = vmatmul.mubr.bf16.gmra.mrb[0].mxu0 %v545
        %v4372 = vpop.f32.mrb[0].mxu0
        %v4373 = vadd.f32 %v4200, %v4372
        %v4374 = vpop.f32.mrb[0].mxu0
        %v4375 = vpop.f32.mrb[0].mxu0
        %v4376 = vadd.f32 %v4203, %v4375
        %v4377 = vpop.f32.mrb[0].mxu0
        %4378 = vmatprep.mubr.bf16.mxu0 0
        %4379 = vmatmul.mubr.bf16.gmra.mrb[0].mxu0 %v548
        %v4380 = vpop.f32.mrb[0].mxu0
        %v4381 = vadd.f32 %v4208, %v4380
        %v4382 = vpop.f32.mrb[0].mxu0
        %v4383 = vpop.f32.mrb[0].mxu0
        %v4384 = vadd.f32 %v4211, %v4383
        %v4385 = vpop.f32.mrb[0].mxu0
        %4386 = vmatprep.mubr.bf16.mxu0 0
        %4387 = vmatmul.mubr.bf16.gmra.mrb[0].mxu0 %v551
        %v4388 = vpop.f32.mrb[0].mxu0
        %v4389 = vadd.f32 %v4216, %v4388
        %v4390 = vpop.f32.mrb[0].mxu0
        %v4391 = vpop.f32.mrb[0].mxu0
        %v4392 = vadd.f32 %v4219, %v4391
        %v4393 = vpop.f32.mrb[0].mxu0
        %4394 = vmatprep.mubr.bf16.mxu0 0
        %4395 = vmatmul.mubr.bf16.gmra.mrb[0].mxu0 %v554
        %v4396 = vpop.f32.mrb[0].mxu0
        %v4397 = vadd.f32 %v4224, %v4396
        %v4398 = vpop.f32.mrb[0].mxu0
        %v4399 = vpop.f32.mrb[0].mxu0
        %v4400 = vadd.f32 %v4227, %v4399
        %v4401 = vpop.f32.mrb[0].mxu0
        %4402 = vmatprep.mubr.bf16.mxu0 0
        %4403 = vmatmul.mubr.bf16.gmra.mrb[0].mxu0 %v557
        %v4404 = vpop.f32.mrb[0].mxu0
        %v4405 = vadd.f32 %v4232, %v4404
        %v4406 = vpop.f32.mrb[0].mxu0
        %v4407 = vpop.f32.mrb[0].mxu0
        %v4408 = vadd.f32 %v4235, %v4407
        %v4409 = vpop.f32.mrb[0].mxu0
        %4410 = vmatprep.mubr.bf16.mxu0 0
        %4411 = vmatmul.mubr.bf16.gmra.mrb[0].mxu0 %v560
        %v4412 = vpop.f32.mrb[0].mxu0
        %v4413 = vadd.f32 %v4240, %v4412
        %v4414 = vpop.f32.mrb[0].mxu0
        %v4415 = vpop.f32.mrb[0].mxu0
        %v4416 = vadd.f32 %v4243, %v4415
        %v4417 = vpop.f32.mrb[0].mxu0
        %4418 = vmatprep.mubr.bf16.mxu0 0
        %4419 = vmatmul.mubr.bf16.gmra.mrb[0].mxu0 %v563
        %v4420 = vpop.f32.mrb[0].mxu0
        %v4421 = vadd.f32 %v4248, %v4420
        %v4422 = vpop.f32.mrb[0].mxu0
        %v4423 = vpop.f32.mrb[0].mxu0
        %v4424 = vadd.f32 %v4251, %v4423
        %v4425 = vpop.f32.mrb[0].mxu0
        %4426 = vdwg.mxu0
        %v4427 = vld [vmem:[%s10] sm:$0xff]
        %v4428 = vld [vmem:[%s10 + $0x8] sm:$0xff]
        %v4429 = vld [vmem:[%s10 + $0x10] sm:$0xff]
        %v4430 = vld [vmem:[%s10 + $0x18] sm:$0xff]
        %v4431 = vpack.c.bf16 %v4304, %v4301
        %v4432 = vpack.c.bf16 %v4312, %v4309
        %v4433 = vpack.c.bf16 %v4320, %v4317
        %v4434 = vpack.c.bf16 %v4328, %v4325
        %v4435 = vpack.c.bf16 %v4336, %v4333
        %v4436 = vpack.c.bf16 %v4344, %v4341
        %v4437 = vpack.c.bf16 %v4352, %v4349
        %v4438 = vpack.c.bf16 %v4360, %v4357
        %v4439 = vpack.c.bf16 %v4368, %v4365
        %v4440 = vpack.c.bf16 %v4376, %v4373
        %v4441 = vpack.c.bf16 %v4384, %v4381
        %v4442 = vpack.c.bf16 %v4392, %v4389
        %v4443 = vpack.c.bf16 %v4400, %v4397
        %v4444 = vpack.c.bf16 %v4408, %v4405
        %v4445 = vpack.c.bf16 %v4416, %v4413
        %v4446 = vpack.c.bf16 %v4424, %v4421
        %v4447 = vld [vmem:[%s11] sm:$0x3]
        %v4449 = vlaneseq
        %v4450 = vshrl.u32 %v4449, 7
        %v4451 = vsub.s32 0, %v4450
        %v4452 = vrot.slane %v4447, %v4451
        %v4453 = vlaneseq
        %v4454 = vshrl.u32 %v4453, 7
        %v4455 = vsub.s32 1, %v4454
        %v4456 = vrot.slane %v4447, %v4455
        %v4463 = vunpack.c.l.b16 %v4427
        %v4464 = vunpack.c.h.b16 %v4427
        %v4465 = vunpack.c.l.b16 %v4428
        %v4466 = vunpack.c.h.b16 %v4428
        %v4467 = vunpack.c.l.b16 %v4429
        %v4468 = vunpack.c.h.b16 %v4429
        %v4469 = vunpack.c.l.b16 %v4430
        %v4470 = vunpack.c.h.b16 %v4430
        %v4471 = vpack.c.b16 %v4465, %v4463
        %v4472 = vpack.c.b16 %v4466, %v4464
        %v4473 = vpack.c.b16 %v4469, %v4467
        %v4474 = vpack.c.b16 %v4470, %v4468
        %v4480 = vsel %vm516, %v4431, 0
        %v4483 = vsel %vm516, %v4432, 0
        %v4486 = vsel %vm516, %v4433, 0
        %v4489 = vsel %vm516, %v4434, 0
        %v4492 = vsel %vm516, %v4435, 0
        %v4495 = vsel %vm516, %v4436, 0
        %v4498 = vsel %vm516, %v4437, 0
        %v4501 = vsel %vm516, %v4438, 0
        %v4504 = vsel %vm516, %v4439, 0
        %v4507 = vsel %vm516, %v4440, 0
        %v4510 = vsel %vm516, %v4441, 0
        %v4513 = vsel %vm516, %v4442, 0
        %v4516 = vsel %vm516, %v4443, 0
        %v4519 = vsel %vm516, %v4444, 0
        %v4522 = vsel %vm516, %v4445, 0
        %v4525 = vsel %vm516, %v4446, 0
        %4527 = vmatprep.subr.bf16.mxu0 %v4472
        %4528 = vmatpush1.bf16.msra.mxu0 %v4471
        %4529 = vmatprep.subr.bf16.mxu0 %v4474
        %4530 = vmatpush1.bf16.msra.mxu0 %v4473
        %4531 = vmatprep.subr.bf16.mxu0 0
        %4532 = vmatpush1.bf16.msra.mxu0 0
        %4533 = vmatprep.subr.bf16.mxu0 0
        %4534 = vmatpush1.bf16.msra.mxu0 0
        %4535 = vmatprep.subr.bf16.mxu0 0
        %4536 = vmatpush1.bf16.msra.mxu0 0
        %4537 = vmatprep.subr.bf16.mxu0 0
        %4538 = vmatpush1.bf16.msra.mxu0 0
        %4539 = vmatprep.subr.bf16.mxu0 0
        %4540 = vmatpush1.bf16.msra.mxu0 0
        %4541 = vmatprep.subr.bf16.mxu0 0
        %4542 = vmatpush1.bf16.msra.mxu0 0
        %4543 = vmatprep.subr.bf16.mxu0 0
        %4544 = vmatpush1.bf16.msra.mxu0 0
        %4545 = vmatprep.subr.bf16.mxu0 0
        %4546 = vmatpush1.bf16.msra.mxu0 0
        %4547 = vmatprep.subr.bf16.mxu0 0
        %4548 = vmatpush1.bf16.msra.mxu0 0
        %4549 = vmatprep.subr.bf16.mxu0 0
        %4550 = vmatpush1.bf16.msra.mxu0 0
        %4551 = vmatprep.subr.bf16.mxu0 0
        %4552 = vmatpush1.bf16.msra.mxu0 0
        %4553 = vmatprep.subr.bf16.mxu0 0
        %4554 = vmatpush1.bf16.msra.mxu0 0
        %4555 = vmatprep.subr.bf16.mxu0 0
        %4556 = vmatpush1.bf16.msra.mxu0 0
        %4557 = vmatprep.subr.bf16.mxu0 0
        %4558 = vmatpush1.bf16.msra.mxu0 0
        %4559 = vmatprep.mubr.bf16.mxu0 0
        %4560 = vmatmul.mubr.bf16.gmra.mrb[0].mxu0 %v4480
        %v4561 = vpop.f32.mrb[0].mxu0
        %v4562 = vadd.f32 %v4452, %v4561
        %v4563 = vpop.f32.mrb[0].mxu0
        %v4564 = vadd.f32 %v4456, %v4563
        %v4565 = vpop.f32.mrb[0].mxu0
        %v4566 = vadd.f32 %v4452, %v4565
        %v4567 = vpop.f32.mrb[0].mxu0
        %v4568 = vadd.f32 %v4456, %v4567
        %4569 = vmatprep.mubr.bf16.mxu0 0
        %4570 = vmatmul.mubr.bf16.gmra.mrb[0].mxu0 %v4483
        %v4571 = vpop.f32.mrb[0].mxu0
        %v4572 = vadd.f32 %v4452, %v4571
        %v4573 = vpop.f32.mrb[0].mxu0
        %v4574 = vadd.f32 %v4456, %v4573
        %v4575 = vpop.f32.mrb[0].mxu0
        %v4576 = vadd.f32 %v4452, %v4575
        %v4577 = vpop.f32.mrb[0].mxu0
        %v4578 = vadd.f32 %v4456, %v4577
        %4579 = vmatprep.mubr.bf16.mxu0 0
        %4580 = vmatmul.mubr.bf16.gmra.mrb[0].mxu0 %v4486
        %v4581 = vpop.f32.mrb[0].mxu0
        %v4582 = vadd.f32 %v4452, %v4581
        %v4583 = vpop.f32.mrb[0].mxu0
        %v4584 = vadd.f32 %v4456, %v4583
        %v4585 = vpop.f32.mrb[0].mxu0
        %v4586 = vadd.f32 %v4452, %v4585
        %v4587 = vpop.f32.mrb[0].mxu0
        %v4588 = vadd.f32 %v4456, %v4587
        %4589 = vmatprep.mubr.bf16.mxu0 0
        %4590 = vmatmul.mubr.bf16.gmra.mrb[0].mxu0 %v4489
        %v4591 = vpop.f32.mrb[0].mxu0
        %v4592 = vadd.f32 %v4452, %v4591
        %v4593 = vpop.f32.mrb[0].mxu0
        %v4594 = vadd.f32 %v4456, %v4593
        %v4595 = vpop.f32.mrb[0].mxu0
        %v4596 = vadd.f32 %v4452, %v4595
        %v4597 = vpop.f32.mrb[0].mxu0
        %v4598 = vadd.f32 %v4456, %v4597
        %4599 = vmatprep.mubr.bf16.mxu0 0
        %4600 = vmatmul.mubr.bf16.gmra.mrb[0].mxu0 %v4492
        %v4601 = vpop.f32.mrb[0].mxu0
        %v4602 = vadd.f32 %v4452, %v4601
        %v4603 = vpop.f32.mrb[0].mxu0
        %v4604 = vadd.f32 %v4456, %v4603
        %v4605 = vpop.f32.mrb[0].mxu0
        %v4606 = vadd.f32 %v4452, %v4605
        %v4607 = vpop.f32.mrb[0].mxu0
        %v4608 = vadd.f32 %v4456, %v4607
        %4609 = vmatprep.mubr.bf16.mxu0 0
        %4610 = vmatmul.mubr.bf16.gmra.mrb[0].mxu0 %v4495
        %v4611 = vpop.f32.mrb[0].mxu0
        %v4612 = vadd.f32 %v4452, %v4611
        %v4613 = vpop.f32.mrb[0].mxu0
        %v4614 = vadd.f32 %v4456, %v4613
        %v4615 = vpop.f32.mrb[0].mxu0
        %v4616 = vadd.f32 %v4452, %v4615
        %v4617 = vpop.f32.mrb[0].mxu0
        %v4618 = vadd.f32 %v4456, %v4617
        %4619 = vmatprep.mubr.bf16.mxu0 0
        %4620 = vmatmul.mubr.bf16.gmra.mrb[0].mxu0 %v4498
        %v4621 = vpop.f32.mrb[0].mxu0
        %v4622 = vadd.f32 %v4452, %v4621
        %v4623 = vpop.f32.mrb[0].mxu0
        %v4624 = vadd.f32 %v4456, %v4623
        %v4625 = vpop.f32.mrb[0].mxu0
        %v4626 = vadd.f32 %v4452, %v4625
        %v4627 = vpop.f32.mrb[0].mxu0
        %v4628 = vadd.f32 %v4456, %v4627
        %4629 = vmatprep.mubr.bf16.mxu0 0
        %4630 = vmatmul.mubr.bf16.gmra.mrb[0].mxu0 %v4501
        %v4631 = vpop.f32.mrb[0].mxu0
        %v4632 = vadd.f32 %v4452, %v4631
        %v4633 = vpop.f32.mrb[0].mxu0
        %v4634 = vadd.f32 %v4456, %v4633
        %v4635 = vpop.f32.mrb[0].mxu0
        %v4636 = vadd.f32 %v4452, %v4635
        %v4637 = vpop.f32.mrb[0].mxu0
        %v4638 = vadd.f32 %v4456, %v4637
        %4639 = vmatprep.mubr.bf16.mxu0 0
        %4640 = vmatmul.mubr.bf16.gmra.mrb[0].mxu0 %v4504
        %v4641 = vpop.f32.mrb[0].mxu0
        %v4642 = vadd.f32 %v4452, %v4641
        %v4643 = vpop.f32.mrb[0].mxu0
        %v4644 = vadd.f32 %v4456, %v4643
        %v4645 = vpop.f32.mrb[0].mxu0
        %v4646 = vadd.f32 %v4452, %v4645
        %v4647 = vpop.f32.mrb[0].mxu0
        %v4648 = vadd.f32 %v4456, %v4647
        %4649 = vmatprep.mubr.bf16.mxu0 0
        %4650 = vmatmul.mubr.bf16.gmra.mrb[0].mxu0 %v4507
        %v4651 = vpop.f32.mrb[0].mxu0
        %v4652 = vadd.f32 %v4452, %v4651
        %v4653 = vpop.f32.mrb[0].mxu0
        %v4654 = vadd.f32 %v4456, %v4653
        %v4655 = vpop.f32.mrb[0].mxu0
        %v4656 = vadd.f32 %v4452, %v4655
        %v4657 = vpop.f32.mrb[0].mxu0
        %v4658 = vadd.f32 %v4456, %v4657
        %4659 = vmatprep.mubr.bf16.mxu0 0
        %4660 = vmatmul.mubr.bf16.gmra.mrb[0].mxu0 %v4510
        %v4661 = vpop.f32.mrb[0].mxu0
        %v4662 = vadd.f32 %v4452, %v4661
        %v4663 = vpop.f32.mrb[0].mxu0
        %v4664 = vadd.f32 %v4456, %v4663
        %v4665 = vpop.f32.mrb[0].mxu0
        %v4666 = vadd.f32 %v4452, %v4665
        %v4667 = vpop.f32.mrb[0].mxu0
        %v4668 = vadd.f32 %v4456, %v4667
        %4669 = vmatprep.mubr.bf16.mxu0 0
        %4670 = vmatmul.mubr.bf16.gmra.mrb[0].mxu0 %v4513
        %v4671 = vpop.f32.mrb[0].mxu0
        %v4672 = vadd.f32 %v4452, %v4671
        %v4673 = vpop.f32.mrb[0].mxu0
        %v4674 = vadd.f32 %v4456, %v4673
        %v4675 = vpop.f32.mrb[0].mxu0
        %v4676 = vadd.f32 %v4452, %v4675
        %v4677 = vpop.f32.mrb[0].mxu0
        %v4678 = vadd.f32 %v4456, %v4677
        %4679 = vmatprep.mubr.bf16.mxu0 0
        %4680 = vmatmul.mubr.bf16.gmra.mrb[0].mxu0 %v4516
        %v4681 = vpop.f32.mrb[0].mxu0
        %v4682 = vadd.f32 %v4452, %v4681
        %v4683 = vpop.f32.mrb[0].mxu0
        %v4684 = vadd.f32 %v4456, %v4683
        %v4685 = vpop.f32.mrb[0].mxu0
        %v4686 = vadd.f32 %v4452, %v4685
        %v4687 = vpop.f32.mrb[0].mxu0
        %v4688 = vadd.f32 %v4456, %v4687
        %4689 = vmatprep.mubr.bf16.mxu0 0
        %4690 = vmatmul.mubr.bf16.gmra.mrb[0].mxu0 %v4519
        %v4691 = vpop.f32.mrb[0].mxu0
        %v4692 = vadd.f32 %v4452, %v4691
        %v4693 = vpop.f32.mrb[0].mxu0
        %v4694 = vadd.f32 %v4456, %v4693
        %v4695 = vpop.f32.mrb[0].mxu0
        %v4696 = vadd.f32 %v4452, %v4695
        %v4697 = vpop.f32.mrb[0].mxu0
        %v4698 = vadd.f32 %v4456, %v4697
        %4699 = vmatprep.mubr.bf16.mxu0 0
        %4700 = vmatmul.mubr.bf16.gmra.mrb[0].mxu0 %v4522
        %v4701 = vpop.f32.mrb[0].mxu0
        %v4702 = vadd.f32 %v4452, %v4701
        %v4703 = vpop.f32.mrb[0].mxu0
        %v4704 = vadd.f32 %v4456, %v4703
        %v4705 = vpop.f32.mrb[0].mxu0
        %v4706 = vadd.f32 %v4452, %v4705
        %v4707 = vpop.f32.mrb[0].mxu0
        %v4708 = vadd.f32 %v4456, %v4707
        %4709 = vmatprep.mubr.bf16.mxu0 0
        %4710 = vmatmul.mubr.bf16.gmra.mrb[0].mxu0 %v4525
        %v4711 = vpop.f32.mrb[0].mxu0
        %v4712 = vadd.f32 %v4452, %v4711
        %v4713 = vpop.f32.mrb[0].mxu0
        %v4714 = vadd.f32 %v4456, %v4713
        %v4715 = vpop.f32.mrb[0].mxu0
        %v4716 = vadd.f32 %v4452, %v4715
        %v4717 = vpop.f32.mrb[0].mxu0
        %v4718 = vadd.f32 %v4456, %v4717
        %4719 = vdwg.mxu0
        %v4720 = vxor.u32 %v4562, 2147483648
        %v4721 = vxor.u32 %v4564, 2147483648
        %v4722 = vxor.u32 %v4566, 2147483648
        %v4723 = vxor.u32 %v4568, 2147483648
        %v4724 = vxor.u32 %v4572, 2147483648
        %v4725 = vxor.u32 %v4574, 2147483648
        %v4726 = vxor.u32 %v4576, 2147483648
        %v4727 = vxor.u32 %v4578, 2147483648
        %v4728 = vxor.u32 %v4582, 2147483648
        %v4729 = vxor.u32 %v4584, 2147483648
        %v4730 = vxor.u32 %v4586, 2147483648
        %v4731 = vxor.u32 %v4588, 2147483648
        %v4732 = vxor.u32 %v4592, 2147483648
        %v4733 = vxor.u32 %v4594, 2147483648
        %v4734 = vxor.u32 %v4596, 2147483648
        %v4735 = vxor.u32 %v4598, 2147483648
        %v4736 = vxor.u32 %v4602, 2147483648
        %v4737 = vxor.u32 %v4604, 2147483648
        %v4738 = vxor.u32 %v4606, 2147483648
        %v4739 = vxor.u32 %v4608, 2147483648
        %v4740 = vxor.u32 %v4612, 2147483648
        %v4741 = vxor.u32 %v4614, 2147483648
        %v4742 = vxor.u32 %v4616, 2147483648
        %v4743 = vxor.u32 %v4618, 2147483648
        %v4744 = vxor.u32 %v4622, 2147483648
        %v4745 = vxor.u32 %v4624, 2147483648
        %v4746 = vxor.u32 %v4626, 2147483648
        %v4747 = vxor.u32 %v4628, 2147483648
        %v4748 = vxor.u32 %v4632, 2147483648
        %v4749 = vxor.u32 %v4634, 2147483648
        %v4750 = vxor.u32 %v4636, 2147483648
        %v4751 = vxor.u32 %v4638, 2147483648
        %v4752 = vxor.u32 %v4642, 2147483648
        %v4753 = vxor.u32 %v4644, 2147483648
        %v4754 = vxor.u32 %v4646, 2147483648
        %v4755 = vxor.u32 %v4648, 2147483648
        %v4756 = vxor.u32 %v4652, 2147483648
        %v4757 = vxor.u32 %v4654, 2147483648
        %v4758 = vxor.u32 %v4656, 2147483648
        %v4759 = vxor.u32 %v4658, 2147483648
        %v4760 = vxor.u32 %v4662, 2147483648
        %v4761 = vxor.u32 %v4664, 2147483648
        %v4762 = vxor.u32 %v4666, 2147483648
        %v4763 = vxor.u32 %v4668, 2147483648
        %v4764 = vxor.u32 %v4672, 2147483648
        %v4765 = vxor.u32 %v4674, 2147483648
        %v4766 = vxor.u32 %v4676, 2147483648
        %v4767 = vxor.u32 %v4678, 2147483648
        %v4768 = vxor.u32 %v4682, 2147483648
        %v4769 = vxor.u32 %v4684, 2147483648
        %v4770 = vxor.u32 %v4686, 2147483648
        %v4771 = vxor.u32 %v4688, 2147483648
        %v4772 = vxor.u32 %v4692, 2147483648
        %v4773 = vxor.u32 %v4694, 2147483648
        %v4774 = vxor.u32 %v4696, 2147483648
        %v4775 = vxor.u32 %v4698, 2147483648
        %v4776 = vxor.u32 %v4702, 2147483648
        %v4777 = vxor.u32 %v4704, 2147483648
        %v4778 = vxor.u32 %v4706, 2147483648
        %v4779 = vxor.u32 %v4708, 2147483648
        %v4780 = vxor.u32 %v4712, 2147483648
        %v4781 = vxor.u32 %v4714, 2147483648
        %v4782 = vxor.u32 %v4716, 2147483648
        %v4783 = vxor.u32 %v4718, 2147483648
        %v4784 = vmul.f32 %v4720, 1.442695
        %v4785 = vpow.pop %v4784
        %v4786 = vmul.f32 %v4721, 1.442695
        %v4787 = vpow.pop %v4786
        %v4788 = vmul.f32 %v4722, 1.442695
        %v4789 = vpow.pop %v4788
        %v4790 = vmul.f32 %v4723, 1.442695
        %v4791 = vpow.pop %v4790
        %v4792 = vmul.f32 %v4724, 1.442695
        %v4793 = vpow.pop %v4792
        %v4794 = vmul.f32 %v4725, 1.442695
        %v4795 = vpow.pop %v4794
        %v4796 = vmul.f32 %v4726, 1.442695
        %v4797 = vpow.pop %v4796
        %v4798 = vmul.f32 %v4727, 1.442695
        %v4799 = vpow.pop %v4798
        %v4800 = vmul.f32 %v4728, 1.442695
        %v4801 = vpow.pop %v4800
        %v4802 = vmul.f32 %v4729, 1.442695
        %v4803 = vpow.pop %v4802
        %v4804 = vmul.f32 %v4730, 1.442695
        %v4805 = vpow.pop %v4804
        %v4806 = vmul.f32 %v4731, 1.442695
        %v4807 = vpow.pop %v4806
        %v4808 = vmul.f32 %v4732, 1.442695
        %v4809 = vpow.pop %v4808
        %v4810 = vmul.f32 %v4733, 1.442695
        %v4811 = vpow.pop %v4810
        %v4812 = vmul.f32 %v4734, 1.442695
        %v4813 = vpow.pop %v4812
        %v4814 = vmul.f32 %v4735, 1.442695
        %v4815 = vpow.pop %v4814
        %v4816 = vmul.f32 %v4736, 1.442695
        %v4817 = vpow.pop %v4816
        %v4818 = vmul.f32 %v4737, 1.442695
        %v4819 = vpow.pop %v4818
        %v4820 = vmul.f32 %v4738, 1.442695
        %v4821 = vpow.pop %v4820
        %v4822 = vmul.f32 %v4739, 1.442695
        %v4823 = vpow.pop %v4822
        %v4824 = vmul.f32 %v4740, 1.442695
        %v4825 = vpow.pop %v4824
        %v4826 = vmul.f32 %v4741, 1.442695
        %v4827 = vpow.pop %v4826
        %v4828 = vmul.f32 %v4742, 1.442695
        %v4829 = vpow.pop %v4828
        %v4830 = vmul.f32 %v4743, 1.442695
        %v4831 = vpow.pop %v4830
        %v4832 = vmul.f32 %v4744, 1.442695
        %v4833 = vpow.pop %v4832
        %v4834 = vmul.f32 %v4745, 1.442695
        %v4835 = vpow.pop %v4834
        %v4836 = vmul.f32 %v4746, 1.442695
        %v4837 = vpow.pop %v4836
        %v4838 = vmul.f32 %v4747, 1.442695
        %v4839 = vpow.pop %v4838
        %v4840 = vmul.f32 %v4748, 1.442695
        %v4841 = vpow.pop %v4840
        %v4842 = vmul.f32 %v4749, 1.442695
        %v4843 = vpow.pop %v4842
        %v4844 = vmul.f32 %v4750, 1.442695
        %v4845 = vpow.pop %v4844
        %v4846 = vmul.f32 %v4751, 1.442695
        %v4847 = vpow.pop %v4846
        %v4848 = vmul.f32 %v4752, 1.442695
        %v4849 = vpow.pop %v4848
        %v4850 = vmul.f32 %v4753, 1.442695
        %v4851 = vpow.pop %v4850
        %v4852 = vmul.f32 %v4754, 1.442695
        %v4853 = vpow.pop %v4852
        %v4854 = vmul.f32 %v4755, 1.442695
        %v4855 = vpow.pop %v4854
        %v4856 = vmul.f32 %v4756, 1.442695
        %v4857 = vpow.pop %v4856
        %v4858 = vmul.f32 %v4757, 1.442695
        %v4859 = vpow.pop %v4858
        %v4860 = vmul.f32 %v4758, 1.442695
        %v4861 = vpow.pop %v4860
        %v4862 = vmul.f32 %v4759, 1.442695
        %v4863 = vpow.pop %v4862
        %v4864 = vmul.f32 %v4760, 1.442695
        %v4865 = vpow.pop %v4864
        %v4866 = vmul.f32 %v4761, 1.442695
        %v4867 = vpow.pop %v4866
        %v4868 = vmul.f32 %v4762, 1.442695
        %v4869 = vpow.pop %v4868
        %v4870 = vmul.f32 %v4763, 1.442695
        %v4871 = vpow.pop %v4870
        %v4872 = vmul.f32 %v4764, 1.442695
        %v4873 = vpow.pop %v4872
        %v4874 = vmul.f32 %v4765, 1.442695
        %v4875 = vpow.pop %v4874
        %v4876 = vmul.f32 %v4766, 1.442695
        %v4877 = vpow.pop %v4876
        %v4878 = vmul.f32 %v4767, 1.442695
        %v4879 = vpow.pop %v4878
        %v4880 = vmul.f32 %v4768, 1.442695
        %v4881 = vpow.pop %v4880
        %v4882 = vmul.f32 %v4769, 1.442695
        %v4883 = vpow.pop %v4882
        %v4884 = vmul.f32 %v4770, 1.442695
        %v4885 = vpow.pop %v4884
        %v4886 = vmul.f32 %v4771, 1.442695
        %v4887 = vpow.pop %v4886
        %v4888 = vmul.f32 %v4772, 1.442695
        %v4889 = vpow.pop %v4888
        %v4890 = vmul.f32 %v4773, 1.442695
        %v4891 = vpow.pop %v4890
        %v4892 = vmul.f32 %v4774, 1.442695
        %v4893 = vpow.pop %v4892
        %v4894 = vmul.f32 %v4775, 1.442695
        %v4895 = vpow.pop %v4894
        %v4896 = vmul.f32 %v4776, 1.442695
        %v4897 = vpow.pop %v4896
        %v4898 = vmul.f32 %v4777, 1.442695
        %v4899 = vpow.pop %v4898
        %v4900 = vmul.f32 %v4778, 1.442695
        %v4901 = vpow.pop %v4900
        %v4902 = vmul.f32 %v4779, 1.442695
        %v4903 = vpow.pop %v4902
        %v4904 = vmul.f32 %v4780, 1.442695
        %v4905 = vpow.pop %v4904
        %v4906 = vmul.f32 %v4781, 1.442695
        %v4907 = vpow.pop %v4906
        %v4908 = vmul.f32 %v4782, 1.442695
        %v4909 = vpow.pop %v4908
        %v4910 = vmul.f32 %v4783, 1.442695
        %v4911 = vpow.pop %v4910
        %v4912 = vadd.f32 %v4785, 1.0
        %v4913 = vadd.f32 %v4787, 1.0
        %v4914 = vadd.f32 %v4789, 1.0
        %v4915 = vadd.f32 %v4791, 1.0
        %v4916 = vadd.f32 %v4793, 1.0
        %v4917 = vadd.f32 %v4795, 1.0
        %v4918 = vadd.f32 %v4797, 1.0
        %v4919 = vadd.f32 %v4799, 1.0
        %v4920 = vadd.f32 %v4801, 1.0
        %v4921 = vadd.f32 %v4803, 1.0
        %v4922 = vadd.f32 %v4805, 1.0
        %v4923 = vadd.f32 %v4807, 1.0
        %v4924 = vadd.f32 %v4809, 1.0
        %v4925 = vadd.f32 %v4811, 1.0
        %v4926 = vadd.f32 %v4813, 1.0
        %v4927 = vadd.f32 %v4815, 1.0
        %v4928 = vadd.f32 %v4817, 1.0
        %v4929 = vadd.f32 %v4819, 1.0
        %v4930 = vadd.f32 %v4821, 1.0
        %v4931 = vadd.f32 %v4823, 1.0
        %v4932 = vadd.f32 %v4825, 1.0
        %v4933 = vadd.f32 %v4827, 1.0
        %v4934 = vadd.f32 %v4829, 1.0
        %v4935 = vadd.f32 %v4831, 1.0
        %v4936 = vadd.f32 %v4833, 1.0
        %v4937 = vadd.f32 %v4835, 1.0
        %v4938 = vadd.f32 %v4837, 1.0
        %v4939 = vadd.f32 %v4839, 1.0
        %v4940 = vadd.f32 %v4841, 1.0
        %v4941 = vadd.f32 %v4843, 1.0
        %v4942 = vadd.f32 %v4845, 1.0
        %v4943 = vadd.f32 %v4847, 1.0
        %v4944 = vadd.f32 %v4849, 1.0
        %v4945 = vadd.f32 %v4851, 1.0
        %v4946 = vadd.f32 %v4853, 1.0
        %v4947 = vadd.f32 %v4855, 1.0
        %v4948 = vadd.f32 %v4857, 1.0
        %v4949 = vadd.f32 %v4859, 1.0
        %v4950 = vadd.f32 %v4861, 1.0
        %v4951 = vadd.f32 %v4863, 1.0
        %v4952 = vadd.f32 %v4865, 1.0
        %v4953 = vadd.f32 %v4867, 1.0
        %v4954 = vadd.f32 %v4869, 1.0
        %v4955 = vadd.f32 %v4871, 1.0
        %v4956 = vadd.f32 %v4873, 1.0
        %v4957 = vadd.f32 %v4875, 1.0
        %v4958 = vadd.f32 %v4877, 1.0
        %v4959 = vadd.f32 %v4879, 1.0
        %v4960 = vadd.f32 %v4881, 1.0
        %v4961 = vadd.f32 %v4883, 1.0
        %v4962 = vadd.f32 %v4885, 1.0
        %v4963 = vadd.f32 %v4887, 1.0
        %v4964 = vadd.f32 %v4889, 1.0
        %v4965 = vadd.f32 %v4891, 1.0
        %v4966 = vadd.f32 %v4893, 1.0
        %v4967 = vadd.f32 %v4895, 1.0
        %v4968 = vadd.f32 %v4897, 1.0
        %v4969 = vadd.f32 %v4899, 1.0
        %v4970 = vadd.f32 %v4901, 1.0
        %v4971 = vadd.f32 %v4903, 1.0
        %v4972 = vadd.f32 %v4905, 1.0
        %v4973 = vadd.f32 %v4907, 1.0
        %v4974 = vadd.f32 %v4909, 1.0
        %v4975 = vadd.f32 %v4911, 1.0
        %v4976 = vrcp.pop %v4912
        %v4977 = vmul.f32 1.0, %v4976
        %v4978 = vrcp.pop %v4913
        %v4979 = vmul.f32 1.0, %v4978
        %v4980 = vrcp.pop %v4914
        %v4981 = vmul.f32 1.0, %v4980
        %v4982 = vrcp.pop %v4915
        %v4983 = vmul.f32 1.0, %v4982
        %v4984 = vrcp.pop %v4916
        %v4985 = vmul.f32 1.0, %v4984
        %v4986 = vrcp.pop %v4917
        %v4987 = vmul.f32 1.0, %v4986
        %v4988 = vrcp.pop %v4918
        %v4989 = vmul.f32 1.0, %v4988
        %v4990 = vrcp.pop %v4919
        %v4991 = vmul.f32 1.0, %v4990
        %v4992 = vrcp.pop %v4920
        %v4993 = vmul.f32 1.0, %v4992
        %v4994 = vrcp.pop %v4921
        %v4995 = vmul.f32 1.0, %v4994
        %v4996 = vrcp.pop %v4922
        %v4997 = vmul.f32 1.0, %v4996
        %v4998 = vrcp.pop %v4923
        %v4999 = vmul.f32 1.0, %v4998
        %v5000 = vrcp.pop %v4924
        %v5001 = vmul.f32 1.0, %v5000
        %v5002 = vrcp.pop %v4925
        %v5003 = vmul.f32 1.0, %v5002
        %v5004 = vrcp.pop %v4926
        %v5005 = vmul.f32 1.0, %v5004
        %v5006 = vrcp.pop %v4927
        %v5007 = vmul.f32 1.0, %v5006
        %v5008 = vrcp.pop %v4928
        %v5009 = vmul.f32 1.0, %v5008
        %v5010 = vrcp.pop %v4929
        %v5011 = vmul.f32 1.0, %v5010
        %v5012 = vrcp.pop %v4930
        %v5013 = vmul.f32 1.0, %v5012
        %v5014 = vrcp.pop %v4931
        %v5015 = vmul.f32 1.0, %v5014
        %v5016 = vrcp.pop %v4932
        %v5017 = vmul.f32 1.0, %v5016
        %v5018 = vrcp.pop %v4933
        %v5019 = vmul.f32 1.0, %v5018
        %v5020 = vrcp.pop %v4934
        %v5021 = vmul.f32 1.0, %v5020
        %v5022 = vrcp.pop %v4935
        %v5023 = vmul.f32 1.0, %v5022
        %v5024 = vrcp.pop %v4936
        %v5025 = vmul.f32 1.0, %v5024
        %v5026 = vrcp.pop %v4937
        %v5027 = vmul.f32 1.0, %v5026
        %v5028 = vrcp.pop %v4938
        %v5029 = vmul.f32 1.0, %v5028
        %v5030 = vrcp.pop %v4939
        %v5031 = vmul.f32 1.0, %v5030
        %v5032 = vrcp.pop %v4940
        %v5033 = vmul.f32 1.0, %v5032
        %v5034 = vrcp.pop %v4941
        %v5035 = vmul.f32 1.0, %v5034
        %v5036 = vrcp.pop %v4942
        %v5037 = vmul.f32 1.0, %v5036
        %v5038 = vrcp.pop %v4943
        %v5039 = vmul.f32 1.0, %v5038
        %v5040 = vrcp.pop %v4944
        %v5041 = vmul.f32 1.0, %v5040
        %v5042 = vrcp.pop %v4945
        %v5043 = vmul.f32 1.0, %v5042
        %v5044 = vrcp.pop %v4946
        %v5045 = vmul.f32 1.0, %v5044
        %v5046 = vrcp.pop %v4947
        %v5047 = vmul.f32 1.0, %v5046
        %v5048 = vrcp.pop %v4948
        %v5049 = vmul.f32 1.0, %v5048
        %v5050 = vrcp.pop %v4949
        %v5051 = vmul.f32 1.0, %v5050
        %v5052 = vrcp.pop %v4950
        %v5053 = vmul.f32 1.0, %v5052
        %v5054 = vrcp.pop %v4951
        %v5055 = vmul.f32 1.0, %v5054
        %v5056 = vrcp.pop %v4952
        %v5057 = vmul.f32 1.0, %v5056
        %v5058 = vrcp.pop %v4953
        %v5059 = vmul.f32 1.0, %v5058
        %v5060 = vrcp.pop %v4954
        %v5061 = vmul.f32 1.0, %v5060
        %v5062 = vrcp.pop %v4955
        %v5063 = vmul.f32 1.0, %v5062
        %v5064 = vrcp.pop %v4956
        %v5065 = vmul.f32 1.0, %v5064
        %v5066 = vrcp.pop %v4957
        %v5067 = vmul.f32 1.0, %v5066
        %v5068 = vrcp.pop %v4958
        %v5069 = vmul.f32 1.0, %v5068
        %v5070 = vrcp.pop %v4959
        %v5071 = vmul.f32 1.0, %v5070
        %v5072 = vrcp.pop %v4960
        %v5073 = vmul.f32 1.0, %v5072
        %v5074 = vrcp.pop %v4961
        %v5075 = vmul.f32 1.0, %v5074
        %v5076 = vrcp.pop %v4962
        %v5077 = vmul.f32 1.0, %v5076
        %v5078 = vrcp.pop %v4963
        %v5079 = vmul.f32 1.0, %v5078
        %v5080 = vrcp.pop %v4964
        %v5081 = vmul.f32 1.0, %v5080
        %v5082 = vrcp.pop %v4965
        %v5083 = vmul.f32 1.0, %v5082
        %v5084 = vrcp.pop %v4966
        %v5085 = vmul.f32 1.0, %v5084
        %v5086 = vrcp.pop %v4967
        %v5087 = vmul.f32 1.0, %v5086
        %v5088 = vrcp.pop %v4968
        %v5089 = vmul.f32 1.0, %v5088
        %v5090 = vrcp.pop %v4969
        %v5091 = vmul.f32 1.0, %v5090
        %v5092 = vrcp.pop %v4970
        %v5093 = vmul.f32 1.0, %v5092
        %v5094 = vrcp.pop %v4971
        %v5095 = vmul.f32 1.0, %v5094
        %v5096 = vrcp.pop %v4972
        %v5097 = vmul.f32 1.0, %v5096
        %v5098 = vrcp.pop %v4973
        %v5099 = vmul.f32 1.0, %v5098
        %v5100 = vrcp.pop %v4974
        %v5101 = vmul.f32 1.0, %v5100
        %v5102 = vrcp.pop %v4975
        %v5103 = vmul.f32 1.0, %v5102
        %v5104 = vmul.f32 %v3953, %v4977
        %v5105 = vmul.f32 %v3988, %v4979
        %v5106 = vmul.f32 %v3954, %v4981
        %v5107 = vmul.f32 %v3988, %v4983
        %v5108 = vmul.f32 %v3955, %v4985
        %v5109 = vmul.f32 %v3988, %v4987
        %v5110 = vmul.f32 %v3956, %v4989
        %v5111 = vmul.f32 %v3988, %v4991
        %v5112 = vmul.f32 %v3957, %v4993
        %v5113 = vmul.f32 %v3988, %v4995
        %v5114 = vmul.f32 %v3958, %v4997
        %v5115 = vmul.f32 %v3988, %v4999
        %v5116 = vmul.f32 %v3959, %v5001
        %v5117 = vmul.f32 %v3988, %v5003
        %v5118 = vmul.f32 %v3960, %v5005
        %v5119 = vmul.f32 %v3988, %v5007
        %v5120 = vmul.f32 %v3961, %v5009
        %v5121 = vmul.f32 %v3988, %v5011
        %v5122 = vmul.f32 %v3962, %v5013
        %v5123 = vmul.f32 %v3988, %v5015
        %v5124 = vmul.f32 %v3963, %v5017
        %v5125 = vmul.f32 %v3988, %v5019
        %v5126 = vmul.f32 %v3964, %v5021
        %v5127 = vmul.f32 %v3988, %v5023
        %v5128 = vmul.f32 %v3965, %v5025
        %v5129 = vmul.f32 %v3988, %v5027
        %v5130 = vmul.f32 %v3966, %v5029
        %v5131 = vmul.f32 %v3988, %v5031
        %v5132 = vmul.f32 %v3967, %v5033
        %v5133 = vmul.f32 %v3988, %v5035
        %v5134 = vmul.f32 %v3968, %v5037
        %v5135 = vmul.f32 %v3988, %v5039
        %v5136 = vmul.f32 %v3969, %v5041
        %v5137 = vmul.f32 %v3988, %v5043
        %v5138 = vmul.f32 %v3970, %v5045
        %v5139 = vmul.f32 %v3988, %v5047
        %v5140 = vmul.f32 %v3971, %v5049
        %v5141 = vmul.f32 %v3988, %v5051
        %v5142 = vmul.f32 %v3972, %v5053
        %v5143 = vmul.f32 %v3988, %v5055
        %v5144 = vmul.f32 %v3973, %v5057
        %v5145 = vmul.f32 %v3988, %v5059
        %v5146 = vmul.f32 %v3974, %v5061
        %v5147 = vmul.f32 %v3988, %v5063
        %v5148 = vmul.f32 %v3975, %v5065
        %v5149 = vmul.f32 %v3988, %v5067
        %v5150 = vmul.f32 %v3976, %v5069
        %v5151 = vmul.f32 %v3988, %v5071
        %v5152 = vmul.f32 %v3977, %v5073
        %v5153 = vmul.f32 %v3988, %v5075
        %v5154 = vmul.f32 %v3978, %v5077
        %v5155 = vmul.f32 %v3988, %v5079
        %v5156 = vmul.f32 %v3979, %v5081
        %v5157 = vmul.f32 %v3988, %v5083
        %v5158 = vmul.f32 %v3980, %v5085
        %v5159 = vmul.f32 %v3988, %v5087
        %v5160 = vmul.f32 %v3981, %v5089
        %v5161 = vmul.f32 %v3988, %v5091
        %v5162 = vmul.f32 %v3982, %v5093
        %v5163 = vmul.f32 %v3988, %v5095
        %v5164 = vmul.f32 %v3983, %v5097
        %v5165 = vmul.f32 %v3988, %v5099
        %v5166 = vmul.f32 %v3984, %v5101
        %v5167 = vmul.f32 %v3988, %v5103
        %v5168 = vld [vmem:[%s12] sm:$0xf]
        %v5169 = vld [vmem:[%s12 + $0x4] sm:$0xf]
        %v5170 = vld [vmem:[%s12 + $0x8] sm:$0xf]
        %v5171 = vld [vmem:[%s12 + $0xc] sm:$0xf]
        %v5172 = vld [vmem:[%s12 + $0x10] sm:$0xf]
        %v5173 = vld [vmem:[%s12 + $0x14] sm:$0xf]
        %v5174 = vld [vmem:[%s12 + $0x18] sm:$0xf]
        %v5175 = vld [vmem:[%s12 + $0x1c] sm:$0xf]
        %v5176 = vld [vmem:[%s12 + $0x20] sm:$0xf]
        %v5177 = vld [vmem:[%s12 + $0x24] sm:$0xf]
        %v5178 = vld [vmem:[%s12 + $0x28] sm:$0xf]
        %v5179 = vld [vmem:[%s12 + $0x2c] sm:$0xf]
        %v5180 = vld [vmem:[%s12 + $0x30] sm:$0xf]
        %v5181 = vld [vmem:[%s12 + $0x34] sm:$0xf]
        %v5182 = vld [vmem:[%s12 + $0x38] sm:$0xf]
        %v5183 = vld [vmem:[%s12 + $0x3c] sm:$0xf]
        %v5184 = vld [vmem:[%s12 + $0x40] sm:$0xf]
        %v5185 = vld [vmem:[%s12 + $0x44] sm:$0xf]
        %v5186 = vld [vmem:[%s12 + $0x48] sm:$0xf]
        %v5187 = vld [vmem:[%s12 + $0x4c] sm:$0xf]
        %v5188 = vpack.c.bf16 %v5106, %v5104
        %v5189 = vpack.c.bf16 %v5107, %v5105
        %v5190 = vpack.c.bf16 %v5110, %v5108
        %v5191 = vpack.c.bf16 %v5111, %v5109
        %v5192 = vpack.c.bf16 %v5114, %v5112
        %v5193 = vpack.c.bf16 %v5115, %v5113
        %v5194 = vpack.c.bf16 %v5118, %v5116
        %v5195 = vpack.c.bf16 %v5119, %v5117
        %v5196 = vpack.c.bf16 %v5122, %v5120
        %v5197 = vpack.c.bf16 %v5123, %v5121
        %v5198 = vpack.c.bf16 %v5126, %v5124
        %v5199 = vpack.c.bf16 %v5127, %v5125
        %v5200 = vpack.c.bf16 %v5130, %v5128
        %v5201 = vpack.c.bf16 %v5131, %v5129
        %v5202 = vpack.c.bf16 %v5134, %v5132
        %v5203 = vpack.c.bf16 %v5135, %v5133
        %v5204 = vpack.c.bf16 %v5138, %v5136
        %v5205 = vpack.c.bf16 %v5139, %v5137
        %v5206 = vpack.c.bf16 %v5142, %v5140
        %v5207 = vpack.c.bf16 %v5143, %v5141
        %v5208 = vpack.c.bf16 %v5146, %v5144
        %v5209 = vpack.c.bf16 %v5147, %v5145
        %v5210 = vpack.c.bf16 %v5150, %v5148
        %v5211 = vpack.c.bf16 %v5151, %v5149
        %v5212 = vpack.c.bf16 %v5154, %v5152
        %v5213 = vpack.c.bf16 %v5155, %v5153
        %v5214 = vpack.c.bf16 %v5158, %v5156
        %v5215 = vpack.c.bf16 %v5159, %v5157
        %v5216 = vpack.c.bf16 %v5162, %v5160
        %v5217 = vpack.c.bf16 %v5163, %v5161
        %v5218 = vpack.c.bf16 %v5166, %v5164
        %v5219 = vpack.c.bf16 %v5167, %v5165
        %v5240 = vunpack.c.l.b16 %v5168
        %v5241 = vunpack.c.l.b16 %v5169
        %v5242 = vunpack.c.l.b16 %v5170
        %v5243 = vunpack.c.l.b16 %v5171
        %v5244 = vunpack.c.l.b16 %v5172
        %v5245 = vunpack.c.l.b16 %v5173
        %v5246 = vunpack.c.l.b16 %v5174
        %v5247 = vunpack.c.l.b16 %v5175
        %v5248 = vunpack.c.l.b16 %v5176
        %v5249 = vunpack.c.l.b16 %v5177
        %v5250 = vunpack.c.l.b16 %v5178
        %v5251 = vunpack.c.l.b16 %v5179
        %v5252 = vunpack.c.l.b16 %v5180
        %v5253 = vunpack.c.l.b16 %v5181
        %v5254 = vunpack.c.l.b16 %v5182
        %v5255 = vunpack.c.l.b16 %v5183
        %v5256 = vunpack.c.l.b16 %v5184
        %v5257 = vunpack.c.l.b16 %v5185
        %v5258 = vunpack.c.l.b16 %v5186
        %v5259 = vunpack.c.l.b16 %v5187
        %v5260 = vpack.c.b16 %v5241, %v5240
        %v5261 = vpack.c.b16 %v5243, %v5242
        %v5262 = vpack.c.b16 %v5245, %v5244
        %v5263 = vpack.c.b16 %v5247, %v5246
        %v5264 = vpack.c.b16 %v5249, %v5248
        %v5265 = vpack.c.b16 %v5251, %v5250
        %v5266 = vpack.c.b16 %v5253, %v5252
        %v5267 = vpack.c.b16 %v5255, %v5254
        %v5268 = vpack.c.b16 %v5257, %v5256
        %v5269 = vpack.c.b16 %v5259, %v5258
        %v5281 = vsel %vm516, %v5189, 0
        %v5284 = vsel %vm516, %v5191, 0
        %v5287 = vsel %vm516, %v5193, 0
        %v5290 = vsel %vm516, %v5195, 0
        %v5293 = vsel %vm516, %v5197, 0
        %v5296 = vsel %vm516, %v5199, 0
        %v5299 = vsel %vm516, %v5201, 0
        %v5302 = vsel %vm516, %v5203, 0
        %v5305 = vsel %vm516, %v5205, 0
        %v5308 = vsel %vm516, %v5207, 0
        %v5311 = vsel %vm516, %v5209, 0
        %v5314 = vsel %vm516, %v5211, 0
        %v5317 = vsel %vm516, %v5213, 0
        %v5320 = vsel %vm516, %v5215, 0
        %v5323 = vsel %vm516, %v5217, 0
        %v5326 = vsel %vm516, %v5219, 0
        %5328 = vmatprep.subr.bf16.mxu0 0
        %5329 = vmatpush1.bf16.msra.mxu0 %v5260
        %5330 = vmatprep.subr.bf16.mxu0 0
        %5331 = vmatpush1.bf16.msra.mxu0 %v5261
        %5332 = vmatprep.subr.bf16.mxu0 0
        %5333 = vmatpush1.bf16.msra.mxu0 %v5262
        %5334 = vmatprep.subr.bf16.mxu0 0
        %5335 = vmatpush1.bf16.msra.mxu0 %v5263
        %5336 = vmatprep.subr.bf16.mxu0 0
        %5337 = vmatpush1.bf16.msra.mxu0 %v5264
        %5338 = vmatprep.subr.bf16.mxu0 0
        %5339 = vmatpush1.bf16.msra.mxu0 %v5265
        %5340 = vmatprep.subr.bf16.mxu0 0
        %5341 = vmatpush1.bf16.msra.mxu0 %v5266
        %5342 = vmatprep.subr.bf16.mxu0 0
        %5343 = vmatpush1.bf16.msra.mxu0 %v5267
        %5344 = vmatprep.subr.bf16.mxu0 0
        %5345 = vmatpush1.bf16.msra.mxu0 %v5268
        %5346 = vmatprep.subr.bf16.mxu0 0
        %5347 = vmatpush1.bf16.msra.mxu0 %v5269
        %5348 = vmatprep.subr.bf16.mxu0 0
        %5349 = vmatpush1.bf16.msra.mxu0 0
        %5350 = vmatprep.subr.bf16.mxu0 0
        %5351 = vmatpush1.bf16.msra.mxu0 0
        %5352 = vmatprep.subr.bf16.mxu0 0
        %5353 = vmatpush1.bf16.msra.mxu0 0
        %5354 = vmatprep.subr.bf16.mxu0 0
        %5355 = vmatpush1.bf16.msra.mxu0 0
        %5356 = vmatprep.subr.bf16.mxu0 0
        %5357 = vmatpush1.bf16.msra.mxu0 0
        %5358 = vmatprep.subr.bf16.mxu0 0
        %5359 = vmatpush1.bf16.msra.mxu0 0
        %5360 = vmatprep.mubr.bf16.mxu0 %v5281
        %5361 = vmatmul.mubr.bf16.gmra.mrb[0].mxu0 %v5188
        %v5362 = vpop.f32.mrb[0].mxu0
        %v5363 = vadd.f32 0.0, %v5362
        %v5364 = vpop.f32.mrb[0].mxu0
        %v5365 = vpop.f32.mrb[0].mxu0
        %v5366 = vadd.f32 0.0, %v5365
        %v5367 = vpop.f32.mrb[0].mxu0
        %5368 = vmatprep.mubr.bf16.mxu0 %v5284
        %5369 = vmatmul.mubr.bf16.gmra.mrb[0].mxu0 %v5190
        %v5370 = vpop.f32.mrb[0].mxu0
        %v5371 = vadd.f32 0.0, %v5370
        %v5372 = vpop.f32.mrb[0].mxu0
        %v5373 = vpop.f32.mrb[0].mxu0
        %v5374 = vadd.f32 0.0, %v5373
        %v5375 = vpop.f32.mrb[0].mxu0
        %5376 = vmatprep.mubr.bf16.mxu0 %v5287
        %5377 = vmatmul.mubr.bf16.gmra.mrb[0].mxu0 %v5192
        %v5378 = vpop.f32.mrb[0].mxu0
        %v5379 = vadd.f32 0.0, %v5378
        %v5380 = vpop.f32.mrb[0].mxu0
        %v5381 = vpop.f32.mrb[0].mxu0
        %v5382 = vadd.f32 0.0, %v5381
        %v5383 = vpop.f32.mrb[0].mxu0
        %5384 = vmatprep.mubr.bf16.mxu0 %v5290
        %5385 = vmatmul.mubr.bf16.gmra.mrb[0].mxu0 %v5194
        %v5386 = vpop.f32.mrb[0].mxu0
        %v5387 = vadd.f32 0.0, %v5386
        %v5388 = vpop.f32.mrb[0].mxu0
        %v5389 = vpop.f32.mrb[0].mxu0
        %v5390 = vadd.f32 0.0, %v5389
        %v5391 = vpop.f32.mrb[0].mxu0
        %5392 = vmatprep.mubr.bf16.mxu0 %v5293
        %5393 = vmatmul.mubr.bf16.gmra.mrb[0].mxu0 %v5196
        %v5394 = vpop.f32.mrb[0].mxu0
        %v5395 = vadd.f32 0.0, %v5394
        %v5396 = vpop.f32.mrb[0].mxu0
        %v5397 = vpop.f32.mrb[0].mxu0
        %v5398 = vadd.f32 0.0, %v5397
        %v5399 = vpop.f32.mrb[0].mxu0
        %5400 = vmatprep.mubr.bf16.mxu0 %v5296
        %5401 = vmatmul.mubr.bf16.gmra.mrb[0].mxu0 %v5198
        %v5402 = vpop.f32.mrb[0].mxu0
        %v5403 = vadd.f32 0.0, %v5402
        %v5404 = vpop.f32.mrb[0].mxu0
        %v5405 = vpop.f32.mrb[0].mxu0
        %v5406 = vadd.f32 0.0, %v5405
        %v5407 = vpop.f32.mrb[0].mxu0
        %5408 = vmatprep.mubr.bf16.mxu0 %v5299
        %5409 = vmatmul.mubr.bf16.gmra.mrb[0].mxu0 %v5200
        %v5410 = vpop.f32.mrb[0].mxu0
        %v5411 = vadd.f32 0.0, %v5410
        %v5412 = vpop.f32.mrb[0].mxu0
        %v5413 = vpop.f32.mrb[0].mxu0
        %v5414 = vadd.f32 0.0, %v5413
        %v5415 = vpop.f32.mrb[0].mxu0
        %5416 = vmatprep.mubr.bf16.mxu0 %v5302
        %5417 = vmatmul.mubr.bf16.gmra.mrb[0].mxu0 %v5202
        %v5418 = vpop.f32.mrb[0].mxu0
        %v5419 = vadd.f32 0.0, %v5418
        %v5420 = vpop.f32.mrb[0].mxu0
        %v5421 = vpop.f32.mrb[0].mxu0
        %v5422 = vadd.f32 0.0, %v5421
        %v5423 = vpop.f32.mrb[0].mxu0
        %5424 = vmatprep.mubr.bf16.mxu0 %v5305
        %5425 = vmatmul.mubr.bf16.gmra.mrb[0].mxu0 %v5204
        %v5426 = vpop.f32.mrb[0].mxu0
        %v5427 = vadd.f32 0.0, %v5426
        %v5428 = vpop.f32.mrb[0].mxu0
        %v5429 = vpop.f32.mrb[0].mxu0
        %v5430 = vadd.f32 0.0, %v5429
        %v5431 = vpop.f32.mrb[0].mxu0
        %5432 = vmatprep.mubr.bf16.mxu0 %v5308
        %5433 = vmatmul.mubr.bf16.gmra.mrb[0].mxu0 %v5206
        %v5434 = vpop.f32.mrb[0].mxu0
        %v5435 = vadd.f32 0.0, %v5434
        %v5436 = vpop.f32.mrb[0].mxu0
        %v5437 = vpop.f32.mrb[0].mxu0
        %v5438 = vadd.f32 0.0, %v5437
        %v5439 = vpop.f32.mrb[0].mxu0
        %5440 = vmatprep.mubr.bf16.mxu0 %v5311
        %5441 = vmatmul.mubr.bf16.gmra.mrb[0].mxu0 %v5208
        %v5442 = vpop.f32.mrb[0].mxu0
        %v5443 = vadd.f32 0.0, %v5442
        %v5444 = vpop.f32.mrb[0].mxu0
        %v5445 = vpop.f32.mrb[0].mxu0
        %v5446 = vadd.f32 0.0, %v5445
        %v5447 = vpop.f32.mrb[0].mxu0
        %5448 = vmatprep.mubr.bf16.mxu0 %v5314
        %5449 = vmatmul.mubr.bf16.gmra.mrb[0].mxu0 %v5210
        %v5450 = vpop.f32.mrb[0].mxu0
        %v5451 = vadd.f32 0.0, %v5450
        %v5452 = vpop.f32.mrb[0].mxu0
        %v5453 = vpop.f32.mrb[0].mxu0
        %v5454 = vadd.f32 0.0, %v5453
        %v5455 = vpop.f32.mrb[0].mxu0
        %5456 = vmatprep.mubr.bf16.mxu0 %v5317
        %5457 = vmatmul.mubr.bf16.gmra.mrb[0].mxu0 %v5212
        %v5458 = vpop.f32.mrb[0].mxu0
        %v5459 = vadd.f32 0.0, %v5458
        %v5460 = vpop.f32.mrb[0].mxu0
        %v5461 = vpop.f32.mrb[0].mxu0
        %v5462 = vadd.f32 0.0, %v5461
        %v5463 = vpop.f32.mrb[0].mxu0
        %5464 = vmatprep.mubr.bf16.mxu0 %v5320
        %5465 = vmatmul.mubr.bf16.gmra.mrb[0].mxu0 %v5214
        %v5466 = vpop.f32.mrb[0].mxu0
        %v5467 = vadd.f32 0.0, %v5466
        %v5468 = vpop.f32.mrb[0].mxu0
        %v5469 = vpop.f32.mrb[0].mxu0
        %v5470 = vadd.f32 0.0, %v5469
        %v5471 = vpop.f32.mrb[0].mxu0
        %5472 = vmatprep.mubr.bf16.mxu0 %v5323
        %5473 = vmatmul.mubr.bf16.gmra.mrb[0].mxu0 %v5216
        %v5474 = vpop.f32.mrb[0].mxu0
        %v5475 = vadd.f32 0.0, %v5474
        %v5476 = vpop.f32.mrb[0].mxu0
        %v5477 = vpop.f32.mrb[0].mxu0
        %v5478 = vadd.f32 0.0, %v5477
        %v5479 = vpop.f32.mrb[0].mxu0
        %5480 = vmatprep.mubr.bf16.mxu0 %v5326
        %5481 = vmatmul.mubr.bf16.gmra.mrb[0].mxu0 %v5218
        %v5482 = vpop.f32.mrb[0].mxu0
        %v5483 = vadd.f32 0.0, %v5482
        %v5484 = vpop.f32.mrb[0].mxu0
        %v5485 = vpop.f32.mrb[0].mxu0
        %v5486 = vadd.f32 0.0, %v5485
        %v5487 = vpop.f32.mrb[0].mxu0
        %5488 = vdwg.mxu0
        %5489 = vst [vmem:[%s434] sm:$0xff] %v5363
        %5490 = vst [vmem:[%s434 + $0x8] sm:$0xff] %v5366
        %5491 = vst [vmem:[%s434 + $0x10] sm:$0xff] %v5371
        %5492 = vst [vmem:[%s434 + $0x18] sm:$0xff] %v5374
        %5493 = vst [vmem:[%s434 + $0x20] sm:$0xff] %v5379
        %5494 = vst [vmem:[%s434 + $0x28] sm:$0xff] %v5382
        %5495 = vst [vmem:[%s434 + $0x30] sm:$0xff] %v5387
        %5496 = vst [vmem:[%s434 + $0x38] sm:$0xff] %v5390
        %5497 = vst [vmem:[%s434 + $0x40] sm:$0xff] %v5395
        %5498 = vst [vmem:[%s434 + $0x48] sm:$0xff] %v5398
        %5499 = vst [vmem:[%s434 + $0x50] sm:$0xff] %v5403
        %5500 = vst [vmem:[%s434 + $0x58] sm:$0xff] %v5406
        %5501 = vst [vmem:[%s434 + $0x60] sm:$0xff] %v5411
        %5502 = vst [vmem:[%s434 + $0x68] sm:$0xff] %v5414
        %5503 = vst [vmem:[%s434 + $0x70] sm:$0xff] %v5419
        %5504 = vst [vmem:[%s434 + $0x78] sm:$0xff] %v5422
        %5505 = vst [vmem:[%s434 + $0x80] sm:$0xff] %v5427
        %5506 = vst [vmem:[%s434 + $0x88] sm:$0xff] %v5430
        %5507 = vst [vmem:[%s434 + $0x90] sm:$0xff] %v5435
        %5508 = vst [vmem:[%s434 + $0x98] sm:$0xff] %v5438
        %5509 = vst [vmem:[%s434 + $0xa0] sm:$0xff] %v5443
        %5510 = vst [vmem:[%s434 + $0xa8] sm:$0xff] %v5446
        %5511 = vst [vmem:[%s434 + $0xb0] sm:$0xff] %v5451
        %5512 = vst [vmem:[%s434 + $0xb8] sm:$0xff] %v5454
        %5513 = vst [vmem:[%s434 + $0xc0] sm:$0xff] %v5459
        %5514 = vst [vmem:[%s434 + $0xc8] sm:$0xff] %v5462
        %5515 = vst [vmem:[%s434 + $0xd0] sm:$0xff] %v5467
        %5516 = vst [vmem:[%s434 + $0xd8] sm:$0xff] %v5470
        %5517 = vst [vmem:[%s434 + $0xe0] sm:$0xff] %v5475
        %5518 = vst [vmem:[%s434 + $0xe8] sm:$0xff] %v5478
        %5519 = vst [vmem:[%s434 + $0xf0] sm:$0xff] %v5483
        %5520 = vst [vmem:[%s434 + $0xf8] sm:$0xff] %v5486
        %s5521 = sand.u32 %s313, 1
        %s5522 = scalar_lea.sflag [#allocation3], %s5521
        %s5523 = sand.u32 %s313, 1
        %s5524 = smul.addr %s5523, 256
        %s5525 = scalar_lea.vmem [#allocation2], %s5524
        // Predicated region
        $region73: #{tpu_custom_call.1} parent=71 // pred_check
          %p5526 = pneg %p323
        $region74: #{tpu_custom_call.1} parent=71 // pred_check_branch
          %5528 = sbr.rel (%p5526) target = $region76
        $region75: #{tpu_custom_call.1} parent=71 // pred_region
          %s5529 = smul.u32 32, %s27
          %s5531 = ssub.s32 4096, 4096
          %5532 = vsyncadd %s5522, %s5531
          %s5533 = smul.addr %s5529, 128
          %s5534 = scalar_lea.hbm %s13, %s5533
          %s5535 = sshll.u32 %s5525, 4
          %s5536 = int_to_ptr.vmem [resolvable:$true] %s5535
          %5541 = dma.vmem_to_hbm [thread:$0]  %s5536, 4096, %s5534, %s5522, 128, 128, 8
        $region76: #{tpu_custom_call.1} parent=71 // pred_fallthru
          _
      $region72: #{tpu_custom_call.1} parent=5 // pred_fallthru
        _
      %p5542 = scmp.le.s32.totalorder 2, %s22
      // Predicated region
      $region77: #{tpu_custom_call.1} parent=5 // pred_check
        %p5543 = pneg %p5542
      $region78: #{tpu_custom_call.1} parent=5 // pred_check_branch
        %5545 = sbr.rel (%p5543) target = $region80
      $region79: #{tpu_custom_call.1} parent=5 // pred_region
        %s5546 = ssub.s32 %s22, 2
        // Predicated region
        $region81: #{tpu_custom_call.1} parent=79 // pred_check
          %p5547 = pneg %p329
        $region82: #{tpu_custom_call.1} parent=79 // pred_check_branch
          %5549 = sbr.rel (%p5547) target = $region84
        $region83: #{tpu_custom_call.1} parent=79 // pred_region
          %s5550 = sand.u32 %s314, 1
          %s5551 = scalar_lea.sflag [#allocation3], %s5550
          %s5552 = sand.u32 %s314, 1
          %s5553 = smul.addr %s5552, 256
          %s5554 = scalar_lea.vmem [#allocation2], %s5553
          %5555 = dma.done %s5551, 4096
        $region84: #{tpu_custom_call.1} parent=79 // pred_fallthru
          _
      $region80: #{tpu_custom_call.1} parent=5 // pred_fallthru
        _
    $region6: #{tpu_custom_call.1} parent=1 // loop_footer
      %s26 = sadd.s32 1, %s22
    $region7: #{tpu_custom_call.1} parent=1 // loop_footer_branch
      %21 = sbr.rel target = $region3
    $region8: #{tpu_custom_call.1} parent=1 // loop_exit
      _
    %5556 = vsyncpa [#allocation3], 1
    %s5557 = scalar_lea.sflag [#allocation3], 1
    %5558 = vsyncpa %s5557, 1

</llo_original>
